<compile_context>
chip_gen: v6e
topology: v6e:2x2x1
jax: 0.10.0
libtpu: 0.0.40
codegen_flags: <defaults>
</compile_context>

<pallas_src>
import numpy as np
import jax
import jax.numpy as jnp
from jax import lax
from jax.experimental import pallas as pl
from jax.experimental.pallas import tpu as pltpu

_MARGIN = 10.0
_IMG_BOUND = 799.0
_F32_EPS = float(np.finfo(np.float32).eps)


def _round_up(x, m):
    return ((x + m - 1) // m) * m


# ----------------------------------------------------------------------------
# Pallas kernel: one (batch image, RoI block) pair per grid step.
# ----------------------------------------------------------------------------
def _make_sdf_roi_kernel(H, W, PH, PW, TR, num_blocks, C):
    inv_cpool = 1.0 / float(C * PH * PW)

    def kernel(gmax_ref, bbox_ref, img_ref, out_ref, wy_ref, wx_ref):
        b = pl.program_id(0)
        j = pl.program_id(1)
        blk = b * num_blocks + j
        gy_max = gmax_ref[2 * blk]          # max adaptive grid along y in this block
        gx_max = gmax_ref[2 * blk + 1]      # max adaptive grid along x in this block

        # ---- per-RoI parameters, vectorized over the TR RoIs of this block ----
        bb = bbox_ref[0]                    # (TR, 4) [minx, miny, maxx, maxy]
        minx = bb[:, 0:1]
        miny = bb[:, 1:2]
        maxx = bb[:, 2:3]
        maxy = bb[:, 3:4]
        cx = (minx + maxx) * 0.5
        cy = (miny + maxy) * 0.5
        w = maxx - minx
        h = maxy - miny
        w_c = jnp.clip(w, _MARGIN, _IMG_BOUND - _MARGIN)
        h_c = jnp.clip(h, _MARGIN, _IMG_BOUND - _MARGIN)
        half_w = 0.5 * w_c
        half_h = 0.5 * h_c
        cx_c = jnp.clip(cx, half_w + _MARGIN, _IMG_BOUND - half_w - _MARGIN)
        cy_c = jnp.clip(cy, half_h + _MARGIN, _IMG_BOUND - half_h - _MARGIN)

        # RoIAlignRotated with theta == 0: spatial_scale=1, aligned=True (0.5 offset),
        # sampling_ratio=-1.  y depends only on (ph, iy); x only on (pw, ix).
        bin_h = h_c * (1.0 / PH)
        bin_w = w_c * (1.0 / PW)
        g_h_f = jnp.ceil(h_c * (1.0 / PH))
        g_w_f = jnp.ceil(w_c * (1.0 / PW))
        g_h_i = g_h_f.astype(jnp.int32)
        g_w_i = g_w_f.astype(jnp.int32)
        count_f = jnp.maximum(g_h_i * g_w_i, 1).astype(jnp.float32)
        y_base = (cy_c - 0.5) - half_h      # roi center offset + roi_start_h
        x_base = (cx_c - 0.5) - half_w
        step_y = bin_h / g_h_f              # sample spacing inside one bin
        step_x = bin_w / g_w_f

        h_iota = lax.broadcasted_iota(jnp.int32, (TR, H), 1)   # hoisted out of loops
        w_iota = lax.broadcasted_iota(jnp.int32, (TR, W), 1)

        wy_ref[...] = jnp.zeros_like(wy_ref)   # (TR, H) accumulated row weights
        wx_ref[...] = jnp.zeros_like(wx_ref)   # (TR, W) accumulated col weights

        def accum(acc_ref, iota, n_pix, base, bin_sz, step, g_i, npool, s_idx):
            # One adaptive-grid sample index `s_idx` (dynamic), all pooled bins (static).
            valid = s_idx < g_i                                   # (TR, 1) per-RoI mask
            frac = (s_idx.astype(jnp.float32) + 0.5) * step        # (TR, 1)
            for p in range(npool):                                 # static unroll (PH/PW)
                coord = base + float(p) * bin_sz + frac            # (TR, 1)
                inb = (coord >= -1.0) & (coord <= float(n_pix))    # mmcv OOB rule
                m = (valid & inb).astype(jnp.float32)
                c = jnp.maximum(coord, 0.0)
                lo0 = jnp.floor(c).astype(jnp.int32)
                edge = lo0 >= (n_pix - 1)
                lo = jnp.where(edge, n_pix - 1, lo0)
                hi = jnp.where(edge, n_pix - 1, lo0 + 1)
                l_w = jnp.where(edge, 0.0, c - lo.astype(jnp.float32))
                hi_w = (1.0 - l_w) * m
                lo_w = l_w * m
                acc_ref[...] += (jnp.where(iota == lo, hi_w, 0.0)
                                 + jnp.where(iota == hi, lo_w, 0.0))

        def y_body(iy, carry):
            accum(wy_ref, h_iota, H, y_base, bin_h, step_y, g_h_i, PH, iy)
            return carry

        def x_body(ix, carry):
            accum(wx_ref, w_iota, W, x_base, bin_w, step_x, g_w_i, PW, ix)
            return carry

        # Dynamic trip counts: only the block-local max adaptive grid is paid for.
        lax.fori_loop(0, gy_max, y_body, 0)
        lax.fori_loop(0, gx_max, x_body, 0)

        # loss_r = wy_r^T @ img @ wx_r : one (TR,H)x(H,W) MXU matmul + lane reduce.
        t = jnp.dot(wy_ref[...], img_ref[0], preferred_element_type=jnp.float32)  # (TR, W)
        total = jnp.sum(t * wx_ref[...], axis=1, keepdims=True)                   # (TR, 1)
        out_ref[0] = total * (inv_cpool / count_f)

    return kernel


# ----------------------------------------------------------------------------
# Wrapper (glue): normalization hoist, per-batch RoI arrangement, pallas_call.
# ----------------------------------------------------------------------------
def sdf_roi_losses(sdf_img, decoded_bbox_pred, output_size=(10, 10)):
    """Per-RoI SDF-guided loss (mean of RoIAlignRotated features) via Pallas."""
    sdf = jnp.asarray(sdf_img, jnp.float32)
    bbox = jnp.asarray(decoded_bbox_pred, jnp.float32)
    B, C, H, W = sdf.shape
    N = bbox.shape[0]
    PH, PW = output_size

    # --- hoisted SDF normalization + channel reduction (cheap XLA reductions) ---
    smin = jnp.min(sdf)
    smax = jnp.max(sdf)
    denom = jnp.where(smax > smin, smax - smin, jnp.float32(1.0))
    norm = jnp.where(smax > smin, -1.0 + 2.0 * (sdf - smin) / denom, sdf)
    img_sum = jnp.sum(norm, axis=1)                                 # (B, H, W)

    # --- arrange RoIs per batch image (PyTorch: batch = r // (N//B), leftovers -> 0) ---
    rpb = N // B
    extra = N - B * rpb
    rpb0 = max(rpb + extra, 1)
    TR = _round_up(rpb0, 8) if rpb0 <= 128 else 128
    rpb_pad = _round_up(rpb0, TR)
    num_blocks = rpb_pad // TR

    bb_arr = jnp.zeros((B, rpb_pad, 4), jnp.float32)
    if rpb > 0:
        bb_arr = bb_arr.at[:, :rpb, :].set(bbox[:B * rpb].reshape(B, rpb, 4))
    if extra > 0:
        bb_arr = bb_arr.at[0, rpb:rpb + extra, :].set(bbox[B * rpb:])

    # Per-block dynamic sampling-grid bounds (sampling_ratio = -1).  Padded slots
    # have zero boxes -> clamped to margin -> g == 1, so they never inflate the max.
    w_c = jnp.clip(bb_arr[..., 2] - bb_arr[..., 0], _MARGIN, _IMG_BOUND - _MARGIN)
    h_c = jnp.clip(bb_arr[..., 3] - bb_arr[..., 1], _MARGIN, _IMG_BOUND - _MARGIN)
    g_h = jnp.ceil(h_c / PH).astype(jnp.int32).reshape(B, num_blocks, TR).max(axis=2)
    g_w = jnp.ceil(w_c / PW).astype(jnp.int32).reshape(B, num_blocks, TR).max(axis=2)
    gmax = jnp.stack([g_h, g_w], axis=-1).reshape(-1)               # (B*num_blocks*2,)

    kernel = _make_sdf_roi_kernel(H, W, PH, PW, TR, num_blocks, C)
    out = pl.pallas_call(
        kernel,
        out_shape=jax.ShapeDtypeStruct((B, rpb_pad, 1), jnp.float32),
        grid=(B, num_blocks),
        in_specs=[
            pl.BlockSpec(memory_space=pltpu.MemorySpace.SMEM),        # gmax (scalars)
            pl.BlockSpec((1, TR, 4), lambda b, j: (b, j, 0)),         # per-block bboxes
            pl.BlockSpec((1, H, W), lambda b, j: (b, 0, 0)),          # one image plane
        ],
        out_specs=pl.BlockSpec((1, TR, 1), lambda b, j: (b, j, 0)),
        scratch_shapes=[pltpu.VMEM((TR, H), jnp.float32),             # wy accumulator
                        pltpu.VMEM((TR, W), jnp.float32)],            # wx accumulator
        compiler_params=pltpu.CompilerParams(
            dimension_semantics=("parallel", "parallel")),
    )(gmax, bb_arr, img_sum)

    out2 = out[..., 0]                                               # (B, rpb_pad)
    per_roi = out2[:, :rpb].reshape(B * rpb)
    if extra > 0:
        per_roi = jnp.concatenate([per_roi, out2[0, rpb:rpb + extra]], axis=0)
    return per_roi


class SDFGuidedLoss:
    """JAX/Pallas port of mmdet SDFGuidedLoss (forward only)."""

    def __init__(self, method='full', output_size=(10, 10), reduction='mean',
                 loss_weight=1.0):
        self.method = method
        self.reduction = reduction
        self.loss_weight = loss_weight
        self.roi_align_output_size = output_size

    def __call__(self, sdf_img, decoded_bbox_pred, degree_values=None,
                 avg_factor=None, reduction_override=None):
        assert reduction_override in (None, 'none', 'mean', 'sum')
        reduction = reduction_override if reduction_override else self.reduction

        per_roi = sdf_roi_losses(sdf_img, decoded_bbox_pred,
                                 output_size=self.roi_align_output_size)

        # mmdet @weighted_loss semantics: degree_values binds to `weight`.
        loss = per_roi
        if degree_values is not None:
            loss = loss * jnp.asarray(degree_values, jnp.float32)
        if avg_factor is None:
            if reduction == 'mean':
                loss = jnp.mean(loss)
            elif reduction == 'sum':
                loss = jnp.sum(loss)
        else:
            if reduction == 'mean':
                loss = jnp.sum(loss) / (avg_factor + _F32_EPS)
            elif reduction != 'none':
                raise ValueError('avg_factor can not be used with reduction="sum"')

        rng = self.roi_align_output_size[0] * self.roi_align_output_size[1]
        return self.loss_weight * (loss + rng) / (2.0 * rng)


# ----------------------------------------------------------------------------
# Pure numpy reference (literal translation of the PyTorch / mmcv math)
# ----------------------------------------------------------------------------
def _bilinear_ref(img, H, W, y, x):
    if y < -1.0 or y > H or x < -1.0 or x > W:
        return 0.0
    y = max(y, 0.0)
    x = max(x, 0.0)
    y_low = int(y)
    x_low = int(x)
    if y_low >= H - 1:
        y_high = y_low = H - 1
        y = float(y_low)
    else:
        y_high = y_low + 1
    if x_low >= W - 1:
        x_high = x_low = W - 1
        x = float(x_low)
    else:
        x_high = x_low + 1
    ly = y - y_low
    lx = x - x_low
    hy = 1.0 - ly
    hx = 1.0 - lx
    return (hy * hx * img[y_low, x_low] + hy * lx * img[y_low, x_high]
            + ly * hx * img[y_high, x_low] + ly * lx * img[y_high, x_high])


def _reference_forward(sdf, bbox, degree_values, output_size, loss_weight):
    sdf = sdf.astype(np.float64)
    bbox = bbox.astype(np.float64)
    B, C, H, W = sdf.shape
    N = bbox.shape[0]
    PH, PW = output_size
    smin, smax = sdf.min(), sdf.max()
    if smax > smin:
        sdf = -1.0 + 2.0 * (sdf - smin) / (smax - smin)
    rpb = N // B
    per_roi = np.zeros(N, np.float64)
    for r in range(N):
        minx, miny, maxx, maxy = bbox[r]
        cx = (minx + maxx) / 2.0
        cy = (miny + maxy) / 2.0
        w = maxx - minx
        h = maxy - miny
        b = r // rpb if (rpb > 0 and r < B * rpb) else 0
        w_c = min(max(w, _MARGIN), _IMG_BOUND - _MARGIN)
        h_c = min(max(h, _MARGIN), _IMG_BOUND - _MARGIN)
        half_w, half_h = w_c / 2.0, h_c / 2.0
        cx_c = min(max(cx, half_w + _MARGIN), _IMG_BOUND - half_w - _MARGIN)
        cy_c = min(max(cy, half_h + _MARGIN), _IMG_BOUND - half_h - _MARGIN)
        roi_cw, roi_ch = cx_c - 0.5, cy_c - 0.5
        bin_h, bin_w = h_c / PH, w_c / PW
        g_h, g_w = int(np.ceil(h_c / PH)), int(np.ceil(w_c / PW))
        count = max(g_h * g_w, 1)
        rsh, rsw = -h_c / 2.0, -w_c / 2.0
        ct, st = 1.0, 0.0   # theta == 0 (degree_values consumed as `weight`)
        acc = 0.0
        for c in range(C):
            for ph in range(PH):
                for pw in range(PW):
                    for iy in range(g_h):
                        yy = rsh + ph * bin_h + (iy + 0.5) * bin_h / g_h
                        for ix in range(g_w):
                            xx = rsw + pw * bin_w + (ix + 0.5) * bin_w / g_w
                            y = yy * ct - xx * st + roi_ch
                            x = yy * st + xx * ct + roi_cw
                            acc += _bilinear_ref(sdf[b, c], H, W, y, x)
        per_roi[r] = acc / (count * C * PH * PW)
    loss = per_roi
    if degree_values is not None:
        loss = loss * degree_values.astype(np.float64)
    loss = loss.mean()
    rng = PH * PW
    return loss_weight * (loss + rng) / (2.0 * rng)


# ----------------------------------------------------------------------------
if __name__ == "__main__":
    B, C, H, W = 2, 3, 16, 16
    N = 8  # 4 RoIs per batch image

    key = jax.random.PRNGKey(0)
    k0, k1, k2, k3 = jax.random.split(key, 4)
    sdf_img = jax.random.normal(k0, (B, C, H, W), jnp.float32) * 5.0
    mins = jax.random.uniform(k1, (N, 2), jnp.float32, 0.0, 8.0)
    sizes = jax.random.uniform(k2, (N, 2), jnp.float32, 4.0, 12.0)
    decoded_bbox_pred = jnp.concatenate([mins, mins + sizes], axis=1)  # [minx,miny,maxx,maxy]
    degree_values = jax.random.uniform(k3, (N,), jnp.float32, 0.0, 45.0)

    loss_mod = SDFGuidedLoss(method='full', output_size=(10, 10),
                             reduction='mean', loss_weight=1.0)
    out = loss_mod(sdf_img, decoded_bbox_pred, degree_values)
    out = jax.block_until_ready(out)

    ref = _reference_forward(np.asarray(sdf_img), np.asarray(decoded_bbox_pred),
                             np.asarray(degree_values), (10, 10), 1.0)
    np.testing.assert_allclose(float(out), ref, rtol=1e-3, atol=1e-3)
    print("KERNEL_OK")
</pallas_src>

<mosaic_0001>
module attributes {stable_mosaic.version = 11 : i64} {
  func.func @kernel(%arg0: i32, %arg1: i32, %arg2: memref<4xi32, #tpu.memory_space<smem>>, %arg3: memref<1x8x4xf32, #tpu.memory_space<vmem>>, %arg4: memref<1x16x16xf32, #tpu.memory_space<vmem>>, %arg5: memref<1x8x1xf32, #tpu.memory_space<vmem>>, %arg6: memref<8x16xf32, #tpu.memory_space<vmem>>, %arg7: memref<8x16xf32, #tpu.memory_space<vmem>>) attributes {dimension_semantics = [#tpu.dimension_semantics<parallel>, #tpu.dimension_semantics<parallel>], iteration_bounds = array<i64: 2, 1>, scalar_prefetch = 0 : i64, scratch_operands = 2 : i64, tpu.core_type = #tpu.core_type<tc>, window_params = [{transform_indices = @transform_0, window_bounds = array<i64: 4>}, {transform_indices = @transform_1, window_bounds = array<i64: 1, 8, 4>}, {transform_indices = @transform_2, window_bounds = array<i64: 1, 16, 16>}, {transform_indices = @transform_3, window_bounds = array<i64: 1, 8, 1>}]} {
    %c1_i32 = arith.constant 1 : i32
    %0 = arith.muli %arg0, %c1_i32 : i32
    %1 = arith.addi %0, %arg1 : i32
    %c2_i32 = arith.constant 2 : i32
    %2 = arith.muli %c2_i32, %1 : i32
    %3 = arith.index_cast %2 : i32 to index
    %4 = memref.load %arg2[%3] : memref<4xi32, #tpu.memory_space<smem>>
    %c2_i32_0 = arith.constant 2 : i32
    %5 = arith.muli %c2_i32_0, %1 : i32
    %c1_i32_1 = arith.constant 1 : i32
    %6 = arith.addi %5, %c1_i32_1 : i32
    %7 = arith.index_cast %6 : i32 to index
    %8 = memref.load %arg2[%7] : memref<4xi32, #tpu.memory_space<smem>>
    %c0 = arith.constant 0 : index
    %c0_2 = arith.constant 0 : index
    %c0_3 = arith.constant 0 : index
    %9 = vector.load %arg3[%c0, %c0_2, %c0_3] : memref<1x8x4xf32, #tpu.memory_space<vmem>>, vector<1x8x4xf32>
    %10 = vector.shape_cast %9 : vector<1x8x4xf32> to vector<8x4xf32>
    %11 = vector.extract_strided_slice %10 {offsets = [0, 0], sizes = [8, 1], strides = [1, 1]} : vector<8x4xf32> to vector<8x1xf32>
    %12 = vector.extract_strided_slice %10 {offsets = [0, 1], sizes = [8, 1], strides = [1, 1]} : vector<8x4xf32> to vector<8x1xf32>
    %13 = vector.extract_strided_slice %10 {offsets = [0, 2], sizes = [8, 1], strides = [1, 1]} : vector<8x4xf32> to vector<8x1xf32>
    %14 = vector.extract_strided_slice %10 {offsets = [0, 3], sizes = [8, 1], strides = [1, 1]} : vector<8x4xf32> to vector<8x1xf32>
    %15 = arith.addf %11, %13 : vector<8x1xf32>
    %cst = arith.constant 5.000000e-01 : f32
    %16 = vector.broadcast %cst : f32 to vector<8x1xf32>
    %17 = arith.mulf %15, %16 : vector<8x1xf32>
    %18 = arith.addf %12, %14 : vector<8x1xf32>
    %cst_4 = arith.constant 5.000000e-01 : f32
    %19 = vector.broadcast %cst_4 : f32 to vector<8x1xf32>
    %20 = arith.mulf %18, %19 : vector<8x1xf32>
    %21 = arith.subf %13, %11 : vector<8x1xf32>
    %22 = arith.subf %14, %12 : vector<8x1xf32>
    %cst_5 = arith.constant 1.000000e+01 : f32
    %cst_6 = arith.constant 7.890000e+02 : f32
    %23 = vector.broadcast %cst_5 : f32 to vector<8x1xf32>
    %24 = arith.maximumf %23, %21 : vector<8x1xf32>
    %25 = vector.broadcast %cst_6 : f32 to vector<8x1xf32>
    %26 = arith.minimumf %25, %24 : vector<8x1xf32>
    %cst_7 = arith.constant 1.000000e+01 : f32
    %cst_8 = arith.constant 7.890000e+02 : f32
    %27 = vector.broadcast %cst_7 : f32 to vector<8x1xf32>
    %28 = arith.maximumf %27, %22 : vector<8x1xf32>
    %29 = vector.broadcast %cst_8 : f32 to vector<8x1xf32>
    %30 = arith.minimumf %29, %28 : vector<8x1xf32>
    %cst_9 = arith.constant 5.000000e-01 : f32
    %31 = vector.broadcast %cst_9 : f32 to vector<8x1xf32>
    %32 = arith.mulf %31, %26 : vector<8x1xf32>
    %cst_10 = arith.constant 5.000000e-01 : f32
    %33 = vector.broadcast %cst_10 : f32 to vector<8x1xf32>
    %34 = arith.mulf %33, %30 : vector<8x1xf32>
    %cst_11 = arith.constant 1.000000e+01 : f32
    %35 = vector.broadcast %cst_11 : f32 to vector<8x1xf32>
    %36 = arith.addf %32, %35 : vector<8x1xf32>
    %cst_12 = arith.constant 7.990000e+02 : f32
    %37 = vector.broadcast %cst_12 : f32 to vector<8x1xf32>
    %38 = arith.subf %37, %32 : vector<8x1xf32>
    %cst_13 = arith.constant 1.000000e+01 : f32
    %39 = vector.broadcast %cst_13 : f32 to vector<8x1xf32>
    %40 = arith.subf %38, %39 : vector<8x1xf32>
    %41 = arith.maximumf %36, %17 : vector<8x1xf32>
    %42 = arith.minimumf %40, %41 : vector<8x1xf32>
    %cst_14 = arith.constant 1.000000e+01 : f32
    %43 = vector.broadcast %cst_14 : f32 to vector<8x1xf32>
    %44 = arith.addf %34, %43 : vector<8x1xf32>
    %cst_15 = arith.constant 7.990000e+02 : f32
    %45 = vector.broadcast %cst_15 : f32 to vector<8x1xf32>
    %46 = arith.subf %45, %34 : vector<8x1xf32>
    %cst_16 = arith.constant 1.000000e+01 : f32
    %47 = vector.broadcast %cst_16 : f32 to vector<8x1xf32>
    %48 = arith.subf %46, %47 : vector<8x1xf32>
    %49 = arith.maximumf %44, %20 : vector<8x1xf32>
    %50 = arith.minimumf %48, %49 : vector<8x1xf32>
    %cst_17 = arith.constant 1.000000e-01 : f32
    %51 = vector.broadcast %cst_17 : f32 to vector<8x1xf32>
    %52 = arith.mulf %30, %51 : vector<8x1xf32>
    %cst_18 = arith.constant 1.000000e-01 : f32
    %53 = vector.broadcast %cst_18 : f32 to vector<8x1xf32>
    %54 = arith.mulf %26, %53 : vector<8x1xf32>
    %cst_19 = arith.constant 1.000000e-01 : f32
    %55 = vector.broadcast %cst_19 : f32 to vector<8x1xf32>
    %56 = arith.mulf %30, %55 : vector<8x1xf32>
    %57 = math.ceil %56 : vector<8x1xf32>
    %cst_20 = arith.constant 1.000000e-01 : f32
    %58 = vector.broadcast %cst_20 : f32 to vector<8x1xf32>
    %59 = arith.mulf %26, %58 : vector<8x1xf32>
    %60 = math.ceil %59 : vector<8x1xf32>
    %61 = arith.fptosi %57 : vector<8x1xf32> to vector<8x1xi32>
    %62 = arith.fptosi %60 : vector<8x1xf32> to vector<8x1xi32>
    %63 = arith.muli %61, %62 : vector<8x1xi32>
    %c1_i32_21 = arith.constant 1 : i32
    %64 = vector.broadcast %c1_i32_21 : i32 to vector<8x1xi32>
    %65 = arith.maxsi %63, %64 : vector<8x1xi32>
    %66 = arith.sitofp %65 : vector<8x1xi32> to vector<8x1xf32>
    %cst_22 = arith.constant 5.000000e-01 : f32
    %67 = vector.broadcast %cst_22 : f32 to vector<8x1xf32>
    %68 = arith.subf %50, %67 : vector<8x1xf32>
    %69 = arith.subf %68, %34 : vector<8x1xf32>
    %cst_23 = arith.constant 5.000000e-01 : f32
    %70 = vector.broadcast %cst_23 : f32 to vector<8x1xf32>
    %71 = arith.subf %42, %70 : vector<8x1xf32>
    %72 = arith.subf %71, %32 : vector<8x1xf32>
    %73 = arith.divf %52, %57 : vector<8x1xf32>
    %74 = arith.divf %54, %60 : vector<8x1xf32>
    %75 = tpu.iota {dimensions = array<i32: 1>} : vector<8x16xi32>
    %76 = tpu.iota {dimensions = array<i32: 1>} : vector<8x16xi32>
    %cst_24 = arith.constant 0.000000e+00 : f32
    %77 = vector.broadcast %cst_24 : f32 to vector<8x16xf32>
    %c0_25 = arith.constant 0 : index
    %c0_26 = arith.constant 0 : index
    %78 = vector.load %arg6[%c0_25, %c0_26] : memref<8x16xf32, #tpu.memory_space<vmem>>, vector<8x16xf32>
    tpu.vector_store %arg6[%c0_25, %c0_26], %77 {strides = array<i32>} : memref<8x16xf32, #tpu.memory_space<vmem>>, vector<8x16xf32>,
    %cst_27 = arith.constant 0.000000e+00 : f32
    %79 = vector.broadcast %cst_27 : f32 to vector<8x16xf32>
    %c0_28 = arith.constant 0 : index
    %c0_29 = arith.constant 0 : index
    %80 = vector.load %arg7[%c0_28, %c0_29] : memref<8x16xf32, #tpu.memory_space<vmem>>, vector<8x16xf32>
    tpu.vector_store %arg7[%c0_28, %c0_29], %79 {strides = array<i32>} : memref<8x16xf32, #tpu.memory_space<vmem>>, vector<8x16xf32>,
    %c0_i32 = arith.constant 0 : i32
    %c0_i32_30 = arith.constant 0 : i32
    %81 = arith.subi %4, %c0_i32_30 : i32
    %82 = arith.addi %c0_i32_30, %81 : i32
    %c1_i32_31 = arith.constant 1 : i32
    scf.for %arg8 = %c0_i32_30 to %82 step %c1_i32_31  : i32 {
      %99 = vector.broadcast %arg8 : i32 to vector<8x1xi32>
      %100 = arith.cmpi slt, %99, %61 : vector<8x1xi32>
      %101 = arith.sitofp %arg8 : i32 to f32
      %cst_48 = arith.constant 5.000000e-01 : f32
      %102 = arith.addf %101, %cst_48 : f32
      %103 = vector.broadcast %102 : f32 to vector<8x1xf32>
      %104 = arith.mulf %103, %73 : vector<8x1xf32>
      %cst_49 = arith.constant 0.000000e+00 : f32
      %105 = vector.broadcast %cst_49 : f32 to vector<8x1xf32>
      %106 = arith.mulf %105, %52 : vector<8x1xf32>
      %107 = arith.addf %69, %106 : vector<8x1xf32>
      %108 = arith.addf %107, %104 : vector<8x1xf32>
      %cst_50 = arith.constant -1.000000e+00 : f32
      %109 = vector.broadcast %cst_50 : f32 to vector<8x1xf32>
      %110 = arith.cmpf oge, %108, %109 : vector<8x1xf32>
      %cst_51 = arith.constant 1.600000e+01 : f32
      %111 = vector.broadcast %cst_51 : f32 to vector<8x1xf32>
      %112 = arith.cmpf ole, %108, %111 : vector<8x1xf32>
      %113 = arith.andi %110, %112 : vector<8x1xi1>
      %114 = arith.andi %100, %113 : vector<8x1xi1>
      %115 = arith.extui %114 : vector<8x1xi1> to vector<8x1xi32>
      %116 = arith.sitofp %115 : vector<8x1xi32> to vector<8x1xf32>
      %cst_52 = arith.constant 0.000000e+00 : f32
      %117 = vector.broadcast %cst_52 : f32 to vector<8x1xf32>
      %118 = arith.maximumf %108, %117 : vector<8x1xf32>
      %119 = math.floor %118 : vector<8x1xf32>
      %120 = arith.fptosi %119 : vector<8x1xf32> to vector<8x1xi32>
      %c15_i32 = arith.constant 15 : i32
      %121 = vector.broadcast %c15_i32 : i32 to vector<8x1xi32>
      %122 = arith.cmpi sge, %120, %121 : vector<8x1xi32>
      %c15_i32_53 = arith.constant 15 : i32
      %123 = vector.broadcast %c15_i32_53 : i32 to vector<8x1xi32>
      %124 = arith.select %122, %123, %120 : vector<8x1xi1>, vector<8x1xi32>
      %c1_i32_54 = arith.constant 1 : i32
      %125 = vector.broadcast %c1_i32_54 : i32 to vector<8x1xi32>
      %126 = arith.addi %120, %125 : vector<8x1xi32>
      %c15_i32_55 = arith.constant 15 : i32
      %127 = vector.broadcast %c15_i32_55 : i32 to vector<8x1xi32>
      %128 = arith.select %122, %127, %126 : vector<8x1xi1>, vector<8x1xi32>
      %129 = arith.sitofp %124 : vector<8x1xi32> to vector<8x1xf32>
      %130 = arith.subf %118, %129 : vector<8x1xf32>
      %cst_56 = arith.constant 0.000000e+00 : f32
      %131 = vector.broadcast %cst_56 : f32 to vector<8x1xf32>
      %132 = arith.select %122, %131, %130 : vector<8x1xi1>, vector<8x1xf32>
      %cst_57 = arith.constant 1.000000e+00 : f32
      %133 = vector.broadcast %cst_57 : f32 to vector<8x1xf32>
      %134 = arith.subf %133, %132 : vector<8x1xf32>
      %135 = arith.mulf %134, %116 : vector<8x1xf32>
      %136 = arith.mulf %132, %116 : vector<8x1xf32>
      %c0_58 = arith.constant 0 : index
      %c0_59 = arith.constant 0 : index
      %137 = vector.load %arg6[%c0_58, %c0_59] : memref<8x16xf32, #tpu.memory_space<vmem>>, vector<8x16xf32>
      %138 = vector.broadcast %124 : vector<8x1xi32> to vector<8x16xi32>
      %139 = arith.cmpi eq, %75, %138 : vector<8x16xi32>
      %cst_60 = arith.constant 0.000000e+00 : f32
      %140 = vector.shape_cast %135 : vector<8x1xf32> to vector<8x1xf32>
      %141 = vector.broadcast %140 : vector<8x1xf32> to vector<8x16xf32>
      %142 = vector.broadcast %cst_60 : f32 to vector<8x16xf32>
      %143 = arith.select %139, %141, %142 : vector<8x16xi1>, vector<8x16xf32>
      %144 = vector.broadcast %128 : vector<8x1xi32> to vector<8x16xi32>
      %145 = arith.cmpi eq, %75, %144 : vector<8x16xi32>
      %cst_61 = arith.constant 0.000000e+00 : f32
      %146 = vector.shape_cast %136 : vector<8x1xf32> to vector<8x1xf32>
      %147 = vector.broadcast %146 : vector<8x1xf32> to vector<8x16xf32>
      %148 = vector.broadcast %cst_61 : f32 to vector<8x16xf32>
      %149 = arith.select %145, %147, %148 : vector<8x16xi1>, vector<8x16xf32>
      %150 = arith.addf %143, %149 : vector<8x16xf32>
      %151 = arith.addf %137, %150 : vector<8x16xf32>
      %c0_62 = arith.constant 0 : index
      %c0_63 = arith.constant 0 : index
      %152 = vector.load %arg6[%c0_62, %c0_63] : memref<8x16xf32, #tpu.memory_space<vmem>>, vector<8x16xf32>
      tpu.vector_store %arg6[%c0_62, %c0_63], %151 {strides = array<i32>} : memref<8x16xf32, #tpu.memory_space<vmem>>, vector<8x16xf32>,
      %cst_64 = arith.constant 1.000000e+00 : f32
      %153 = vector.broadcast %cst_64 : f32 to vector<8x1xf32>
      %154 = arith.mulf %153, %52 : vector<8x1xf32>
      %155 = arith.addf %69, %154 : vector<8x1xf32>
      %156 = arith.addf %155, %104 : vector<8x1xf32>
      %cst_65 = arith.constant -1.000000e+00 : f32
      %157 = vector.broadcast %cst_65 : f32 to vector<8x1xf32>
      %158 = arith.cmpf oge, %156, %157 : vector<8x1xf32>
      %cst_66 = arith.constant 1.600000e+01 : f32
      %159 = vector.broadcast %cst_66 : f32 to vector<8x1xf32>
      %160 = arith.cmpf ole, %156, %159 : vector<8x1xf32>
      %161 = arith.andi %158, %160 : vector<8x1xi1>
      %162 = arith.andi %100, %161 : vector<8x1xi1>
      %163 = arith.extui %162 : vector<8x1xi1> to vector<8x1xi32>
      %164 = arith.sitofp %163 : vector<8x1xi32> to vector<8x1xf32>
      %cst_67 = arith.constant 0.000000e+00 : f32
      %165 = vector.broadcast %cst_67 : f32 to vector<8x1xf32>
      %166 = arith.maximumf %156, %165 : vector<8x1xf32>
      %167 = math.floor %166 : vector<8x1xf32>
      %168 = arith.fptosi %167 : vector<8x1xf32> to vector<8x1xi32>
      %c15_i32_68 = arith.constant 15 : i32
      %169 = vector.broadcast %c15_i32_68 : i32 to vector<8x1xi32>
      %170 = arith.cmpi sge, %168, %169 : vector<8x1xi32>
      %c15_i32_69 = arith.constant 15 : i32
      %171 = vector.broadcast %c15_i32_69 : i32 to vector<8x1xi32>
      %172 = arith.select %170, %171, %168 : vector<8x1xi1>, vector<8x1xi32>
      %c1_i32_70 = arith.constant 1 : i32
      %173 = vector.broadcast %c1_i32_70 : i32 to vector<8x1xi32>
      %174 = arith.addi %168, %173 : vector<8x1xi32>
      %c15_i32_71 = arith.constant 15 : i32
      %175 = vector.broadcast %c15_i32_71 : i32 to vector<8x1xi32>
      %176 = arith.select %170, %175, %174 : vector<8x1xi1>, vector<8x1xi32>
      %177 = arith.sitofp %172 : vector<8x1xi32> to vector<8x1xf32>
      %178 = arith.subf %166, %177 : vector<8x1xf32>
      %cst_72 = arith.constant 0.000000e+00 : f32
      %179 = vector.broadcast %cst_72 : f32 to vector<8x1xf32>
      %180 = arith.select %170, %179, %178 : vector<8x1xi1>, vector<8x1xf32>
      %cst_73 = arith.constant 1.000000e+00 : f32
      %181 = vector.broadcast %cst_73 : f32 to vector<8x1xf32>
      %182 = arith.subf %181, %180 : vector<8x1xf32>
      %183 = arith.mulf %182, %164 : vector<8x1xf32>
      %184 = arith.mulf %180, %164 : vector<8x1xf32>
      %c0_74 = arith.constant 0 : index
      %c0_75 = arith.constant 0 : index
      %185 = vector.load %arg6[%c0_74, %c0_75] : memref<8x16xf32, #tpu.memory_space<vmem>>, vector<8x16xf32>
      %186 = vector.broadcast %172 : vector<8x1xi32> to vector<8x16xi32>
      %187 = arith.cmpi eq, %75, %186 : vector<8x16xi32>
      %cst_76 = arith.constant 0.000000e+00 : f32
      %188 = vector.shape_cast %183 : vector<8x1xf32> to vector<8x1xf32>
      %189 = vector.broadcast %188 : vector<8x1xf32> to vector<8x16xf32>
      %190 = vector.broadcast %cst_76 : f32 to vector<8x16xf32>
      %191 = arith.select %187, %189, %190 : vector<8x16xi1>, vector<8x16xf32>
      %192 = vector.broadcast %176 : vector<8x1xi32> to vector<8x16xi32>
      %193 = arith.cmpi eq, %75, %192 : vector<8x16xi32>
      %cst_77 = arith.constant 0.000000e+00 : f32
      %194 = vector.shape_cast %184 : vector<8x1xf32> to vector<8x1xf32>
      %195 = vector.broadcast %194 : vector<8x1xf32> to vector<8x16xf32>
      %196 = vector.broadcast %cst_77 : f32 to vector<8x16xf32>
      %197 = arith.select %193, %195, %196 : vector<8x16xi1>, vector<8x16xf32>
      %198 = arith.addf %191, %197 : vector<8x16xf32>
      %199 = arith.addf %185, %198 : vector<8x16xf32>
      %c0_78 = arith.constant 0 : index
      %c0_79 = arith.constant 0 : index
      %200 = vector.load %arg6[%c0_78, %c0_79] : memref<8x16xf32, #tpu.memory_space<vmem>>, vector<8x16xf32>
      tpu.vector_store %arg6[%c0_78, %c0_79], %199 {strides = array<i32>} : memref<8x16xf32, #tpu.memory_space<vmem>>, vector<8x16xf32>,
      %cst_80 = arith.constant 2.000000e+00 : f32
      %201 = vector.broadcast %cst_80 : f32 to vector<8x1xf32>
      %202 = arith.mulf %201, %52 : vector<8x1xf32>
      %203 = arith.addf %69, %202 : vector<8x1xf32>
      %204 = arith.addf %203, %104 : vector<8x1xf32>
      %cst_81 = arith.constant -1.000000e+00 : f32
      %205 = vector.broadcast %cst_81 : f32 to vector<8x1xf32>
      %206 = arith.cmpf oge, %204, %205 : vector<8x1xf32>
      %cst_82 = arith.constant 1.600000e+01 : f32
      %207 = vector.broadcast %cst_82 : f32 to vector<8x1xf32>
      %208 = arith.cmpf ole, %204, %207 : vector<8x1xf32>
      %209 = arith.andi %206, %208 : vector<8x1xi1>
      %210 = arith.andi %100, %209 : vector<8x1xi1>
      %211 = arith.extui %210 : vector<8x1xi1> to vector<8x1xi32>
      %212 = arith.sitofp %211 : vector<8x1xi32> to vector<8x1xf32>
      %cst_83 = arith.constant 0.000000e+00 : f32
      %213 = vector.broadcast %cst_83 : f32 to vector<8x1xf32>
      %214 = arith.maximumf %204, %213 : vector<8x1xf32>
      %215 = math.floor %214 : vector<8x1xf32>
      %216 = arith.fptosi %215 : vector<8x1xf32> to vector<8x1xi32>
      %c15_i32_84 = arith.constant 15 : i32
      %217 = vector.broadcast %c15_i32_84 : i32 to vector<8x1xi32>
      %218 = arith.cmpi sge, %216, %217 : vector<8x1xi32>
      %c15_i32_85 = arith.constant 15 : i32
      %219 = vector.broadcast %c15_i32_85 : i32 to vector<8x1xi32>
      %220 = arith.select %218, %219, %216 : vector<8x1xi1>, vector<8x1xi32>
      %c1_i32_86 = arith.constant 1 : i32
      %221 = vector.broadcast %c1_i32_86 : i32 to vector<8x1xi32>
      %222 = arith.addi %216, %221 : vector<8x1xi32>
      %c15_i32_87 = arith.constant 15 : i32
      %223 = vector.broadcast %c15_i32_87 : i32 to vector<8x1xi32>
      %224 = arith.select %218, %223, %222 : vector<8x1xi1>, vector<8x1xi32>
      %225 = arith.sitofp %220 : vector<8x1xi32> to vector<8x1xf32>
      %226 = arith.subf %214, %225 : vector<8x1xf32>
      %cst_88 = arith.constant 0.000000e+00 : f32
      %227 = vector.broadcast %cst_88 : f32 to vector<8x1xf32>
      %228 = arith.select %218, %227, %226 : vector<8x1xi1>, vector<8x1xf32>
      %cst_89 = arith.constant 1.000000e+00 : f32
      %229 = vector.broadcast %cst_89 : f32 to vector<8x1xf32>
      %230 = arith.subf %229, %228 : vector<8x1xf32>
      %231 = arith.mulf %230, %212 : vector<8x1xf32>
      %232 = arith.mulf %228, %212 : vector<8x1xf32>
      %c0_90 = arith.constant 0 : index
      %c0_91 = arith.constant 0 : index
      %233 = vector.load %arg6[%c0_90, %c0_91] : memref<8x16xf32, #tpu.memory_space<vmem>>, vector<8x16xf32>
      %234 = vector.broadcast %220 : vector<8x1xi32> to vector<8x16xi32>
      %235 = arith.cmpi eq, %75, %234 : vector<8x16xi32>
      %cst_92 = arith.constant 0.000000e+00 : f32
      %236 = vector.shape_cast %231 : vector<8x1xf32> to vector<8x1xf32>
      %237 = vector.broadcast %236 : vector<8x1xf32> to vector<8x16xf32>
      %238 = vector.broadcast %cst_92 : f32 to vector<8x16xf32>
      %239 = arith.select %235, %237, %238 : vector<8x16xi1>, vector<8x16xf32>
      %240 = vector.broadcast %224 : vector<8x1xi32> to vector<8x16xi32>
      %241 = arith.cmpi eq, %75, %240 : vector<8x16xi32>
      %cst_93 = arith.constant 0.000000e+00 : f32
      %242 = vector.shape_cast %232 : vector<8x1xf32> to vector<8x1xf32>
      %243 = vector.broadcast %242 : vector<8x1xf32> to vector<8x16xf32>
      %244 = vector.broadcast %cst_93 : f32 to vector<8x16xf32>
      %245 = arith.select %241, %243, %244 : vector<8x16xi1>, vector<8x16xf32>
      %246 = arith.addf %239, %245 : vector<8x16xf32>
      %247 = arith.addf %233, %246 : vector<8x16xf32>
      %c0_94 = arith.constant 0 : index
      %c0_95 = arith.constant 0 : index
      %248 = vector.load %arg6[%c0_94, %c0_95] : memref<8x16xf32, #tpu.memory_space<vmem>>, vector<8x16xf32>
      tpu.vector_store %arg6[%c0_94, %c0_95], %247 {strides = array<i32>} : memref<8x16xf32, #tpu.memory_space<vmem>>, vector<8x16xf32>,
      %cst_96 = arith.constant 3.000000e+00 : f32
      %249 = vector.broadcast %cst_96 : f32 to vector<8x1xf32>
      %250 = arith.mulf %249, %52 : vector<8x1xf32>
      %251 = arith.addf %69, %250 : vector<8x1xf32>
      %252 = arith.addf %251, %104 : vector<8x1xf32>
      %cst_97 = arith.constant -1.000000e+00 : f32
      %253 = vector.broadcast %cst_97 : f32 to vector<8x1xf32>
      %254 = arith.cmpf oge, %252, %253 : vector<8x1xf32>
      %cst_98 = arith.constant 1.600000e+01 : f32
      %255 = vector.broadcast %cst_98 : f32 to vector<8x1xf32>
      %256 = arith.cmpf ole, %252, %255 : vector<8x1xf32>
      %257 = arith.andi %254, %256 : vector<8x1xi1>
      %258 = arith.andi %100, %257 : vector<8x1xi1>
      %259 = arith.extui %258 : vector<8x1xi1> to vector<8x1xi32>
      %260 = arith.sitofp %259 : vector<8x1xi32> to vector<8x1xf32>
      %cst_99 = arith.constant 0.000000e+00 : f32
      %261 = vector.broadcast %cst_99 : f32 to vector<8x1xf32>
      %262 = arith.maximumf %252, %261 : vector<8x1xf32>
      %263 = math.floor %262 : vector<8x1xf32>
      %264 = arith.fptosi %263 : vector<8x1xf32> to vector<8x1xi32>
      %c15_i32_100 = arith.constant 15 : i32
      %265 = vector.broadcast %c15_i32_100 : i32 to vector<8x1xi32>
      %266 = arith.cmpi sge, %264, %265 : vector<8x1xi32>
      %c15_i32_101 = arith.constant 15 : i32
      %267 = vector.broadcast %c15_i32_101 : i32 to vector<8x1xi32>
      %268 = arith.select %266, %267, %264 : vector<8x1xi1>, vector<8x1xi32>
      %c1_i32_102 = arith.constant 1 : i32
      %269 = vector.broadcast %c1_i32_102 : i32 to vector<8x1xi32>
      %270 = arith.addi %264, %269 : vector<8x1xi32>
      %c15_i32_103 = arith.constant 15 : i32
      %271 = vector.broadcast %c15_i32_103 : i32 to vector<8x1xi32>
      %272 = arith.select %266, %271, %270 : vector<8x1xi1>, vector<8x1xi32>
      %273 = arith.sitofp %268 : vector<8x1xi32> to vector<8x1xf32>
      %274 = arith.subf %262, %273 : vector<8x1xf32>
      %cst_104 = arith.constant 0.000000e+00 : f32
      %275 = vector.broadcast %cst_104 : f32 to vector<8x1xf32>
      %276 = arith.select %266, %275, %274 : vector<8x1xi1>, vector<8x1xf32>
      %cst_105 = arith.constant 1.000000e+00 : f32
      %277 = vector.broadcast %cst_105 : f32 to vector<8x1xf32>
      %278 = arith.subf %277, %276 : vector<8x1xf32>
      %279 = arith.mulf %278, %260 : vector<8x1xf32>
      %280 = arith.mulf %276, %260 : vector<8x1xf32>
      %c0_106 = arith.constant 0 : index
      %c0_107 = arith.constant 0 : index
      %281 = vector.load %arg6[%c0_106, %c0_107] : memref<8x16xf32, #tpu.memory_space<vmem>>, vector<8x16xf32>
      %282 = vector.broadcast %268 : vector<8x1xi32> to vector<8x16xi32>
      %283 = arith.cmpi eq, %75, %282 : vector<8x16xi32>
      %cst_108 = arith.constant 0.000000e+00 : f32
      %284 = vector.shape_cast %279 : vector<8x1xf32> to vector<8x1xf32>
      %285 = vector.broadcast %284 : vector<8x1xf32> to vector<8x16xf32>
      %286 = vector.broadcast %cst_108 : f32 to vector<8x16xf32>
      %287 = arith.select %283, %285, %286 : vector<8x16xi1>, vector<8x16xf32>
      %288 = vector.broadcast %272 : vector<8x1xi32> to vector<8x16xi32>
      %289 = arith.cmpi eq, %75, %288 : vector<8x16xi32>
      %cst_109 = arith.constant 0.000000e+00 : f32
      %290 = vector.shape_cast %280 : vector<8x1xf32> to vector<8x1xf32>
      %291 = vector.broadcast %290 : vector<8x1xf32> to vector<8x16xf32>
      %292 = vector.broadcast %cst_109 : f32 to vector<8x16xf32>
      %293 = arith.select %289, %291, %292 : vector<8x16xi1>, vector<8x16xf32>
      %294 = arith.addf %287, %293 : vector<8x16xf32>
      %295 = arith.addf %281, %294 : vector<8x16xf32>
      %c0_110 = arith.constant 0 : index
      %c0_111 = arith.constant 0 : index
      %296 = vector.load %arg6[%c0_110, %c0_111] : memref<8x16xf32, #tpu.memory_space<vmem>>, vector<8x16xf32>
      tpu.vector_store %arg6[%c0_110, %c0_111], %295 {strides = array<i32>} : memref<8x16xf32, #tpu.memory_space<vmem>>, vector<8x16xf32>,
      %cst_112 = arith.constant 4.000000e+00 : f32
      %297 = vector.broadcast %cst_112 : f32 to vector<8x1xf32>
      %298 = arith.mulf %297, %52 : vector<8x1xf32>
      %299 = arith.addf %69, %298 : vector<8x1xf32>
      %300 = arith.addf %299, %104 : vector<8x1xf32>
      %cst_113 = arith.constant -1.000000e+00 : f32
      %301 = vector.broadcast %cst_113 : f32 to vector<8x1xf32>
      %302 = arith.cmpf oge, %300, %301 : vector<8x1xf32>
      %cst_114 = arith.constant 1.600000e+01 : f32
      %303 = vector.broadcast %cst_114 : f32 to vector<8x1xf32>
      %304 = arith.cmpf ole, %300, %303 : vector<8x1xf32>
      %305 = arith.andi %302, %304 : vector<8x1xi1>
      %306 = arith.andi %100, %305 : vector<8x1xi1>
      %307 = arith.extui %306 : vector<8x1xi1> to vector<8x1xi32>
      %308 = arith.sitofp %307 : vector<8x1xi32> to vector<8x1xf32>
      %cst_115 = arith.constant 0.000000e+00 : f32
      %309 = vector.broadcast %cst_115 : f32 to vector<8x1xf32>
      %310 = arith.maximumf %300, %309 : vector<8x1xf32>
      %311 = math.floor %310 : vector<8x1xf32>
      %312 = arith.fptosi %311 : vector<8x1xf32> to vector<8x1xi32>
      %c15_i32_116 = arith.constant 15 : i32
      %313 = vector.broadcast %c15_i32_116 : i32 to vector<8x1xi32>
      %314 = arith.cmpi sge, %312, %313 : vector<8x1xi32>
      %c15_i32_117 = arith.constant 15 : i32
      %315 = vector.broadcast %c15_i32_117 : i32 to vector<8x1xi32>
      %316 = arith.select %314, %315, %312 : vector<8x1xi1>, vector<8x1xi32>
      %c1_i32_118 = arith.constant 1 : i32
      %317 = vector.broadcast %c1_i32_118 : i32 to vector<8x1xi32>
      %318 = arith.addi %312, %317 : vector<8x1xi32>
      %c15_i32_119 = arith.constant 15 : i32
      %319 = vector.broadcast %c15_i32_119 : i32 to vector<8x1xi32>
      %320 = arith.select %314, %319, %318 : vector<8x1xi1>, vector<8x1xi32>
      %321 = arith.sitofp %316 : vector<8x1xi32> to vector<8x1xf32>
      %322 = arith.subf %310, %321 : vector<8x1xf32>
      %cst_120 = arith.constant 0.000000e+00 : f32
      %323 = vector.broadcast %cst_120 : f32 to vector<8x1xf32>
      %324 = arith.select %314, %323, %322 : vector<8x1xi1>, vector<8x1xf32>
      %cst_121 = arith.constant 1.000000e+00 : f32
      %325 = vector.broadcast %cst_121 : f32 to vector<8x1xf32>
      %326 = arith.subf %325, %324 : vector<8x1xf32>
      %327 = arith.mulf %326, %308 : vector<8x1xf32>
      %328 = arith.mulf %324, %308 : vector<8x1xf32>
      %c0_122 = arith.constant 0 : index
      %c0_123 = arith.constant 0 : index
      %329 = vector.load %arg6[%c0_122, %c0_123] : memref<8x16xf32, #tpu.memory_space<vmem>>, vector<8x16xf32>
      %330 = vector.broadcast %316 : vector<8x1xi32> to vector<8x16xi32>
      %331 = arith.cmpi eq, %75, %330 : vector<8x16xi32>
      %cst_124 = arith.constant 0.000000e+00 : f32
      %332 = vector.shape_cast %327 : vector<8x1xf32> to vector<8x1xf32>
      %333 = vector.broadcast %332 : vector<8x1xf32> to vector<8x16xf32>
      %334 = vector.broadcast %cst_124 : f32 to vector<8x16xf32>
      %335 = arith.select %331, %333, %334 : vector<8x16xi1>, vector<8x16xf32>
      %336 = vector.broadcast %320 : vector<8x1xi32> to vector<8x16xi32>
      %337 = arith.cmpi eq, %75, %336 : vector<8x16xi32>
      %cst_125 = arith.constant 0.000000e+00 : f32
      %338 = vector.shape_cast %328 : vector<8x1xf32> to vector<8x1xf32>
      %339 = vector.broadcast %338 : vector<8x1xf32> to vector<8x16xf32>
      %340 = vector.broadcast %cst_125 : f32 to vector<8x16xf32>
      %341 = arith.select %337, %339, %340 : vector<8x16xi1>, vector<8x16xf32>
      %342 = arith.addf %335, %341 : vector<8x16xf32>
      %343 = arith.addf %329, %342 : vector<8x16xf32>
      %c0_126 = arith.constant 0 : index
      %c0_127 = arith.constant 0 : index
      %344 = vector.load %arg6[%c0_126, %c0_127] : memref<8x16xf32, #tpu.memory_space<vmem>>, vector<8x16xf32>
      tpu.vector_store %arg6[%c0_126, %c0_127], %343 {strides = array<i32>} : memref<8x16xf32, #tpu.memory_space<vmem>>, vector<8x16xf32>,
      %cst_128 = arith.constant 5.000000e+00 : f32
      %345 = vector.broadcast %cst_128 : f32 to vector<8x1xf32>
      %346 = arith.mulf %345, %52 : vector<8x1xf32>
      %347 = arith.addf %69, %346 : vector<8x1xf32>
      %348 = arith.addf %347, %104 : vector<8x1xf32>
      %cst_129 = arith.constant -1.000000e+00 : f32
      %349 = vector.broadcast %cst_129 : f32 to vector<8x1xf32>
      %350 = arith.cmpf oge, %348, %349 : vector<8x1xf32>
      %cst_130 = arith.constant 1.600000e+01 : f32
      %351 = vector.broadcast %cst_130 : f32 to vector<8x1xf32>
      %352 = arith.cmpf ole, %348, %351 : vector<8x1xf32>
      %353 = arith.andi %350, %352 : vector<8x1xi1>
      %354 = arith.andi %100, %353 : vector<8x1xi1>
      %355 = arith.extui %354 : vector<8x1xi1> to vector<8x1xi32>
      %356 = arith.sitofp %355 : vector<8x1xi32> to vector<8x1xf32>
      %cst_131 = arith.constant 0.000000e+00 : f32
      %357 = vector.broadcast %cst_131 : f32 to vector<8x1xf32>
      %358 = arith.maximumf %348, %357 : vector<8x1xf32>
      %359 = math.floor %358 : vector<8x1xf32>
      %360 = arith.fptosi %359 : vector<8x1xf32> to vector<8x1xi32>
      %c15_i32_132 = arith.constant 15 : i32
      %361 = vector.broadcast %c15_i32_132 : i32 to vector<8x1xi32>
      %362 = arith.cmpi sge, %360, %361 : vector<8x1xi32>
      %c15_i32_133 = arith.constant 15 : i32
      %363 = vector.broadcast %c15_i32_133 : i32 to vector<8x1xi32>
      %364 = arith.select %362, %363, %360 : vector<8x1xi1>, vector<8x1xi32>
      %c1_i32_134 = arith.constant 1 : i32
      %365 = vector.broadcast %c1_i32_134 : i32 to vector<8x1xi32>
      %366 = arith.addi %360, %365 : vector<8x1xi32>
      %c15_i32_135 = arith.constant 15 : i32
      %367 = vector.broadcast %c15_i32_135 : i32 to vector<8x1xi32>
      %368 = arith.select %362, %367, %366 : vector<8x1xi1>, vector<8x1xi32>
      %369 = arith.sitofp %364 : vector<8x1xi32> to vector<8x1xf32>
      %370 = arith.subf %358, %369 : vector<8x1xf32>
      %cst_136 = arith.constant 0.000000e+00 : f32
      %371 = vector.broadcast %cst_136 : f32 to vector<8x1xf32>
      %372 = arith.select %362, %371, %370 : vector<8x1xi1>, vector<8x1xf32>
      %cst_137 = arith.constant 1.000000e+00 : f32
      %373 = vector.broadcast %cst_137 : f32 to vector<8x1xf32>
      %374 = arith.subf %373, %372 : vector<8x1xf32>
      %375 = arith.mulf %374, %356 : vector<8x1xf32>
      %376 = arith.mulf %372, %356 : vector<8x1xf32>
      %c0_138 = arith.constant 0 : index
      %c0_139 = arith.constant 0 : index
      %377 = vector.load %arg6[%c0_138, %c0_139] : memref<8x16xf32, #tpu.memory_space<vmem>>, vector<8x16xf32>
      %378 = vector.broadcast %364 : vector<8x1xi32> to vector<8x16xi32>
      %379 = arith.cmpi eq, %75, %378 : vector<8x16xi32>
      %cst_140 = arith.constant 0.000000e+00 : f32
      %380 = vector.shape_cast %375 : vector<8x1xf32> to vector<8x1xf32>
      %381 = vector.broadcast %380 : vector<8x1xf32> to vector<8x16xf32>
      %382 = vector.broadcast %cst_140 : f32 to vector<8x16xf32>
      %383 = arith.select %379, %381, %382 : vector<8x16xi1>, vector<8x16xf32>
      %384 = vector.broadcast %368 : vector<8x1xi32> to vector<8x16xi32>
      %385 = arith.cmpi eq, %75, %384 : vector<8x16xi32>
      %cst_141 = arith.constant 0.000000e+00 : f32
      %386 = vector.shape_cast %376 : vector<8x1xf32> to vector<8x1xf32>
      %387 = vector.broadcast %386 : vector<8x1xf32> to vector<8x16xf32>
      %388 = vector.broadcast %cst_141 : f32 to vector<8x16xf32>
      %389 = arith.select %385, %387, %388 : vector<8x16xi1>, vector<8x16xf32>
      %390 = arith.addf %383, %389 : vector<8x16xf32>
      %391 = arith.addf %377, %390 : vector<8x16xf32>
      %c0_142 = arith.constant 0 : index
      %c0_143 = arith.constant 0 : index
      %392 = vector.load %arg6[%c0_142, %c0_143] : memref<8x16xf32, #tpu.memory_space<vmem>>, vector<8x16xf32>
      tpu.vector_store %arg6[%c0_142, %c0_143], %391 {strides = array<i32>} : memref<8x16xf32, #tpu.memory_space<vmem>>, vector<8x16xf32>,
      %cst_144 = arith.constant 6.000000e+00 : f32
      %393 = vector.broadcast %cst_144 : f32 to vector<8x1xf32>
      %394 = arith.mulf %393, %52 : vector<8x1xf32>
      %395 = arith.addf %69, %394 : vector<8x1xf32>
      %396 = arith.addf %395, %104 : vector<8x1xf32>
      %cst_145 = arith.constant -1.000000e+00 : f32
      %397 = vector.broadcast %cst_145 : f32 to vector<8x1xf32>
      %398 = arith.cmpf oge, %396, %397 : vector<8x1xf32>
      %cst_146 = arith.constant 1.600000e+01 : f32
      %399 = vector.broadcast %cst_146 : f32 to vector<8x1xf32>
      %400 = arith.cmpf ole, %396, %399 : vector<8x1xf32>
      %401 = arith.andi %398, %400 : vector<8x1xi1>
      %402 = arith.andi %100, %401 : vector<8x1xi1>
      %403 = arith.extui %402 : vector<8x1xi1> to vector<8x1xi32>
      %404 = arith.sitofp %403 : vector<8x1xi32> to vector<8x1xf32>
      %cst_147 = arith.constant 0.000000e+00 : f32
      %405 = vector.broadcast %cst_147 : f32 to vector<8x1xf32>
      %406 = arith.maximumf %396, %405 : vector<8x1xf32>
      %407 = math.floor %406 : vector<8x1xf32>
      %408 = arith.fptosi %407 : vector<8x1xf32> to vector<8x1xi32>
      %c15_i32_148 = arith.constant 15 : i32
      %409 = vector.broadcast %c15_i32_148 : i32 to vector<8x1xi32>
      %410 = arith.cmpi sge, %408, %409 : vector<8x1xi32>
      %c15_i32_149 = arith.constant 15 : i32
      %411 = vector.broadcast %c15_i32_149 : i32 to vector<8x1xi32>
      %412 = arith.select %410, %411, %408 : vector<8x1xi1>, vector<8x1xi32>
      %c1_i32_150 = arith.constant 1 : i32
      %413 = vector.broadcast %c1_i32_150 : i32 to vector<8x1xi32>
      %414 = arith.addi %408, %413 : vector<8x1xi32>
      %c15_i32_151 = arith.constant 15 : i32
      %415 = vector.broadcast %c15_i32_151 : i32 to vector<8x1xi32>
      %416 = arith.select %410, %415, %414 : vector<8x1xi1>, vector<8x1xi32>
      %417 = arith.sitofp %412 : vector<8x1xi32> to vector<8x1xf32>
      %418 = arith.subf %406, %417 : vector<8x1xf32>
      %cst_152 = arith.constant 0.000000e+00 : f32
      %419 = vector.broadcast %cst_152 : f32 to vector<8x1xf32>
      %420 = arith.select %410, %419, %418 : vector<8x1xi1>, vector<8x1xf32>
      %cst_153 = arith.constant 1.000000e+00 : f32
      %421 = vector.broadcast %cst_153 : f32 to vector<8x1xf32>
      %422 = arith.subf %421, %420 : vector<8x1xf32>
      %423 = arith.mulf %422, %404 : vector<8x1xf32>
      %424 = arith.mulf %420, %404 : vector<8x1xf32>
      %c0_154 = arith.constant 0 : index
      %c0_155 = arith.constant 0 : index
      %425 = vector.load %arg6[%c0_154, %c0_155] : memref<8x16xf32, #tpu.memory_space<vmem>>, vector<8x16xf32>
      %426 = vector.broadcast %412 : vector<8x1xi32> to vector<8x16xi32>
      %427 = arith.cmpi eq, %75, %426 : vector<8x16xi32>
      %cst_156 = arith.constant 0.000000e+00 : f32
      %428 = vector.shape_cast %423 : vector<8x1xf32> to vector<8x1xf32>
      %429 = vector.broadcast %428 : vector<8x1xf32> to vector<8x16xf32>
      %430 = vector.broadcast %cst_156 : f32 to vector<8x16xf32>
      %431 = arith.select %427, %429, %430 : vector<8x16xi1>, vector<8x16xf32>
      %432 = vector.broadcast %416 : vector<8x1xi32> to vector<8x16xi32>
      %433 = arith.cmpi eq, %75, %432 : vector<8x16xi32>
      %cst_157 = arith.constant 0.000000e+00 : f32
      %434 = vector.shape_cast %424 : vector<8x1xf32> to vector<8x1xf32>
      %435 = vector.broadcast %434 : vector<8x1xf32> to vector<8x16xf32>
      %436 = vector.broadcast %cst_157 : f32 to vector<8x16xf32>
      %437 = arith.select %433, %435, %436 : vector<8x16xi1>, vector<8x16xf32>
      %438 = arith.addf %431, %437 : vector<8x16xf32>
      %439 = arith.addf %425, %438 : vector<8x16xf32>
      %c0_158 = arith.constant 0 : index
      %c0_159 = arith.constant 0 : index
      %440 = vector.load %arg6[%c0_158, %c0_159] : memref<8x16xf32, #tpu.memory_space<vmem>>, vector<8x16xf32>
      tpu.vector_store %arg6[%c0_158, %c0_159], %439 {strides = array<i32>} : memref<8x16xf32, #tpu.memory_space<vmem>>, vector<8x16xf32>,
      %cst_160 = arith.constant 7.000000e+00 : f32
      %441 = vector.broadcast %cst_160 : f32 to vector<8x1xf32>
      %442 = arith.mulf %441, %52 : vector<8x1xf32>
      %443 = arith.addf %69, %442 : vector<8x1xf32>
      %444 = arith.addf %443, %104 : vector<8x1xf32>
      %cst_161 = arith.constant -1.000000e+00 : f32
      %445 = vector.broadcast %cst_161 : f32 to vector<8x1xf32>
      %446 = arith.cmpf oge, %444, %445 : vector<8x1xf32>
      %cst_162 = arith.constant 1.600000e+01 : f32
      %447 = vector.broadcast %cst_162 : f32 to vector<8x1xf32>
      %448 = arith.cmpf ole, %444, %447 : vector<8x1xf32>
      %449 = arith.andi %446, %448 : vector<8x1xi1>
      %450 = arith.andi %100, %449 : vector<8x1xi1>
      %451 = arith.extui %450 : vector<8x1xi1> to vector<8x1xi32>
      %452 = arith.sitofp %451 : vector<8x1xi32> to vector<8x1xf32>
      %cst_163 = arith.constant 0.000000e+00 : f32
      %453 = vector.broadcast %cst_163 : f32 to vector<8x1xf32>
      %454 = arith.maximumf %444, %453 : vector<8x1xf32>
      %455 = math.floor %454 : vector<8x1xf32>
      %456 = arith.fptosi %455 : vector<8x1xf32> to vector<8x1xi32>
      %c15_i32_164 = arith.constant 15 : i32
      %457 = vector.broadcast %c15_i32_164 : i32 to vector<8x1xi32>
      %458 = arith.cmpi sge, %456, %457 : vector<8x1xi32>
      %c15_i32_165 = arith.constant 15 : i32
      %459 = vector.broadcast %c15_i32_165 : i32 to vector<8x1xi32>
      %460 = arith.select %458, %459, %456 : vector<8x1xi1>, vector<8x1xi32>
      %c1_i32_166 = arith.constant 1 : i32
      %461 = vector.broadcast %c1_i32_166 : i32 to vector<8x1xi32>
      %462 = arith.addi %456, %461 : vector<8x1xi32>
      %c15_i32_167 = arith.constant 15 : i32
      %463 = vector.broadcast %c15_i32_167 : i32 to vector<8x1xi32>
      %464 = arith.select %458, %463, %462 : vector<8x1xi1>, vector<8x1xi32>
      %465 = arith.sitofp %460 : vector<8x1xi32> to vector<8x1xf32>
      %466 = arith.subf %454, %465 : vector<8x1xf32>
      %cst_168 = arith.constant 0.000000e+00 : f32
      %467 = vector.broadcast %cst_168 : f32 to vector<8x1xf32>
      %468 = arith.select %458, %467, %466 : vector<8x1xi1>, vector<8x1xf32>
      %cst_169 = arith.constant 1.000000e+00 : f32
      %469 = vector.broadcast %cst_169 : f32 to vector<8x1xf32>
      %470 = arith.subf %469, %468 : vector<8x1xf32>
      %471 = arith.mulf %470, %452 : vector<8x1xf32>
      %472 = arith.mulf %468, %452 : vector<8x1xf32>
      %c0_170 = arith.constant 0 : index
      %c0_171 = arith.constant 0 : index
      %473 = vector.load %arg6[%c0_170, %c0_171] : memref<8x16xf32, #tpu.memory_space<vmem>>, vector<8x16xf32>
      %474 = vector.broadcast %460 : vector<8x1xi32> to vector<8x16xi32>
      %475 = arith.cmpi eq, %75, %474 : vector<8x16xi32>
      %cst_172 = arith.constant 0.000000e+00 : f32
      %476 = vector.shape_cast %471 : vector<8x1xf32> to vector<8x1xf32>
      %477 = vector.broadcast %476 : vector<8x1xf32> to vector<8x16xf32>
      %478 = vector.broadcast %cst_172 : f32 to vector<8x16xf32>
      %479 = arith.select %475, %477, %478 : vector<8x16xi1>, vector<8x16xf32>
      %480 = vector.broadcast %464 : vector<8x1xi32> to vector<8x16xi32>
      %481 = arith.cmpi eq, %75, %480 : vector<8x16xi32>
      %cst_173 = arith.constant 0.000000e+00 : f32
      %482 = vector.shape_cast %472 : vector<8x1xf32> to vector<8x1xf32>
      %483 = vector.broadcast %482 : vector<8x1xf32> to vector<8x16xf32>
      %484 = vector.broadcast %cst_173 : f32 to vector<8x16xf32>
      %485 = arith.select %481, %483, %484 : vector<8x16xi1>, vector<8x16xf32>
      %486 = arith.addf %479, %485 : vector<8x16xf32>
      %487 = arith.addf %473, %486 : vector<8x16xf32>
      %c0_174 = arith.constant 0 : index
      %c0_175 = arith.constant 0 : index
      %488 = vector.load %arg6[%c0_174, %c0_175] : memref<8x16xf32, #tpu.memory_space<vmem>>, vector<8x16xf32>
      tpu.vector_store %arg6[%c0_174, %c0_175], %487 {strides = array<i32>} : memref<8x16xf32, #tpu.memory_space<vmem>>, vector<8x16xf32>,
      %cst_176 = arith.constant 8.000000e+00 : f32
      %489 = vector.broadcast %cst_176 : f32 to vector<8x1xf32>
      %490 = arith.mulf %489, %52 : vector<8x1xf32>
      %491 = arith.addf %69, %490 : vector<8x1xf32>
      %492 = arith.addf %491, %104 : vector<8x1xf32>
      %cst_177 = arith.constant -1.000000e+00 : f32
      %493 = vector.broadcast %cst_177 : f32 to vector<8x1xf32>
      %494 = arith.cmpf oge, %492, %493 : vector<8x1xf32>
      %cst_178 = arith.constant 1.600000e+01 : f32
      %495 = vector.broadcast %cst_178 : f32 to vector<8x1xf32>
      %496 = arith.cmpf ole, %492, %495 : vector<8x1xf32>
      %497 = arith.andi %494, %496 : vector<8x1xi1>
      %498 = arith.andi %100, %497 : vector<8x1xi1>
      %499 = arith.extui %498 : vector<8x1xi1> to vector<8x1xi32>
      %500 = arith.sitofp %499 : vector<8x1xi32> to vector<8x1xf32>
      %cst_179 = arith.constant 0.000000e+00 : f32
      %501 = vector.broadcast %cst_179 : f32 to vector<8x1xf32>
      %502 = arith.maximumf %492, %501 : vector<8x1xf32>
      %503 = math.floor %502 : vector<8x1xf32>
      %504 = arith.fptosi %503 : vector<8x1xf32> to vector<8x1xi32>
      %c15_i32_180 = arith.constant 15 : i32
      %505 = vector.broadcast %c15_i32_180 : i32 to vector<8x1xi32>
      %506 = arith.cmpi sge, %504, %505 : vector<8x1xi32>
      %c15_i32_181 = arith.constant 15 : i32
      %507 = vector.broadcast %c15_i32_181 : i32 to vector<8x1xi32>
      %508 = arith.select %506, %507, %504 : vector<8x1xi1>, vector<8x1xi32>
      %c1_i32_182 = arith.constant 1 : i32
      %509 = vector.broadcast %c1_i32_182 : i32 to vector<8x1xi32>
      %510 = arith.addi %504, %509 : vector<8x1xi32>
      %c15_i32_183 = arith.constant 15 : i32
      %511 = vector.broadcast %c15_i32_183 : i32 to vector<8x1xi32>
      %512 = arith.select %506, %511, %510 : vector<8x1xi1>, vector<8x1xi32>
      %513 = arith.sitofp %508 : vector<8x1xi32> to vector<8x1xf32>
      %514 = arith.subf %502, %513 : vector<8x1xf32>
      %cst_184 = arith.constant 0.000000e+00 : f32
      %515 = vector.broadcast %cst_184 : f32 to vector<8x1xf32>
      %516 = arith.select %506, %515, %514 : vector<8x1xi1>, vector<8x1xf32>
      %cst_185 = arith.constant 1.000000e+00 : f32
      %517 = vector.broadcast %cst_185 : f32 to vector<8x1xf32>
      %518 = arith.subf %517, %516 : vector<8x1xf32>
      %519 = arith.mulf %518, %500 : vector<8x1xf32>
      %520 = arith.mulf %516, %500 : vector<8x1xf32>
      %c0_186 = arith.constant 0 : index
      %c0_187 = arith.constant 0 : index
      %521 = vector.load %arg6[%c0_186, %c0_187] : memref<8x16xf32, #tpu.memory_space<vmem>>, vector<8x16xf32>
      %522 = vector.broadcast %508 : vector<8x1xi32> to vector<8x16xi32>
      %523 = arith.cmpi eq, %75, %522 : vector<8x16xi32>
      %cst_188 = arith.constant 0.000000e+00 : f32
      %524 = vector.shape_cast %519 : vector<8x1xf32> to vector<8x1xf32>
      %525 = vector.broadcast %524 : vector<8x1xf32> to vector<8x16xf32>
      %526 = vector.broadcast %cst_188 : f32 to vector<8x16xf32>
      %527 = arith.select %523, %525, %526 : vector<8x16xi1>, vector<8x16xf32>
      %528 = vector.broadcast %512 : vector<8x1xi32> to vector<8x16xi32>
      %529 = arith.cmpi eq, %75, %528 : vector<8x16xi32>
      %cst_189 = arith.constant 0.000000e+00 : f32
      %530 = vector.shape_cast %520 : vector<8x1xf32> to vector<8x1xf32>
      %531 = vector.broadcast %530 : vector<8x1xf32> to vector<8x16xf32>
      %532 = vector.broadcast %cst_189 : f32 to vector<8x16xf32>
      %533 = arith.select %529, %531, %532 : vector<8x16xi1>, vector<8x16xf32>
      %534 = arith.addf %527, %533 : vector<8x16xf32>
      %535 = arith.addf %521, %534 : vector<8x16xf32>
      %c0_190 = arith.constant 0 : index
      %c0_191 = arith.constant 0 : index
      %536 = vector.load %arg6[%c0_190, %c0_191] : memref<8x16xf32, #tpu.memory_space<vmem>>, vector<8x16xf32>
      tpu.vector_store %arg6[%c0_190, %c0_191], %535 {strides = array<i32>} : memref<8x16xf32, #tpu.memory_space<vmem>>, vector<8x16xf32>,
      %cst_192 = arith.constant 9.000000e+00 : f32
      %537 = vector.broadcast %cst_192 : f32 to vector<8x1xf32>
      %538 = arith.mulf %537, %52 : vector<8x1xf32>
      %539 = arith.addf %69, %538 : vector<8x1xf32>
      %540 = arith.addf %539, %104 : vector<8x1xf32>
      %cst_193 = arith.constant -1.000000e+00 : f32
      %541 = vector.broadcast %cst_193 : f32 to vector<8x1xf32>
      %542 = arith.cmpf oge, %540, %541 : vector<8x1xf32>
      %cst_194 = arith.constant 1.600000e+01 : f32
      %543 = vector.broadcast %cst_194 : f32 to vector<8x1xf32>
      %544 = arith.cmpf ole, %540, %543 : vector<8x1xf32>
      %545 = arith.andi %542, %544 : vector<8x1xi1>
      %546 = arith.andi %100, %545 : vector<8x1xi1>
      %547 = arith.extui %546 : vector<8x1xi1> to vector<8x1xi32>
      %548 = arith.sitofp %547 : vector<8x1xi32> to vector<8x1xf32>
      %cst_195 = arith.constant 0.000000e+00 : f32
      %549 = vector.broadcast %cst_195 : f32 to vector<8x1xf32>
      %550 = arith.maximumf %540, %549 : vector<8x1xf32>
      %551 = math.floor %550 : vector<8x1xf32>
      %552 = arith.fptosi %551 : vector<8x1xf32> to vector<8x1xi32>
      %c15_i32_196 = arith.constant 15 : i32
      %553 = vector.broadcast %c15_i32_196 : i32 to vector<8x1xi32>
      %554 = arith.cmpi sge, %552, %553 : vector<8x1xi32>
      %c15_i32_197 = arith.constant 15 : i32
      %555 = vector.broadcast %c15_i32_197 : i32 to vector<8x1xi32>
      %556 = arith.select %554, %555, %552 : vector<8x1xi1>, vector<8x1xi32>
      %c1_i32_198 = arith.constant 1 : i32
      %557 = vector.broadcast %c1_i32_198 : i32 to vector<8x1xi32>
      %558 = arith.addi %552, %557 : vector<8x1xi32>
      %c15_i32_199 = arith.constant 15 : i32
      %559 = vector.broadcast %c15_i32_199 : i32 to vector<8x1xi32>
      %560 = arith.select %554, %559, %558 : vector<8x1xi1>, vector<8x1xi32>
      %561 = arith.sitofp %556 : vector<8x1xi32> to vector<8x1xf32>
      %562 = arith.subf %550, %561 : vector<8x1xf32>
      %cst_200 = arith.constant 0.000000e+00 : f32
      %563 = vector.broadcast %cst_200 : f32 to vector<8x1xf32>
      %564 = arith.select %554, %563, %562 : vector<8x1xi1>, vector<8x1xf32>
      %cst_201 = arith.constant 1.000000e+00 : f32
      %565 = vector.broadcast %cst_201 : f32 to vector<8x1xf32>
      %566 = arith.subf %565, %564 : vector<8x1xf32>
      %567 = arith.mulf %566, %548 : vector<8x1xf32>
      %568 = arith.mulf %564, %548 : vector<8x1xf32>
      %c0_202 = arith.constant 0 : index
      %c0_203 = arith.constant 0 : index
      %569 = vector.load %arg6[%c0_202, %c0_203] : memref<8x16xf32, #tpu.memory_space<vmem>>, vector<8x16xf32>
      %570 = vector.broadcast %556 : vector<8x1xi32> to vector<8x16xi32>
      %571 = arith.cmpi eq, %75, %570 : vector<8x16xi32>
      %cst_204 = arith.constant 0.000000e+00 : f32
      %572 = vector.shape_cast %567 : vector<8x1xf32> to vector<8x1xf32>
      %573 = vector.broadcast %572 : vector<8x1xf32> to vector<8x16xf32>
      %574 = vector.broadcast %cst_204 : f32 to vector<8x16xf32>
      %575 = arith.select %571, %573, %574 : vector<8x16xi1>, vector<8x16xf32>
      %576 = vector.broadcast %560 : vector<8x1xi32> to vector<8x16xi32>
      %577 = arith.cmpi eq, %75, %576 : vector<8x16xi32>
      %cst_205 = arith.constant 0.000000e+00 : f32
      %578 = vector.shape_cast %568 : vector<8x1xf32> to vector<8x1xf32>
      %579 = vector.broadcast %578 : vector<8x1xf32> to vector<8x16xf32>
      %580 = vector.broadcast %cst_205 : f32 to vector<8x16xf32>
      %581 = arith.select %577, %579, %580 : vector<8x16xi1>, vector<8x16xf32>
      %582 = arith.addf %575, %581 : vector<8x16xf32>
      %583 = arith.addf %569, %582 : vector<8x16xf32>
      %c0_206 = arith.constant 0 : index
      %c0_207 = arith.constant 0 : index
      %584 = vector.load %arg6[%c0_206, %c0_207] : memref<8x16xf32, #tpu.memory_space<vmem>>, vector<8x16xf32>
      tpu.vector_store %arg6[%c0_206, %c0_207], %583 {strides = array<i32>} : memref<8x16xf32, #tpu.memory_space<vmem>>, vector<8x16xf32>,
    }
    %c0_i32_32 = arith.constant 0 : i32
    %c0_i32_33 = arith.constant 0 : i32
    %83 = arith.subi %8, %c0_i32_33 : i32
    %84 = arith.addi %c0_i32_33, %83 : i32
    %c1_i32_34 = arith.constant 1 : i32
    scf.for %arg8 = %c0_i32_33 to %84 step %c1_i32_34  : i32 {
      %99 = vector.broadcast %arg8 : i32 to vector<8x1xi32>
      %100 = arith.cmpi slt, %99, %62 : vector<8x1xi32>
      %101 = arith.sitofp %arg8 : i32 to f32
      %cst_48 = arith.constant 5.000000e-01 : f32
      %102 = arith.addf %101, %cst_48 : f32
      %103 = vector.broadcast %102 : f32 to vector<8x1xf32>
      %104 = arith.mulf %103, %74 : vector<8x1xf32>
      %cst_49 = arith.constant 0.000000e+00 : f32
      %105 = vector.broadcast %cst_49 : f32 to vector<8x1xf32>
      %106 = arith.mulf %105, %54 : vector<8x1xf32>
      %107 = arith.addf %72, %106 : vector<8x1xf32>
      %108 = arith.addf %107, %104 : vector<8x1xf32>
      %cst_50 = arith.constant -1.000000e+00 : f32
      %109 = vector.broadcast %cst_50 : f32 to vector<8x1xf32>
      %110 = arith.cmpf oge, %108, %109 : vector<8x1xf32>
      %cst_51 = arith.constant 1.600000e+01 : f32
      %111 = vector.broadcast %cst_51 : f32 to vector<8x1xf32>
      %112 = arith.cmpf ole, %108, %111 : vector<8x1xf32>
      %113 = arith.andi %110, %112 : vector<8x1xi1>
      %114 = arith.andi %100, %113 : vector<8x1xi1>
      %115 = arith.extui %114 : vector<8x1xi1> to vector<8x1xi32>
      %116 = arith.sitofp %115 : vector<8x1xi32> to vector<8x1xf32>
      %cst_52 = arith.constant 0.000000e+00 : f32
      %117 = vector.broadcast %cst_52 : f32 to vector<8x1xf32>
      %118 = arith.maximumf %108, %117 : vector<8x1xf32>
      %119 = math.floor %118 : vector<8x1xf32>
      %120 = arith.fptosi %119 : vector<8x1xf32> to vector<8x1xi32>
      %c15_i32 = arith.constant 15 : i32
      %121 = vector.broadcast %c15_i32 : i32 to vector<8x1xi32>
      %122 = arith.cmpi sge, %120, %121 : vector<8x1xi32>
      %c15_i32_53 = arith.constant 15 : i32
      %123 = vector.broadcast %c15_i32_53 : i32 to vector<8x1xi32>
      %124 = arith.select %122, %123, %120 : vector<8x1xi1>, vector<8x1xi32>
      %c1_i32_54 = arith.constant 1 : i32
      %125 = vector.broadcast %c1_i32_54 : i32 to vector<8x1xi32>
      %126 = arith.addi %120, %125 : vector<8x1xi32>
      %c15_i32_55 = arith.constant 15 : i32
      %127 = vector.broadcast %c15_i32_55 : i32 to vector<8x1xi32>
      %128 = arith.select %122, %127, %126 : vector<8x1xi1>, vector<8x1xi32>
      %129 = arith.sitofp %124 : vector<8x1xi32> to vector<8x1xf32>
      %130 = arith.subf %118, %129 : vector<8x1xf32>
      %cst_56 = arith.constant 0.000000e+00 : f32
      %131 = vector.broadcast %cst_56 : f32 to vector<8x1xf32>
      %132 = arith.select %122, %131, %130 : vector<8x1xi1>, vector<8x1xf32>
      %cst_57 = arith.constant 1.000000e+00 : f32
      %133 = vector.broadcast %cst_57 : f32 to vector<8x1xf32>
      %134 = arith.subf %133, %132 : vector<8x1xf32>
      %135 = arith.mulf %134, %116 : vector<8x1xf32>
      %136 = arith.mulf %132, %116 : vector<8x1xf32>
      %c0_58 = arith.constant 0 : index
      %c0_59 = arith.constant 0 : index
      %137 = vector.load %arg7[%c0_58, %c0_59] : memref<8x16xf32, #tpu.memory_space<vmem>>, vector<8x16xf32>
      %138 = vector.broadcast %124 : vector<8x1xi32> to vector<8x16xi32>
      %139 = arith.cmpi eq, %76, %138 : vector<8x16xi32>
      %cst_60 = arith.constant 0.000000e+00 : f32
      %140 = vector.shape_cast %135 : vector<8x1xf32> to vector<8x1xf32>
      %141 = vector.broadcast %140 : vector<8x1xf32> to vector<8x16xf32>
      %142 = vector.broadcast %cst_60 : f32 to vector<8x16xf32>
      %143 = arith.select %139, %141, %142 : vector<8x16xi1>, vector<8x16xf32>
      %144 = vector.broadcast %128 : vector<8x1xi32> to vector<8x16xi32>
      %145 = arith.cmpi eq, %76, %144 : vector<8x16xi32>
      %cst_61 = arith.constant 0.000000e+00 : f32
      %146 = vector.shape_cast %136 : vector<8x1xf32> to vector<8x1xf32>
      %147 = vector.broadcast %146 : vector<8x1xf32> to vector<8x16xf32>
      %148 = vector.broadcast %cst_61 : f32 to vector<8x16xf32>
      %149 = arith.select %145, %147, %148 : vector<8x16xi1>, vector<8x16xf32>
      %150 = arith.addf %143, %149 : vector<8x16xf32>
      %151 = arith.addf %137, %150 : vector<8x16xf32>
      %c0_62 = arith.constant 0 : index
      %c0_63 = arith.constant 0 : index
      %152 = vector.load %arg7[%c0_62, %c0_63] : memref<8x16xf32, #tpu.memory_space<vmem>>, vector<8x16xf32>
      tpu.vector_store %arg7[%c0_62, %c0_63], %151 {strides = array<i32>} : memref<8x16xf32, #tpu.memory_space<vmem>>, vector<8x16xf32>,
      %cst_64 = arith.constant 1.000000e+00 : f32
      %153 = vector.broadcast %cst_64 : f32 to vector<8x1xf32>
      %154 = arith.mulf %153, %54 : vector<8x1xf32>
      %155 = arith.addf %72, %154 : vector<8x1xf32>
      %156 = arith.addf %155, %104 : vector<8x1xf32>
      %cst_65 = arith.constant -1.000000e+00 : f32
      %157 = vector.broadcast %cst_65 : f32 to vector<8x1xf32>
      %158 = arith.cmpf oge, %156, %157 : vector<8x1xf32>
      %cst_66 = arith.constant 1.600000e+01 : f32
      %159 = vector.broadcast %cst_66 : f32 to vector<8x1xf32>
      %160 = arith.cmpf ole, %156, %159 : vector<8x1xf32>
      %161 = arith.andi %158, %160 : vector<8x1xi1>
      %162 = arith.andi %100, %161 : vector<8x1xi1>
      %163 = arith.extui %162 : vector<8x1xi1> to vector<8x1xi32>
      %164 = arith.sitofp %163 : vector<8x1xi32> to vector<8x1xf32>
      %cst_67 = arith.constant 0.000000e+00 : f32
      %165 = vector.broadcast %cst_67 : f32 to vector<8x1xf32>
      %166 = arith.maximumf %156, %165 : vector<8x1xf32>
      %167 = math.floor %166 : vector<8x1xf32>
      %168 = arith.fptosi %167 : vector<8x1xf32> to vector<8x1xi32>
      %c15_i32_68 = arith.constant 15 : i32
      %169 = vector.broadcast %c15_i32_68 : i32 to vector<8x1xi32>
      %170 = arith.cmpi sge, %168, %169 : vector<8x1xi32>
      %c15_i32_69 = arith.constant 15 : i32
      %171 = vector.broadcast %c15_i32_69 : i32 to vector<8x1xi32>
      %172 = arith.select %170, %171, %168 : vector<8x1xi1>, vector<8x1xi32>
      %c1_i32_70 = arith.constant 1 : i32
      %173 = vector.broadcast %c1_i32_70 : i32 to vector<8x1xi32>
      %174 = arith.addi %168, %173 : vector<8x1xi32>
      %c15_i32_71 = arith.constant 15 : i32
      %175 = vector.broadcast %c15_i32_71 : i32 to vector<8x1xi32>
      %176 = arith.select %170, %175, %174 : vector<8x1xi1>, vector<8x1xi32>
      %177 = arith.sitofp %172 : vector<8x1xi32> to vector<8x1xf32>
      %178 = arith.subf %166, %177 : vector<8x1xf32>
      %cst_72 = arith.constant 0.000000e+00 : f32
      %179 = vector.broadcast %cst_72 : f32 to vector<8x1xf32>
      %180 = arith.select %170, %179, %178 : vector<8x1xi1>, vector<8x1xf32>
      %cst_73 = arith.constant 1.000000e+00 : f32
      %181 = vector.broadcast %cst_73 : f32 to vector<8x1xf32>
      %182 = arith.subf %181, %180 : vector<8x1xf32>
      %183 = arith.mulf %182, %164 : vector<8x1xf32>
      %184 = arith.mulf %180, %164 : vector<8x1xf32>
      %c0_74 = arith.constant 0 : index
      %c0_75 = arith.constant 0 : index
      %185 = vector.load %arg7[%c0_74, %c0_75] : memref<8x16xf32, #tpu.memory_space<vmem>>, vector<8x16xf32>
      %186 = vector.broadcast %172 : vector<8x1xi32> to vector<8x16xi32>
      %187 = arith.cmpi eq, %76, %186 : vector<8x16xi32>
      %cst_76 = arith.constant 0.000000e+00 : f32
      %188 = vector.shape_cast %183 : vector<8x1xf32> to vector<8x1xf32>
      %189 = vector.broadcast %188 : vector<8x1xf32> to vector<8x16xf32>
      %190 = vector.broadcast %cst_76 : f32 to vector<8x16xf32>
      %191 = arith.select %187, %189, %190 : vector<8x16xi1>, vector<8x16xf32>
      %192 = vector.broadcast %176 : vector<8x1xi32> to vector<8x16xi32>
      %193 = arith.cmpi eq, %76, %192 : vector<8x16xi32>
      %cst_77 = arith.constant 0.000000e+00 : f32
      %194 = vector.shape_cast %184 : vector<8x1xf32> to vector<8x1xf32>
      %195 = vector.broadcast %194 : vector<8x1xf32> to vector<8x16xf32>
      %196 = vector.broadcast %cst_77 : f32 to vector<8x16xf32>
      %197 = arith.select %193, %195, %196 : vector<8x16xi1>, vector<8x16xf32>
      %198 = arith.addf %191, %197 : vector<8x16xf32>
      %199 = arith.addf %185, %198 : vector<8x16xf32>
      %c0_78 = arith.constant 0 : index
      %c0_79 = arith.constant 0 : index
      %200 = vector.load %arg7[%c0_78, %c0_79] : memref<8x16xf32, #tpu.memory_space<vmem>>, vector<8x16xf32>
      tpu.vector_store %arg7[%c0_78, %c0_79], %199 {strides = array<i32>} : memref<8x16xf32, #tpu.memory_space<vmem>>, vector<8x16xf32>,
      %cst_80 = arith.constant 2.000000e+00 : f32
      %201 = vector.broadcast %cst_80 : f32 to vector<8x1xf32>
      %202 = arith.mulf %201, %54 : vector<8x1xf32>
      %203 = arith.addf %72, %202 : vector<8x1xf32>
      %204 = arith.addf %203, %104 : vector<8x1xf32>
      %cst_81 = arith.constant -1.000000e+00 : f32
      %205 = vector.broadcast %cst_81 : f32 to vector<8x1xf32>
      %206 = arith.cmpf oge, %204, %205 : vector<8x1xf32>
      %cst_82 = arith.constant 1.600000e+01 : f32
      %207 = vector.broadcast %cst_82 : f32 to vector<8x1xf32>
      %208 = arith.cmpf ole, %204, %207 : vector<8x1xf32>
      %209 = arith.andi %206, %208 : vector<8x1xi1>
      %210 = arith.andi %100, %209 : vector<8x1xi1>
      %211 = arith.extui %210 : vector<8x1xi1> to vector<8x1xi32>
      %212 = arith.sitofp %211 : vector<8x1xi32> to vector<8x1xf32>
      %cst_83 = arith.constant 0.000000e+00 : f32
      %213 = vector.broadcast %cst_83 : f32 to vector<8x1xf32>
      %214 = arith.maximumf %204, %213 : vector<8x1xf32>
      %215 = math.floor %214 : vector<8x1xf32>
      %216 = arith.fptosi %215 : vector<8x1xf32> to vector<8x1xi32>
      %c15_i32_84 = arith.constant 15 : i32
      %217 = vector.broadcast %c15_i32_84 : i32 to vector<8x1xi32>
      %218 = arith.cmpi sge, %216, %217 : vector<8x1xi32>
      %c15_i32_85 = arith.constant 15 : i32
      %219 = vector.broadcast %c15_i32_85 : i32 to vector<8x1xi32>
      %220 = arith.select %218, %219, %216 : vector<8x1xi1>, vector<8x1xi32>
      %c1_i32_86 = arith.constant 1 : i32
      %221 = vector.broadcast %c1_i32_86 : i32 to vector<8x1xi32>
      %222 = arith.addi %216, %221 : vector<8x1xi32>
      %c15_i32_87 = arith.constant 15 : i32
      %223 = vector.broadcast %c15_i32_87 : i32 to vector<8x1xi32>
      %224 = arith.select %218, %223, %222 : vector<8x1xi1>, vector<8x1xi32>
      %225 = arith.sitofp %220 : vector<8x1xi32> to vector<8x1xf32>
      %226 = arith.subf %214, %225 : vector<8x1xf32>
      %cst_88 = arith.constant 0.000000e+00 : f32
      %227 = vector.broadcast %cst_88 : f32 to vector<8x1xf32>
      %228 = arith.select %218, %227, %226 : vector<8x1xi1>, vector<8x1xf32>
      %cst_89 = arith.constant 1.000000e+00 : f32
      %229 = vector.broadcast %cst_89 : f32 to vector<8x1xf32>
      %230 = arith.subf %229, %228 : vector<8x1xf32>
      %231 = arith.mulf %230, %212 : vector<8x1xf32>
      %232 = arith.mulf %228, %212 : vector<8x1xf32>
      %c0_90 = arith.constant 0 : index
      %c0_91 = arith.constant 0 : index
      %233 = vector.load %arg7[%c0_90, %c0_91] : memref<8x16xf32, #tpu.memory_space<vmem>>, vector<8x16xf32>
      %234 = vector.broadcast %220 : vector<8x1xi32> to vector<8x16xi32>
      %235 = arith.cmpi eq, %76, %234 : vector<8x16xi32>
      %cst_92 = arith.constant 0.000000e+00 : f32
      %236 = vector.shape_cast %231 : vector<8x1xf32> to vector<8x1xf32>
      %237 = vector.broadcast %236 : vector<8x1xf32> to vector<8x16xf32>
      %238 = vector.broadcast %cst_92 : f32 to vector<8x16xf32>
      %239 = arith.select %235, %237, %238 : vector<8x16xi1>, vector<8x16xf32>
      %240 = vector.broadcast %224 : vector<8x1xi32> to vector<8x16xi32>
      %241 = arith.cmpi eq, %76, %240 : vector<8x16xi32>
      %cst_93 = arith.constant 0.000000e+00 : f32
      %242 = vector.shape_cast %232 : vector<8x1xf32> to vector<8x1xf32>
      %243 = vector.broadcast %242 : vector<8x1xf32> to vector<8x16xf32>
      %244 = vector.broadcast %cst_93 : f32 to vector<8x16xf32>
      %245 = arith.select %241, %243, %244 : vector<8x16xi1>, vector<8x16xf32>
      %246 = arith.addf %239, %245 : vector<8x16xf32>
      %247 = arith.addf %233, %246 : vector<8x16xf32>
      %c0_94 = arith.constant 0 : index
      %c0_95 = arith.constant 0 : index
      %248 = vector.load %arg7[%c0_94, %c0_95] : memref<8x16xf32, #tpu.memory_space<vmem>>, vector<8x16xf32>
      tpu.vector_store %arg7[%c0_94, %c0_95], %247 {strides = array<i32>} : memref<8x16xf32, #tpu.memory_space<vmem>>, vector<8x16xf32>,
      %cst_96 = arith.constant 3.000000e+00 : f32
      %249 = vector.broadcast %cst_96 : f32 to vector<8x1xf32>
      %250 = arith.mulf %249, %54 : vector<8x1xf32>
      %251 = arith.addf %72, %250 : vector<8x1xf32>
      %252 = arith.addf %251, %104 : vector<8x1xf32>
      %cst_97 = arith.constant -1.000000e+00 : f32
      %253 = vector.broadcast %cst_97 : f32 to vector<8x1xf32>
      %254 = arith.cmpf oge, %252, %253 : vector<8x1xf32>
      %cst_98 = arith.constant 1.600000e+01 : f32
      %255 = vector.broadcast %cst_98 : f32 to vector<8x1xf32>
      %256 = arith.cmpf ole, %252, %255 : vector<8x1xf32>
      %257 = arith.andi %254, %256 : vector<8x1xi1>
      %258 = arith.andi %100, %257 : vector<8x1xi1>
      %259 = arith.extui %258 : vector<8x1xi1> to vector<8x1xi32>
      %260 = arith.sitofp %259 : vector<8x1xi32> to vector<8x1xf32>
      %cst_99 = arith.constant 0.000000e+00 : f32
      %261 = vector.broadcast %cst_99 : f32 to vector<8x1xf32>
      %262 = arith.maximumf %252, %261 : vector<8x1xf32>
      %263 = math.floor %262 : vector<8x1xf32>
      %264 = arith.fptosi %263 : vector<8x1xf32> to vector<8x1xi32>
      %c15_i32_100 = arith.constant 15 : i32
      %265 = vector.broadcast %c15_i32_100 : i32 to vector<8x1xi32>
      %266 = arith.cmpi sge, %264, %265 : vector<8x1xi32>
      %c15_i32_101 = arith.constant 15 : i32
      %267 = vector.broadcast %c15_i32_101 : i32 to vector<8x1xi32>
      %268 = arith.select %266, %267, %264 : vector<8x1xi1>, vector<8x1xi32>
      %c1_i32_102 = arith.constant 1 : i32
      %269 = vector.broadcast %c1_i32_102 : i32 to vector<8x1xi32>
      %270 = arith.addi %264, %269 : vector<8x1xi32>
      %c15_i32_103 = arith.constant 15 : i32
      %271 = vector.broadcast %c15_i32_103 : i32 to vector<8x1xi32>
      %272 = arith.select %266, %271, %270 : vector<8x1xi1>, vector<8x1xi32>
      %273 = arith.sitofp %268 : vector<8x1xi32> to vector<8x1xf32>
      %274 = arith.subf %262, %273 : vector<8x1xf32>
      %cst_104 = arith.constant 0.000000e+00 : f32
      %275 = vector.broadcast %cst_104 : f32 to vector<8x1xf32>
      %276 = arith.select %266, %275, %274 : vector<8x1xi1>, vector<8x1xf32>
      %cst_105 = arith.constant 1.000000e+00 : f32
      %277 = vector.broadcast %cst_105 : f32 to vector<8x1xf32>
      %278 = arith.subf %277, %276 : vector<8x1xf32>
      %279 = arith.mulf %278, %260 : vector<8x1xf32>
      %280 = arith.mulf %276, %260 : vector<8x1xf32>
      %c0_106 = arith.constant 0 : index
      %c0_107 = arith.constant 0 : index
      %281 = vector.load %arg7[%c0_106, %c0_107] : memref<8x16xf32, #tpu.memory_space<vmem>>, vector<8x16xf32>
      %282 = vector.broadcast %268 : vector<8x1xi32> to vector<8x16xi32>
      %283 = arith.cmpi eq, %76, %282 : vector<8x16xi32>
      %cst_108 = arith.constant 0.000000e+00 : f32
      %284 = vector.shape_cast %279 : vector<8x1xf32> to vector<8x1xf32>
      %285 = vector.broadcast %284 : vector<8x1xf32> to vector<8x16xf32>
      %286 = vector.broadcast %cst_108 : f32 to vector<8x16xf32>
      %287 = arith.select %283, %285, %286 : vector<8x16xi1>, vector<8x16xf32>
      %288 = vector.broadcast %272 : vector<8x1xi32> to vector<8x16xi32>
      %289 = arith.cmpi eq, %76, %288 : vector<8x16xi32>
      %cst_109 = arith.constant 0.000000e+00 : f32
      %290 = vector.shape_cast %280 : vector<8x1xf32> to vector<8x1xf32>
      %291 = vector.broadcast %290 : vector<8x1xf32> to vector<8x16xf32>
      %292 = vector.broadcast %cst_109 : f32 to vector<8x16xf32>
      %293 = arith.select %289, %291, %292 : vector<8x16xi1>, vector<8x16xf32>
      %294 = arith.addf %287, %293 : vector<8x16xf32>
      %295 = arith.addf %281, %294 : vector<8x16xf32>
      %c0_110 = arith.constant 0 : index
      %c0_111 = arith.constant 0 : index
      %296 = vector.load %arg7[%c0_110, %c0_111] : memref<8x16xf32, #tpu.memory_space<vmem>>, vector<8x16xf32>
      tpu.vector_store %arg7[%c0_110, %c0_111], %295 {strides = array<i32>} : memref<8x16xf32, #tpu.memory_space<vmem>>, vector<8x16xf32>,
      %cst_112 = arith.constant 4.000000e+00 : f32
      %297 = vector.broadcast %cst_112 : f32 to vector<8x1xf32>
      %298 = arith.mulf %297, %54 : vector<8x1xf32>
      %299 = arith.addf %72, %298 : vector<8x1xf32>
      %300 = arith.addf %299, %104 : vector<8x1xf32>
      %cst_113 = arith.constant -1.000000e+00 : f32
      %301 = vector.broadcast %cst_113 : f32 to vector<8x1xf32>
      %302 = arith.cmpf oge, %300, %301 : vector<8x1xf32>
      %cst_114 = arith.constant 1.600000e+01 : f32
      %303 = vector.broadcast %cst_114 : f32 to vector<8x1xf32>
      %304 = arith.cmpf ole, %300, %303 : vector<8x1xf32>
      %305 = arith.andi %302, %304 : vector<8x1xi1>
      %306 = arith.andi %100, %305 : vector<8x1xi1>
      %307 = arith.extui %306 : vector<8x1xi1> to vector<8x1xi32>
      %308 = arith.sitofp %307 : vector<8x1xi32> to vector<8x1xf32>
      %cst_115 = arith.constant 0.000000e+00 : f32
      %309 = vector.broadcast %cst_115 : f32 to vector<8x1xf32>
      %310 = arith.maximumf %300, %309 : vector<8x1xf32>
      %311 = math.floor %310 : vector<8x1xf32>
      %312 = arith.fptosi %311 : vector<8x1xf32> to vector<8x1xi32>
      %c15_i32_116 = arith.constant 15 : i32
      %313 = vector.broadcast %c15_i32_116 : i32 to vector<8x1xi32>
      %314 = arith.cmpi sge, %312, %313 : vector<8x1xi32>
      %c15_i32_117 = arith.constant 15 : i32
      %315 = vector.broadcast %c15_i32_117 : i32 to vector<8x1xi32>
      %316 = arith.select %314, %315, %312 : vector<8x1xi1>, vector<8x1xi32>
      %c1_i32_118 = arith.constant 1 : i32
      %317 = vector.broadcast %c1_i32_118 : i32 to vector<8x1xi32>
      %318 = arith.addi %312, %317 : vector<8x1xi32>
      %c15_i32_119 = arith.constant 15 : i32
      %319 = vector.broadcast %c15_i32_119 : i32 to vector<8x1xi32>
      %320 = arith.select %314, %319, %318 : vector<8x1xi1>, vector<8x1xi32>
      %321 = arith.sitofp %316 : vector<8x1xi32> to vector<8x1xf32>
      %322 = arith.subf %310, %321 : vector<8x1xf32>
      %cst_120 = arith.constant 0.000000e+00 : f32
      %323 = vector.broadcast %cst_120 : f32 to vector<8x1xf32>
      %324 = arith.select %314, %323, %322 : vector<8x1xi1>, vector<8x1xf32>
      %cst_121 = arith.constant 1.000000e+00 : f32
      %325 = vector.broadcast %cst_121 : f32 to vector<8x1xf32>
      %326 = arith.subf %325, %324 : vector<8x1xf32>
      %327 = arith.mulf %326, %308 : vector<8x1xf32>
      %328 = arith.mulf %324, %308 : vector<8x1xf32>
      %c0_122 = arith.constant 0 : index
      %c0_123 = arith.constant 0 : index
      %329 = vector.load %arg7[%c0_122, %c0_123] : memref<8x16xf32, #tpu.memory_space<vmem>>, vector<8x16xf32>
      %330 = vector.broadcast %316 : vector<8x1xi32> to vector<8x16xi32>
      %331 = arith.cmpi eq, %76, %330 : vector<8x16xi32>
      %cst_124 = arith.constant 0.000000e+00 : f32
      %332 = vector.shape_cast %327 : vector<8x1xf32> to vector<8x1xf32>
      %333 = vector.broadcast %332 : vector<8x1xf32> to vector<8x16xf32>
      %334 = vector.broadcast %cst_124 : f32 to vector<8x16xf32>
      %335 = arith.select %331, %333, %334 : vector<8x16xi1>, vector<8x16xf32>
      %336 = vector.broadcast %320 : vector<8x1xi32> to vector<8x16xi32>
      %337 = arith.cmpi eq, %76, %336 : vector<8x16xi32>
      %cst_125 = arith.constant 0.000000e+00 : f32
      %338 = vector.shape_cast %328 : vector<8x1xf32> to vector<8x1xf32>
      %339 = vector.broadcast %338 : vector<8x1xf32> to vector<8x16xf32>
      %340 = vector.broadcast %cst_125 : f32 to vector<8x16xf32>
      %341 = arith.select %337, %339, %340 : vector<8x16xi1>, vector<8x16xf32>
      %342 = arith.addf %335, %341 : vector<8x16xf32>
      %343 = arith.addf %329, %342 : vector<8x16xf32>
      %c0_126 = arith.constant 0 : index
      %c0_127 = arith.constant 0 : index
      %344 = vector.load %arg7[%c0_126, %c0_127] : memref<8x16xf32, #tpu.memory_space<vmem>>, vector<8x16xf32>
      tpu.vector_store %arg7[%c0_126, %c0_127], %343 {strides = array<i32>} : memref<8x16xf32, #tpu.memory_space<vmem>>, vector<8x16xf32>,
      %cst_128 = arith.constant 5.000000e+00 : f32
      %345 = vector.broadcast %cst_128 : f32 to vector<8x1xf32>
      %346 = arith.mulf %345, %54 : vector<8x1xf32>
      %347 = arith.addf %72, %346 : vector<8x1xf32>
      %348 = arith.addf %347, %104 : vector<8x1xf32>
      %cst_129 = arith.constant -1.000000e+00 : f32
      %349 = vector.broadcast %cst_129 : f32 to vector<8x1xf32>
      %350 = arith.cmpf oge, %348, %349 : vector<8x1xf32>
      %cst_130 = arith.constant 1.600000e+01 : f32
      %351 = vector.broadcast %cst_130 : f32 to vector<8x1xf32>
      %352 = arith.cmpf ole, %348, %351 : vector<8x1xf32>
      %353 = arith.andi %350, %352 : vector<8x1xi1>
      %354 = arith.andi %100, %353 : vector<8x1xi1>
      %355 = arith.extui %354 : vector<8x1xi1> to vector<8x1xi32>
      %356 = arith.sitofp %355 : vector<8x1xi32> to vector<8x1xf32>
      %cst_131 = arith.constant 0.000000e+00 : f32
      %357 = vector.broadcast %cst_131 : f32 to vector<8x1xf32>
      %358 = arith.maximumf %348, %357 : vector<8x1xf32>
      %359 = math.floor %358 : vector<8x1xf32>
      %360 = arith.fptosi %359 : vector<8x1xf32> to vector<8x1xi32>
      %c15_i32_132 = arith.constant 15 : i32
      %361 = vector.broadcast %c15_i32_132 : i32 to vector<8x1xi32>
      %362 = arith.cmpi sge, %360, %361 : vector<8x1xi32>
      %c15_i32_133 = arith.constant 15 : i32
      %363 = vector.broadcast %c15_i32_133 : i32 to vector<8x1xi32>
      %364 = arith.select %362, %363, %360 : vector<8x1xi1>, vector<8x1xi32>
      %c1_i32_134 = arith.constant 1 : i32
      %365 = vector.broadcast %c1_i32_134 : i32 to vector<8x1xi32>
      %366 = arith.addi %360, %365 : vector<8x1xi32>
      %c15_i32_135 = arith.constant 15 : i32
      %367 = vector.broadcast %c15_i32_135 : i32 to vector<8x1xi32>
      %368 = arith.select %362, %367, %366 : vector<8x1xi1>, vector<8x1xi32>
      %369 = arith.sitofp %364 : vector<8x1xi32> to vector<8x1xf32>
      %370 = arith.subf %358, %369 : vector<8x1xf32>
      %cst_136 = arith.constant 0.000000e+00 : f32
      %371 = vector.broadcast %cst_136 : f32 to vector<8x1xf32>
      %372 = arith.select %362, %371, %370 : vector<8x1xi1>, vector<8x1xf32>
      %cst_137 = arith.constant 1.000000e+00 : f32
      %373 = vector.broadcast %cst_137 : f32 to vector<8x1xf32>
      %374 = arith.subf %373, %372 : vector<8x1xf32>
      %375 = arith.mulf %374, %356 : vector<8x1xf32>
      %376 = arith.mulf %372, %356 : vector<8x1xf32>
      %c0_138 = arith.constant 0 : index
      %c0_139 = arith.constant 0 : index
      %377 = vector.load %arg7[%c0_138, %c0_139] : memref<8x16xf32, #tpu.memory_space<vmem>>, vector<8x16xf32>
      %378 = vector.broadcast %364 : vector<8x1xi32> to vector<8x16xi32>
      %379 = arith.cmpi eq, %76, %378 : vector<8x16xi32>
      %cst_140 = arith.constant 0.000000e+00 : f32
      %380 = vector.shape_cast %375 : vector<8x1xf32> to vector<8x1xf32>
      %381 = vector.broadcast %380 : vector<8x1xf32> to vector<8x16xf32>
      %382 = vector.broadcast %cst_140 : f32 to vector<8x16xf32>
      %383 = arith.select %379, %381, %382 : vector<8x16xi1>, vector<8x16xf32>
      %384 = vector.broadcast %368 : vector<8x1xi32> to vector<8x16xi32>
      %385 = arith.cmpi eq, %76, %384 : vector<8x16xi32>
      %cst_141 = arith.constant 0.000000e+00 : f32
      %386 = vector.shape_cast %376 : vector<8x1xf32> to vector<8x1xf32>
      %387 = vector.broadcast %386 : vector<8x1xf32> to vector<8x16xf32>
      %388 = vector.broadcast %cst_141 : f32 to vector<8x16xf32>
      %389 = arith.select %385, %387, %388 : vector<8x16xi1>, vector<8x16xf32>
      %390 = arith.addf %383, %389 : vector<8x16xf32>
      %391 = arith.addf %377, %390 : vector<8x16xf32>
      %c0_142 = arith.constant 0 : index
      %c0_143 = arith.constant 0 : index
      %392 = vector.load %arg7[%c0_142, %c0_143] : memref<8x16xf32, #tpu.memory_space<vmem>>, vector<8x16xf32>
      tpu.vector_store %arg7[%c0_142, %c0_143], %391 {strides = array<i32>} : memref<8x16xf32, #tpu.memory_space<vmem>>, vector<8x16xf32>,
      %cst_144 = arith.constant 6.000000e+00 : f32
      %393 = vector.broadcast %cst_144 : f32 to vector<8x1xf32>
      %394 = arith.mulf %393, %54 : vector<8x1xf32>
      %395 = arith.addf %72, %394 : vector<8x1xf32>
      %396 = arith.addf %395, %104 : vector<8x1xf32>
      %cst_145 = arith.constant -1.000000e+00 : f32
      %397 = vector.broadcast %cst_145 : f32 to vector<8x1xf32>
      %398 = arith.cmpf oge, %396, %397 : vector<8x1xf32>
      %cst_146 = arith.constant 1.600000e+01 : f32
      %399 = vector.broadcast %cst_146 : f32 to vector<8x1xf32>
      %400 = arith.cmpf ole, %396, %399 : vector<8x1xf32>
      %401 = arith.andi %398, %400 : vector<8x1xi1>
      %402 = arith.andi %100, %401 : vector<8x1xi1>
      %403 = arith.extui %402 : vector<8x1xi1> to vector<8x1xi32>
      %404 = arith.sitofp %403 : vector<8x1xi32> to vector<8x1xf32>
      %cst_147 = arith.constant 0.000000e+00 : f32
      %405 = vector.broadcast %cst_147 : f32 to vector<8x1xf32>
      %406 = arith.maximumf %396, %405 : vector<8x1xf32>
      %407 = math.floor %406 : vector<8x1xf32>
      %408 = arith.fptosi %407 : vector<8x1xf32> to vector<8x1xi32>
      %c15_i32_148 = arith.constant 15 : i32
      %409 = vector.broadcast %c15_i32_148 : i32 to vector<8x1xi32>
      %410 = arith.cmpi sge, %408, %409 : vector<8x1xi32>
      %c15_i32_149 = arith.constant 15 : i32
      %411 = vector.broadcast %c15_i32_149 : i32 to vector<8x1xi32>
      %412 = arith.select %410, %411, %408 : vector<8x1xi1>, vector<8x1xi32>
      %c1_i32_150 = arith.constant 1 : i32
      %413 = vector.broadcast %c1_i32_150 : i32 to vector<8x1xi32>
      %414 = arith.addi %408, %413 : vector<8x1xi32>
      %c15_i32_151 = arith.constant 15 : i32
      %415 = vector.broadcast %c15_i32_151 : i32 to vector<8x1xi32>
      %416 = arith.select %410, %415, %414 : vector<8x1xi1>, vector<8x1xi32>
      %417 = arith.sitofp %412 : vector<8x1xi32> to vector<8x1xf32>
      %418 = arith.subf %406, %417 : vector<8x1xf32>
      %cst_152 = arith.constant 0.000000e+00 : f32
      %419 = vector.broadcast %cst_152 : f32 to vector<8x1xf32>
      %420 = arith.select %410, %419, %418 : vector<8x1xi1>, vector<8x1xf32>
      %cst_153 = arith.constant 1.000000e+00 : f32
      %421 = vector.broadcast %cst_153 : f32 to vector<8x1xf32>
      %422 = arith.subf %421, %420 : vector<8x1xf32>
      %423 = arith.mulf %422, %404 : vector<8x1xf32>
      %424 = arith.mulf %420, %404 : vector<8x1xf32>
      %c0_154 = arith.constant 0 : index
      %c0_155 = arith.constant 0 : index
      %425 = vector.load %arg7[%c0_154, %c0_155] : memref<8x16xf32, #tpu.memory_space<vmem>>, vector<8x16xf32>
      %426 = vector.broadcast %412 : vector<8x1xi32> to vector<8x16xi32>
      %427 = arith.cmpi eq, %76, %426 : vector<8x16xi32>
      %cst_156 = arith.constant 0.000000e+00 : f32
      %428 = vector.shape_cast %423 : vector<8x1xf32> to vector<8x1xf32>
      %429 = vector.broadcast %428 : vector<8x1xf32> to vector<8x16xf32>
      %430 = vector.broadcast %cst_156 : f32 to vector<8x16xf32>
      %431 = arith.select %427, %429, %430 : vector<8x16xi1>, vector<8x16xf32>
      %432 = vector.broadcast %416 : vector<8x1xi32> to vector<8x16xi32>
      %433 = arith.cmpi eq, %76, %432 : vector<8x16xi32>
      %cst_157 = arith.constant 0.000000e+00 : f32
      %434 = vector.shape_cast %424 : vector<8x1xf32> to vector<8x1xf32>
      %435 = vector.broadcast %434 : vector<8x1xf32> to vector<8x16xf32>
      %436 = vector.broadcast %cst_157 : f32 to vector<8x16xf32>
      %437 = arith.select %433, %435, %436 : vector<8x16xi1>, vector<8x16xf32>
      %438 = arith.addf %431, %437 : vector<8x16xf32>
      %439 = arith.addf %425, %438 : vector<8x16xf32>
      %c0_158 = arith.constant 0 : index
      %c0_159 = arith.constant 0 : index
      %440 = vector.load %arg7[%c0_158, %c0_159] : memref<8x16xf32, #tpu.memory_space<vmem>>, vector<8x16xf32>
      tpu.vector_store %arg7[%c0_158, %c0_159], %439 {strides = array<i32>} : memref<8x16xf32, #tpu.memory_space<vmem>>, vector<8x16xf32>,
      %cst_160 = arith.constant 7.000000e+00 : f32
      %441 = vector.broadcast %cst_160 : f32 to vector<8x1xf32>
      %442 = arith.mulf %441, %54 : vector<8x1xf32>
      %443 = arith.addf %72, %442 : vector<8x1xf32>
      %444 = arith.addf %443, %104 : vector<8x1xf32>
      %cst_161 = arith.constant -1.000000e+00 : f32
      %445 = vector.broadcast %cst_161 : f32 to vector<8x1xf32>
      %446 = arith.cmpf oge, %444, %445 : vector<8x1xf32>
      %cst_162 = arith.constant 1.600000e+01 : f32
      %447 = vector.broadcast %cst_162 : f32 to vector<8x1xf32>
      %448 = arith.cmpf ole, %444, %447 : vector<8x1xf32>
      %449 = arith.andi %446, %448 : vector<8x1xi1>
      %450 = arith.andi %100, %449 : vector<8x1xi1>
      %451 = arith.extui %450 : vector<8x1xi1> to vector<8x1xi32>
      %452 = arith.sitofp %451 : vector<8x1xi32> to vector<8x1xf32>
      %cst_163 = arith.constant 0.000000e+00 : f32
      %453 = vector.broadcast %cst_163 : f32 to vector<8x1xf32>
      %454 = arith.maximumf %444, %453 : vector<8x1xf32>
      %455 = math.floor %454 : vector<8x1xf32>
      %456 = arith.fptosi %455 : vector<8x1xf32> to vector<8x1xi32>
      %c15_i32_164 = arith.constant 15 : i32
      %457 = vector.broadcast %c15_i32_164 : i32 to vector<8x1xi32>
      %458 = arith.cmpi sge, %456, %457 : vector<8x1xi32>
      %c15_i32_165 = arith.constant 15 : i32
      %459 = vector.broadcast %c15_i32_165 : i32 to vector<8x1xi32>
      %460 = arith.select %458, %459, %456 : vector<8x1xi1>, vector<8x1xi32>
      %c1_i32_166 = arith.constant 1 : i32
      %461 = vector.broadcast %c1_i32_166 : i32 to vector<8x1xi32>
      %462 = arith.addi %456, %461 : vector<8x1xi32>
      %c15_i32_167 = arith.constant 15 : i32
      %463 = vector.broadcast %c15_i32_167 : i32 to vector<8x1xi32>
      %464 = arith.select %458, %463, %462 : vector<8x1xi1>, vector<8x1xi32>
      %465 = arith.sitofp %460 : vector<8x1xi32> to vector<8x1xf32>
      %466 = arith.subf %454, %465 : vector<8x1xf32>
      %cst_168 = arith.constant 0.000000e+00 : f32
      %467 = vector.broadcast %cst_168 : f32 to vector<8x1xf32>
      %468 = arith.select %458, %467, %466 : vector<8x1xi1>, vector<8x1xf32>
      %cst_169 = arith.constant 1.000000e+00 : f32
      %469 = vector.broadcast %cst_169 : f32 to vector<8x1xf32>
      %470 = arith.subf %469, %468 : vector<8x1xf32>
      %471 = arith.mulf %470, %452 : vector<8x1xf32>
      %472 = arith.mulf %468, %452 : vector<8x1xf32>
      %c0_170 = arith.constant 0 : index
      %c0_171 = arith.constant 0 : index
      %473 = vector.load %arg7[%c0_170, %c0_171] : memref<8x16xf32, #tpu.memory_space<vmem>>, vector<8x16xf32>
      %474 = vector.broadcast %460 : vector<8x1xi32> to vector<8x16xi32>
      %475 = arith.cmpi eq, %76, %474 : vector<8x16xi32>
      %cst_172 = arith.constant 0.000000e+00 : f32
      %476 = vector.shape_cast %471 : vector<8x1xf32> to vector<8x1xf32>
      %477 = vector.broadcast %476 : vector<8x1xf32> to vector<8x16xf32>
      %478 = vector.broadcast %cst_172 : f32 to vector<8x16xf32>
      %479 = arith.select %475, %477, %478 : vector<8x16xi1>, vector<8x16xf32>
      %480 = vector.broadcast %464 : vector<8x1xi32> to vector<8x16xi32>
      %481 = arith.cmpi eq, %76, %480 : vector<8x16xi32>
      %cst_173 = arith.constant 0.000000e+00 : f32
      %482 = vector.shape_cast %472 : vector<8x1xf32> to vector<8x1xf32>
      %483 = vector.broadcast %482 : vector<8x1xf32> to vector<8x16xf32>
      %484 = vector.broadcast %cst_173 : f32 to vector<8x16xf32>
      %485 = arith.select %481, %483, %484 : vector<8x16xi1>, vector<8x16xf32>
      %486 = arith.addf %479, %485 : vector<8x16xf32>
      %487 = arith.addf %473, %486 : vector<8x16xf32>
      %c0_174 = arith.constant 0 : index
      %c0_175 = arith.constant 0 : index
      %488 = vector.load %arg7[%c0_174, %c0_175] : memref<8x16xf32, #tpu.memory_space<vmem>>, vector<8x16xf32>
      tpu.vector_store %arg7[%c0_174, %c0_175], %487 {strides = array<i32>} : memref<8x16xf32, #tpu.memory_space<vmem>>, vector<8x16xf32>,
      %cst_176 = arith.constant 8.000000e+00 : f32
      %489 = vector.broadcast %cst_176 : f32 to vector<8x1xf32>
      %490 = arith.mulf %489, %54 : vector<8x1xf32>
      %491 = arith.addf %72, %490 : vector<8x1xf32>
      %492 = arith.addf %491, %104 : vector<8x1xf32>
      %cst_177 = arith.constant -1.000000e+00 : f32
      %493 = vector.broadcast %cst_177 : f32 to vector<8x1xf32>
      %494 = arith.cmpf oge, %492, %493 : vector<8x1xf32>
      %cst_178 = arith.constant 1.600000e+01 : f32
      %495 = vector.broadcast %cst_178 : f32 to vector<8x1xf32>
      %496 = arith.cmpf ole, %492, %495 : vector<8x1xf32>
      %497 = arith.andi %494, %496 : vector<8x1xi1>
      %498 = arith.andi %100, %497 : vector<8x1xi1>
      %499 = arith.extui %498 : vector<8x1xi1> to vector<8x1xi32>
      %500 = arith.sitofp %499 : vector<8x1xi32> to vector<8x1xf32>
      %cst_179 = arith.constant 0.000000e+00 : f32
      %501 = vector.broadcast %cst_179 : f32 to vector<8x1xf32>
      %502 = arith.maximumf %492, %501 : vector<8x1xf32>
      %503 = math.floor %502 : vector<8x1xf32>
      %504 = arith.fptosi %503 : vector<8x1xf32> to vector<8x1xi32>
      %c15_i32_180 = arith.constant 15 : i32
      %505 = vector.broadcast %c15_i32_180 : i32 to vector<8x1xi32>
      %506 = arith.cmpi sge, %504, %505 : vector<8x1xi32>
      %c15_i32_181 = arith.constant 15 : i32
      %507 = vector.broadcast %c15_i32_181 : i32 to vector<8x1xi32>
      %508 = arith.select %506, %507, %504 : vector<8x1xi1>, vector<8x1xi32>
      %c1_i32_182 = arith.constant 1 : i32
      %509 = vector.broadcast %c1_i32_182 : i32 to vector<8x1xi32>
      %510 = arith.addi %504, %509 : vector<8x1xi32>
      %c15_i32_183 = arith.constant 15 : i32
      %511 = vector.broadcast %c15_i32_183 : i32 to vector<8x1xi32>
      %512 = arith.select %506, %511, %510 : vector<8x1xi1>, vector<8x1xi32>
      %513 = arith.sitofp %508 : vector<8x1xi32> to vector<8x1xf32>
      %514 = arith.subf %502, %513 : vector<8x1xf32>
      %cst_184 = arith.constant 0.000000e+00 : f32
      %515 = vector.broadcast %cst_184 : f32 to vector<8x1xf32>
      %516 = arith.select %506, %515, %514 : vector<8x1xi1>, vector<8x1xf32>
      %cst_185 = arith.constant 1.000000e+00 : f32
      %517 = vector.broadcast %cst_185 : f32 to vector<8x1xf32>
      %518 = arith.subf %517, %516 : vector<8x1xf32>
      %519 = arith.mulf %518, %500 : vector<8x1xf32>
      %520 = arith.mulf %516, %500 : vector<8x1xf32>
      %c0_186 = arith.constant 0 : index
      %c0_187 = arith.constant 0 : index
      %521 = vector.load %arg7[%c0_186, %c0_187] : memref<8x16xf32, #tpu.memory_space<vmem>>, vector<8x16xf32>
      %522 = vector.broadcast %508 : vector<8x1xi32> to vector<8x16xi32>
      %523 = arith.cmpi eq, %76, %522 : vector<8x16xi32>
      %cst_188 = arith.constant 0.000000e+00 : f32
      %524 = vector.shape_cast %519 : vector<8x1xf32> to vector<8x1xf32>
      %525 = vector.broadcast %524 : vector<8x1xf32> to vector<8x16xf32>
      %526 = vector.broadcast %cst_188 : f32 to vector<8x16xf32>
      %527 = arith.select %523, %525, %526 : vector<8x16xi1>, vector<8x16xf32>
      %528 = vector.broadcast %512 : vector<8x1xi32> to vector<8x16xi32>
      %529 = arith.cmpi eq, %76, %528 : vector<8x16xi32>
      %cst_189 = arith.constant 0.000000e+00 : f32
      %530 = vector.shape_cast %520 : vector<8x1xf32> to vector<8x1xf32>
      %531 = vector.broadcast %530 : vector<8x1xf32> to vector<8x16xf32>
      %532 = vector.broadcast %cst_189 : f32 to vector<8x16xf32>
      %533 = arith.select %529, %531, %532 : vector<8x16xi1>, vector<8x16xf32>
      %534 = arith.addf %527, %533 : vector<8x16xf32>
      %535 = arith.addf %521, %534 : vector<8x16xf32>
      %c0_190 = arith.constant 0 : index
      %c0_191 = arith.constant 0 : index
      %536 = vector.load %arg7[%c0_190, %c0_191] : memref<8x16xf32, #tpu.memory_space<vmem>>, vector<8x16xf32>
      tpu.vector_store %arg7[%c0_190, %c0_191], %535 {strides = array<i32>} : memref<8x16xf32, #tpu.memory_space<vmem>>, vector<8x16xf32>,
      %cst_192 = arith.constant 9.000000e+00 : f32
      %537 = vector.broadcast %cst_192 : f32 to vector<8x1xf32>
      %538 = arith.mulf %537, %54 : vector<8x1xf32>
      %539 = arith.addf %72, %538 : vector<8x1xf32>
      %540 = arith.addf %539, %104 : vector<8x1xf32>
      %cst_193 = arith.constant -1.000000e+00 : f32
      %541 = vector.broadcast %cst_193 : f32 to vector<8x1xf32>
      %542 = arith.cmpf oge, %540, %541 : vector<8x1xf32>
      %cst_194 = arith.constant 1.600000e+01 : f32
      %543 = vector.broadcast %cst_194 : f32 to vector<8x1xf32>
      %544 = arith.cmpf ole, %540, %543 : vector<8x1xf32>
      %545 = arith.andi %542, %544 : vector<8x1xi1>
      %546 = arith.andi %100, %545 : vector<8x1xi1>
      %547 = arith.extui %546 : vector<8x1xi1> to vector<8x1xi32>
      %548 = arith.sitofp %547 : vector<8x1xi32> to vector<8x1xf32>
      %cst_195 = arith.constant 0.000000e+00 : f32
      %549 = vector.broadcast %cst_195 : f32 to vector<8x1xf32>
      %550 = arith.maximumf %540, %549 : vector<8x1xf32>
      %551 = math.floor %550 : vector<8x1xf32>
      %552 = arith.fptosi %551 : vector<8x1xf32> to vector<8x1xi32>
      %c15_i32_196 = arith.constant 15 : i32
      %553 = vector.broadcast %c15_i32_196 : i32 to vector<8x1xi32>
      %554 = arith.cmpi sge, %552, %553 : vector<8x1xi32>
      %c15_i32_197 = arith.constant 15 : i32
      %555 = vector.broadcast %c15_i32_197 : i32 to vector<8x1xi32>
      %556 = arith.select %554, %555, %552 : vector<8x1xi1>, vector<8x1xi32>
      %c1_i32_198 = arith.constant 1 : i32
      %557 = vector.broadcast %c1_i32_198 : i32 to vector<8x1xi32>
      %558 = arith.addi %552, %557 : vector<8x1xi32>
      %c15_i32_199 = arith.constant 15 : i32
      %559 = vector.broadcast %c15_i32_199 : i32 to vector<8x1xi32>
      %560 = arith.select %554, %559, %558 : vector<8x1xi1>, vector<8x1xi32>
      %561 = arith.sitofp %556 : vector<8x1xi32> to vector<8x1xf32>
      %562 = arith.subf %550, %561 : vector<8x1xf32>
      %cst_200 = arith.constant 0.000000e+00 : f32
      %563 = vector.broadcast %cst_200 : f32 to vector<8x1xf32>
      %564 = arith.select %554, %563, %562 : vector<8x1xi1>, vector<8x1xf32>
      %cst_201 = arith.constant 1.000000e+00 : f32
      %565 = vector.broadcast %cst_201 : f32 to vector<8x1xf32>
      %566 = arith.subf %565, %564 : vector<8x1xf32>
      %567 = arith.mulf %566, %548 : vector<8x1xf32>
      %568 = arith.mulf %564, %548 : vector<8x1xf32>
      %c0_202 = arith.constant 0 : index
      %c0_203 = arith.constant 0 : index
      %569 = vector.load %arg7[%c0_202, %c0_203] : memref<8x16xf32, #tpu.memory_space<vmem>>, vector<8x16xf32>
      %570 = vector.broadcast %556 : vector<8x1xi32> to vector<8x16xi32>
      %571 = arith.cmpi eq, %76, %570 : vector<8x16xi32>
      %cst_204 = arith.constant 0.000000e+00 : f32
      %572 = vector.shape_cast %567 : vector<8x1xf32> to vector<8x1xf32>
      %573 = vector.broadcast %572 : vector<8x1xf32> to vector<8x16xf32>
      %574 = vector.broadcast %cst_204 : f32 to vector<8x16xf32>
      %575 = arith.select %571, %573, %574 : vector<8x16xi1>, vector<8x16xf32>
      %576 = vector.broadcast %560 : vector<8x1xi32> to vector<8x16xi32>
      %577 = arith.cmpi eq, %76, %576 : vector<8x16xi32>
      %cst_205 = arith.constant 0.000000e+00 : f32
      %578 = vector.shape_cast %568 : vector<8x1xf32> to vector<8x1xf32>
      %579 = vector.broadcast %578 : vector<8x1xf32> to vector<8x16xf32>
      %580 = vector.broadcast %cst_205 : f32 to vector<8x16xf32>
      %581 = arith.select %577, %579, %580 : vector<8x16xi1>, vector<8x16xf32>
      %582 = arith.addf %575, %581 : vector<8x16xf32>
      %583 = arith.addf %569, %582 : vector<8x16xf32>
      %c0_206 = arith.constant 0 : index
      %c0_207 = arith.constant 0 : index
      %584 = vector.load %arg7[%c0_206, %c0_207] : memref<8x16xf32, #tpu.memory_space<vmem>>, vector<8x16xf32>
      tpu.vector_store %arg7[%c0_206, %c0_207], %583 {strides = array<i32>} : memref<8x16xf32, #tpu.memory_space<vmem>>, vector<8x16xf32>,
    }
    %c0_35 = arith.constant 0 : index
    %c0_36 = arith.constant 0 : index
    %85 = vector.load %arg6[%c0_35, %c0_36] : memref<8x16xf32, #tpu.memory_space<vmem>>, vector<8x16xf32>
    %c0_37 = arith.constant 0 : index
    %c0_38 = arith.constant 0 : index
    %c0_39 = arith.constant 0 : index
    %86 = vector.load %arg4[%c0_37, %c0_38, %c0_39] : memref<1x16x16xf32, #tpu.memory_space<vmem>>, vector<1x16x16xf32>
    %87 = vector.shape_cast %86 : vector<1x16x16xf32> to vector<16x16xf32>
    %cst_40 = arith.constant dense<0.000000e+00> : vector<8x16xf32>
    %88 = tpu.matmul %85, %87, %cst_40 {dimension_numbers = #tpu.dot_dimension_numbers<[1], [0], [0], [1], [0, 0, 1, 1], [], []>} : vector<8x16xf32>, vector<16x16xf32>, vector<8x16xf32> -> vector<8x16xf32>
    %c0_41 = arith.constant 0 : index
    %c0_42 = arith.constant 0 : index
    %89 = vector.load %arg7[%c0_41, %c0_42] : memref<8x16xf32, #tpu.memory_space<vmem>>, vector<8x16xf32>
    %90 = arith.mulf %88, %89 : vector<8x16xf32>
    %cst_43 = arith.constant dense<0.000000e+00> : vector<8xf32>
    %91 = vector.multi_reduction <add>, %90, %cst_43 [1] : vector<8x16xf32> to vector<8xf32>
    %92 = vector.shape_cast %91 : vector<8xf32> to vector<8x1xf32>
    %cst_44 = arith.constant 0.00333333341 : f32
    %93 = vector.broadcast %cst_44 : f32 to vector<8x1xf32>
    %94 = arith.divf %93, %66 : vector<8x1xf32>
    %95 = arith.mulf %92, %94 : vector<8x1xf32>
    %c0_45 = arith.constant 0 : index
    %c0_46 = arith.constant 0 : index
    %c0_47 = arith.constant 0 : index
    %96 = vector.load %arg5[%c0_45, %c0_46, %c0_47] : memref<1x8x1xf32, #tpu.memory_space<vmem>>, vector<1x8x1xf32>
    %97 = vector.shape_cast %96 : vector<1x8x1xf32> to vector<8x1xf32>
    %98 = vector.shape_cast %95 : vector<8x1xf32> to vector<1x8x1xf32>
    tpu.vector_store %arg5[%c0_45, %c0_46, %c0_47], %98 {strides = array<i32>} : memref<1x8x1xf32, #tpu.memory_space<vmem>>, vector<1x8x1xf32>,
    return
  }
  func.func @transform_0(%arg0: i32, %arg1: i32) -> i32 {
    %c0_i32 = arith.constant 0 : i32
    %c0_i32_0 = arith.constant 0 : i32
    return %c0_i32 : i32
  }
  func.func @transform_1(%arg0: i32, %arg1: i32) -> (i32, i32, i32) {
    %c0_i32 = arith.constant 0 : i32
    %c0_i32_0 = arith.constant 0 : i32
    return %arg0, %arg1, %c0_i32 : i32, i32, i32
  }
  func.func @transform_2(%arg0: i32, %arg1: i32) -> (i32, i32, i32) {
    %c0_i32 = arith.constant 0 : i32
    %c0_i32_0 = arith.constant 0 : i32
    %c0_i32_1 = arith.constant 0 : i32
    return %arg0, %c0_i32, %c0_i32_0 : i32, i32, i32
  }
  func.func @transform_3(%arg0: i32, %arg1: i32) -> (i32, i32, i32) {
    %c0_i32 = arith.constant 0 : i32
    %c0_i32_0 = arith.constant 0 : i32
    return %arg0, %arg1, %c0_i32 : i32, i32, i32
  }
}

</mosaic_0001>

<llo_original>
// kernel: tpu_custom_call.1
$region0: #{tpu_custom_call.1}
  #allocation0 [shape = 'u32[]', space=smem, size = 0x4, offset = 0x4, fixed_abs, tag = 'smem constant byte address 0x4 - core index']
  #allocation1 [shape = 'u32[144,128]{1,0:T(1,128)}', space=vmem, size = 0x12000, scoped, tag = 'internal scratch']
  #allocation2 [shape = 'f32[8,16]{1,0:T(8,128)}', space=vmem, size = 0x1000, scoped, tag = 'scratch operand']
  #allocation3 [shape = 'f32[8,16]{1,0:T(8,128)}', space=vmem, size = 0x1000, scoped, tag = 'scratch operand']
  %s0 = inlined_call_operand.vmem [shape: s32[4], index: 0, kind: input, shape index: {}]
  %s1 = inlined_call_operand.vmem [shape: f32[2,8,4], index: 1, kind: input, shape index: {}]
  %s2 = inlined_call_operand.hbm [shape: f32[2,16,16], index: 2, kind: input, shape index: {}]
  %s3 = inlined_call_operand.vmem [shape: f32[2,8,1], index: 3, kind: output, shape index: {}]
  %s4 = sld [smem:[#allocation0]]
  $region67: #{tpu_custom_call.1} parent=0
    _
  %s6 = ssub.s32 1, %s4
  %s7 = scalar_select 0, %s6, %s4
  $region1: #{tpu_custom_call.1} parent=0
    #allocation4 [shape = 'u8[512]{0}', space=smem, size = 0x200, scoped, tag = 'input window, operand 0, single buffered']
    #allocation5 [shape = 's32[2]{0}', space=sflag, size = 0x8, scoped, tag = 'scoped memory for tpu_custom_call.1']
    #allocation6 [shape = 's32[2]{0}', space=sflag, size = 0x8, scoped, tag = 'scoped memory for tpu_custom_call.1']
    #allocation7 [shape = 'u8[16384]{0}', space=vmem, size = 0x4000, scoped, tag = 'input window, operand 2']
    %8 = vsyncpa [#allocation6], 0
    %9 = vsyncpa [#allocation5], 0
    %s10 = scalar_lea.sflag [#allocation5], 1
    %11 = vsyncpa %s10, 0
    loop: start=0, step=1, limit=4
    $region2: #{tpu_custom_call.1} parent=1 // loop_pre_header
      _
    $region3: #{tpu_custom_call.1} parent=1 // loop_header
      %s13 = sphi 0, %s17
      %p14 = scmp.ge.s32.totalorder %s13, 4
      %s20 = sphi 0, %s32
      %s21 = sphi 0, %s28
      %s22 = sphi 0, %s20
      %s23 = sphi 0, %s21
      %s24 = sphi 0, %s22
      %s25 = sphi 0, %s23
      %s33 = sphi 0, %s33
      %s35 = sphi 0, %s33
      %s36 = sphi 0, %s35
      %s50 = sphi 0, %s36
      %s58 = sphi 0, %s60
      %s61 = sphi 0, %s58
      %s62 = sphi 0, %s61
      %s78 = sphi 0, %s62
      %s84 = sphi 0, %s86
      %s87 = sphi 0, %s84
      %s88 = sphi 0, %s87
      %s104 = sphi 0, %s88
      %s112 = sphi 0, %s114
      %s115 = sphi 0, %s112
      %s116 = sphi 0, %s115
      %s132 = sphi 0, %s116
    $region4: #{tpu_custom_call.1} parent=1 // loop_header_branch
      %16 = sbr.rel (%p14) target = $region8
    $region5: #{tpu_custom_call.1} parent=1 // loop_body
      %s18 = ssub.s32 %s13, 1
      %s19 = ssub.s32 %s13, 2
      %s26 = sadd.s32 1, %s21
      %p27 = scmp.ge.s32.totalorder %s26, 1
      %s28 = scalar_select %p27, 0, %s26
      %s29 = sadd.s32 1, %s20
      %s30 = scalar_select %p27, %s29, %s20
      %p31 = scmp.ge.s32.totalorder %s30, 2
      %s32 = scalar_select %p31, 0, %s30
      %s34 = sadd.s32 %s33, 1
      %p37 = scmp.eq.s32.totalorder %s13, 1
      %p38 = scmp.ne.s32.totalorder %s33, %s35
      %p39 = scmp.eq.s32.totalorder %s13, 0
      %p40 = por %p38, %p39
      %p41 = scmp.ne.s32.totalorder %s33, %s35
      %p42 = scmp.eq.s32.totalorder %s18, 1
      %p43 = por %p41, %p42
      %p44 = scmp.ne.s32.totalorder %s35, %s36
      %p45 = scmp.eq.s32.totalorder %s18, 0
      %p46 = por %p44, %p45
      %p47 = scmp.ne.s32.totalorder %s35, %s36
      %p48 = scmp.eq.s32.totalorder %s19, 1
      %p49 = por %p47, %p48
      %p51 = scmp.ne.s32.totalorder %s36, %s50
      %p52 = scmp.eq.s32.totalorder %s19, 0
      %p53 = por %p51, %p52
      %s54 = ssub.s32 %s20, %s32
      %s55 = ssub.s32 %s21, %s28
      %s56 = sor.u32 %s54, %s55
      %p57 = scmp.eq.s32.totalorder %s56, 0
      %s59 = sadd.s32 %s58, 1
      %s60 = scalar_select %p57, %s58, %s59
      %p63 = pneg %p57
      %p64 = scmp.eq.s32.totalorder %s13, 1
      %p65 = por %p63, %p64
      %p66 = scmp.ne.s32.totalorder %s58, %s61
      %p67 = scmp.eq.s32.totalorder %s13, 0
      %p68 = por %p66, %p67
      %p69 = scmp.ne.s32.totalorder %s58, %s61
      %p70 = scmp.eq.s32.totalorder %s18, 1
      %p71 = por %p69, %p70
      %p72 = scmp.ne.s32.totalorder %s61, %s62
      %p73 = scmp.eq.s32.totalorder %s18, 0
      %p74 = por %p72, %p73
      %p75 = scmp.ne.s32.totalorder %s61, %s62
      %p76 = scmp.eq.s32.totalorder %s19, 1
      %p77 = por %p75, %p76
      %p79 = scmp.ne.s32.totalorder %s62, %s78
      %p80 = scmp.eq.s32.totalorder %s19, 0
      %p81 = por %p79, %p80
      %s82 = ssub.s32 %s20, %s32
      %p83 = scmp.eq.s32.totalorder %s82, 0
      %s85 = sadd.s32 %s84, 1
      %s86 = scalar_select %p83, %s84, %s85
      %p89 = pneg %p83
      %p90 = scmp.eq.s32.totalorder %s13, 1
      %p91 = por %p89, %p90
      %p92 = scmp.ne.s32.totalorder %s84, %s87
      %p93 = scmp.eq.s32.totalorder %s13, 0
      %p94 = por %p92, %p93
      %p95 = scmp.ne.s32.totalorder %s84, %s87
      %p96 = scmp.eq.s32.totalorder %s18, 1
      %p97 = por %p95, %p96
      %p98 = scmp.ne.s32.totalorder %s87, %s88
      %p99 = scmp.eq.s32.totalorder %s18, 0
      %p100 = por %p98, %p99
      %p101 = scmp.ne.s32.totalorder %s87, %s88
      %p102 = scmp.eq.s32.totalorder %s19, 1
      %p103 = por %p101, %p102
      %p105 = scmp.ne.s32.totalorder %s88, %s104
      %p106 = scmp.eq.s32.totalorder %s19, 0
      %p107 = por %p105, %p106
      %s108 = ssub.s32 %s20, %s32
      %s109 = ssub.s32 %s21, %s28
      %s110 = sor.u32 %s108, %s109
      %p111 = scmp.eq.s32.totalorder %s110, 0
      %s113 = sadd.s32 %s112, 1
      %s114 = scalar_select %p111, %s112, %s113
      %p117 = pneg %p111
      %p118 = scmp.eq.s32.totalorder %s13, 1
      %p119 = por %p117, %p118
      %p120 = scmp.ne.s32.totalorder %s112, %s115
      %p121 = scmp.eq.s32.totalorder %s13, 0
      %p122 = por %p120, %p121
      %p123 = scmp.ne.s32.totalorder %s112, %s115
      %p124 = scmp.eq.s32.totalorder %s18, 1
      %p125 = por %p123, %p124
      %p126 = scmp.ne.s32.totalorder %s115, %s116
      %p127 = scmp.eq.s32.totalorder %s18, 0
      %p128 = por %p126, %p127
      %p129 = scmp.ne.s32.totalorder %s115, %s116
      %p130 = scmp.eq.s32.totalorder %s19, 1
      %p131 = por %p129, %p130
      %p133 = scmp.ne.s32.totalorder %s116, %s132
      %p134 = scmp.eq.s32.totalorder %s19, 0
      %p135 = por %p133, %p134
      %p136 = scmp.le.s32.totalorder 1, %s13
      %p137 = scmp.lt.s32.totalorder %s13, 3
      %p138 = pnand %p136, %p137
      %p139 = pneg %p138
      // Predicated region
      $region9: #{tpu_custom_call.1} parent=5 // pred_check
        _
      $region10: #{tpu_custom_call.1} parent=5 // pred_check_branch
        %141 = sbr.rel (%p138) target = $region12
      $region11: #{tpu_custom_call.1} parent=5 // pred_region
        %s142 = ssub.s32 %s13, 1
        // Predicated region
        $region13: #{tpu_custom_call.1} parent=11 // pred_check
          %p143 = pneg %p46
        $region14: #{tpu_custom_call.1} parent=11 // pred_check_branch
          %145 = sbr.rel (%p143) target = $region16
        $region15: #{tpu_custom_call.1} parent=11 // pred_region
          %s147 = ssub.s32 16, 16
          %148 = vsyncadd [#allocation6], %s147
          %s150 = sshll.u32 %s0, 4
          %s151 = int_to_ptr.vmem [resolvable:$true] %s150
          %153 = dma.vmem_to_smem %s151, 16, [#allocation4], [#allocation6]
        $region16: #{tpu_custom_call.1} parent=11 // pred_fallthru
          _
      $region12: #{tpu_custom_call.1} parent=5 // pred_fallthru
        _
      %p154 = scmp.lt.s32.totalorder %s13, 2
      // Predicated region
      $region17: #{tpu_custom_call.1} parent=5 // pred_check
        %p155 = pneg %p154
      $region18: #{tpu_custom_call.1} parent=5 // pred_check_branch
        %157 = sbr.rel (%p155) target = $region20
      $region19: #{tpu_custom_call.1} parent=5 // pred_region
        // Predicated region
        $region21: #{tpu_custom_call.1} parent=19 // pred_check
          %p158 = pneg %p68
        $region22: #{tpu_custom_call.1} parent=19 // pred_check_branch
          %160 = sbr.rel (%p158) target = $region24
        $region23: #{tpu_custom_call.1} parent=19 // pred_region
          %p161 = scmp.lt.s32.totalorder %s20, 1
          %s162 = scalar_select %p161, %s20, 1
          %p163 = scmp.lt.s32.totalorder %s21, 0
          %s164 = scalar_select %p163, %s21, 0
          %s165 = sadd.s32 %s164, %s162
          %s166 = smul.addr %s165, 8
          %s167 = scalar_lea.vmem %s1, %s166
        $region24: #{tpu_custom_call.1} parent=19 // pred_fallthru
          _
        // Predicated region
        $region25: #{tpu_custom_call.1} parent=19 // pred_check
          %p168 = pneg %p94
        $region26: #{tpu_custom_call.1} parent=19 // pred_check_branch
          %170 = sbr.rel (%p168) target = $region28
        $region27: #{tpu_custom_call.1} parent=19 // pred_region
          %s171 = sand.u32 %s84, 1
          %s172 = scalar_lea.sflag [#allocation5], %s171
          %s173 = sand.u32 %s84, 1
          %s174 = smul.addr %s173, 16
          %s175 = scalar_lea.vmem [#allocation7], %s174
          %s177 = ssub.s32 256, 256
          %178 = vsyncadd %s172, %s177
          %s179 = smul.addr %s20, 2
          %s180 = smul.addr %s179, 128
          %s181 = scalar_lea.hbm %s2, %s180
          %s182 = sshll.u32 %s175, 4
          %s183 = int_to_ptr.vmem [resolvable:$true] %s182
          %188 = dma.hbm_to_vmem [thread:$0]  %s181, 256, %s183, %s172, 128, 128, 8
        $region28: #{tpu_custom_call.1} parent=19 // pred_fallthru
          _
      $region20: #{tpu_custom_call.1} parent=5 // pred_fallthru
        _
      %p189 = scmp.le.s32.totalorder 1, %s13
      %p190 = scmp.lt.s32.totalorder %s13, 3
      %p191 = pnand %p189, %p190
      %p192 = pneg %p191
      // Predicated region
      $region29: #{tpu_custom_call.1} parent=5 // pred_check
        _
      $region30: #{tpu_custom_call.1} parent=5 // pred_check_branch
        %194 = sbr.rel (%p191) target = $region32
      $region31: #{tpu_custom_call.1} parent=5 // pred_region
        %s195 = ssub.s32 %s13, 1
        // Predicated region
        $region33: #{tpu_custom_call.1} parent=31 // pred_check
          %p196 = pneg %p46
        $region34: #{tpu_custom_call.1} parent=31 // pred_check_branch
          %198 = sbr.rel (%p196) target = $region36
        $region35: #{tpu_custom_call.1} parent=31 // pred_region
          %199 = dma.done [#allocation6], 16
        $region36: #{tpu_custom_call.1} parent=31 // pred_fallthru
          _
        %s200 = sand.u32 %s87, 1
        %s201 = scalar_lea.sflag [#allocation5], %s200
        %s202 = sand.u32 %s87, 1
        %s203 = smul.addr %s202, 16
        %s204 = scalar_lea.vmem [#allocation7], %s203
        // Predicated region
        $region37: #{tpu_custom_call.1} parent=31 // pred_check
          %p205 = pneg %p100
        $region38: #{tpu_custom_call.1} parent=31 // pred_check_branch
          %207 = sbr.rel (%p205) target = $region40
        $region39: #{tpu_custom_call.1} parent=31 // pred_region
          %208 = dma.done %s201, 256
        $region40: #{tpu_custom_call.1} parent=31 // pred_fallthru
          _
        %209 = sfence
        %p210 = pneg %p46
        %p211 = pneg %p43
        %p212 = scmp.lt.s32.totalorder %s22, 1
        %s213 = scalar_select %p212, %s22, 1
        %p214 = scmp.lt.s32.totalorder %s23, 0
        %s215 = scalar_select %p214, %s23, 0
        %s216 = sadd.s32 %s215, %s213
        %s217 = smul.addr %s216, 8
        %s218 = scalar_lea.vmem %s1, %s217
        %p219 = pneg %p74
        %p220 = pneg %p71
        %s221 = sand.u32 %s87, 1
        %s222 = scalar_lea.sflag [#allocation5], %s221
        %s223 = sand.u32 %s87, 1
        %s224 = smul.addr %s223, 16
        %s225 = scalar_lea.vmem [#allocation7], %s224
        %p226 = pneg %p100
        %p227 = pneg %p97
        %p228 = pneg %p128
        %p229 = pneg %p125
        %p230 = scmp.lt.s32.totalorder %s22, 1
        %s231 = scalar_select %p230, %s22, 1
        %p232 = scmp.lt.s32.totalorder %s23, 0
        %s233 = scalar_select %p232, %s23, 0
        %s234 = sadd.s32 %s233, %s231
        %s235 = smul.addr %s234, 8
        %s236 = scalar_lea.vmem %s3, %s235
        %p237 = scmp.lt.s32.totalorder %s22, 1
        %s238 = scalar_select %p237, %s22, 1
        %p239 = scmp.lt.s32.totalorder %s23, 0
        %s240 = scalar_select %p239, %s23, 0
        %s241 = sadd.s32 %s240, %s238
        %s242 = smul.addr %s241, 8
        %s243 = scalar_lea.vmem %s1, %s242
        %p244 = scmp.lt.s32.totalorder %s22, 1
        %s245 = scalar_select %p244, %s22, 1
        %p246 = scmp.lt.s32.totalorder %s23, 0
        %s247 = scalar_select %p246, %s23, 0
        %s248 = sadd.s32 %s247, %s245
        %s249 = smul.addr %s248, 8
        %s250 = scalar_lea.vmem %s3, %s249
        %s251 = sadd.s32 %s22, %s23
        %s252 = smul.u32 %s251, 2
        %s253 = sld [smem:[#allocation4 + %s252]]
        %s254 = sadd.s32 %s252, 1
        %s255 = sld [smem:[#allocation4 + %s254]]
        %v256 = vld [vmem:[%s243] sm:$0xff]
        %258 = vrot.lane.b32.xlu0 %v256, 126
        %v259 = vpop.permute.xlu0 %258
        %v261 = vadd.f32 %v256, %v259
        %v262 = vmul.f32 %v261, 0.5
        %263 = vrot.lane.b32.xlu0 %v256, 2
        %v264 = vpop.permute.xlu0 %263
        %v266 = vsub.f32 %v256, %v264
        %v267 = vmax.f32 %v266, 10.0
        %v268 = vmin.f32 %v267, 789.0
        %v269 = vmul.f32 %v268, 0.5
        %v270 = vadd.f32 %v269, 10.0
        %v271 = vsub.f32 799.0, %v269
        %v272 = vsub.f32 %v271, 10.0
        %274 = vrot.lane.b32.xlu0 %v262, 2
        %v275 = vpop.permute.xlu0 %274
        %v277 = vmax.f32 %v270, %v275
        %v278 = vmin.f32 %v272, %v277
        %v279 = vmul.f32 %v268, 0.1
        %v280 = vceil.f32 %v279
        %v281 = vcvt.f32.s32.to.zero.pseudo %v280
        %282 = vrot.lane.b32.xlu0 %v281, 1
        %v283 = vpop.permute.xlu0 %282
        %v284 = vmul.u32 %v281, %v283
        %vm285 = vcmp.gt.s32.totalorder %v284, 1
        %v286 = vsel %vm285, %v284, 1
        %v287 = vcvt.s32.f32 %v286
        %v288 = vsub.f32 %v278, 0.5
        %v289 = vsub.f32 %v288, %v269
        %v290 = vrcp.pop %v280
        %v291 = vmul.f32 %v279, %v290
        %v292 = vlaneseq
        %v293 = vand.u32 %v292, 127
        %vm294 = vcmask 130048
        %295 = vst.msk [vmem:[#allocation2] sm:$0xff] %vm294, 0.0
        %296 = vst.msk [vmem:[#allocation3] sm:$0xff] %vm294, 0.0
        // While loop
        $region41: #{tpu_custom_call.1} parent=31 // loop_pre_header
          _
        $region42: #{tpu_custom_call.1} parent=31 // loop_header
          %s298 = sphi 0, %s300
          %p299 = scmp.ge.s32.totalorder %s298, %s253
        $region43: #{tpu_custom_call.1} parent=31 // loop_header_branch
          %302 = sbr.rel (%p299) target = $region47
        $region44: #{tpu_custom_call.1} parent=31 // loop_body
          %v303 = vstv %s298
          %vm304 = vcmp.lt.s32.totalorder %v303, %v281
          %s305 = scvt.s32.f32 %s298
          %s306 = sadd.f32 %s305, 0.5
          %v307 = vstv %s306
          %v308 = vmul.f32 %v307, %v291
          %v309 = vmul.f32 %v279, 0.0
          %v310 = vadd.f32 %v289, %v309
          %v311 = vadd.f32 %v310, %v308
          %vm312 = vcmp.ge.f32.partialorder %v311, -1.0
          %vm313 = vcmp.le.f32.partialorder %v311, 16.0
          %vm314 = vmand %vm312, %vm313
          %vm315 = vmand %vm304, %vm314
          %v316 = vsel %vm315, 1, 0
          %v317 = vcvt.s32.f32 %v316
          %v318 = vmax.f32 %v311, 0.0
          %v319 = vfloor.f32 %v318
          %v320 = vcvt.f32.s32.to.zero.pseudo %v319
          %vm321 = vcmp.ge.s32.totalorder %v320, 15
          %v322 = vsel %vm321, 15, %v320
          %v323 = vadd.s32 %v320, 1
          %v324 = vsel %vm321, 15, %v323
          %v325 = vcvt.s32.f32 %v322
          %v326 = vsub.f32 %v318, %v325
          %v327 = vsel %vm321, 0.0, %v326
          %v328 = vsub.f32 1.0, %v327
          %v329 = vmul.f32 %v328, %v317
          %v330 = vmul.f32 %v327, %v317
          %v331 = vld [vmem:[#allocation2] sm:$0xff]
          %332 = vset.pattern.permute.xlu0 3
          %333 = vperm.xlu0 %332, %v322
          %v334 = vpop.permute.xlu0 %333
          %vm335 = vcmp.eq.s32.totalorder %v293, %v334
          %337 = vset.pattern.permute.xlu0 3
          %338 = vperm.xlu0 %337, %v329
          %v339 = vpop.permute.xlu0 %338
          %v341 = vsel %vm335, %v339, 0.0
          %342 = vset.pattern.permute.xlu0 3
          %343 = vperm.xlu0 %342, %v324
          %v344 = vpop.permute.xlu0 %343
          %vm345 = vcmp.eq.s32.totalorder %v293, %v344
          %347 = vset.pattern.permute.xlu0 3
          %348 = vperm.xlu0 %347, %v330
          %v349 = vpop.permute.xlu0 %348
          %v351 = vsel %vm345, %v349, 0.0
          %v352 = vadd.f32 %v341, %v351
          %v353 = vadd.f32 %v331, %v352
          %354 = vst.msk [vmem:[#allocation2] sm:$0xff] %vm294, %v353
          %v355 = vadd.f32 %v289, %v279
          %v356 = vadd.f32 %v355, %v308
          %vm357 = vcmp.ge.f32.partialorder %v356, -1.0
          %vm358 = vcmp.le.f32.partialorder %v356, 16.0
          %vm359 = vmand %vm357, %vm358
          %vm360 = vmand %vm304, %vm359
          %v361 = vsel %vm360, 1, 0
          %v362 = vcvt.s32.f32 %v361
          %v363 = vmax.f32 %v356, 0.0
          %v364 = vfloor.f32 %v363
          %v365 = vcvt.f32.s32.to.zero.pseudo %v364
          %vm366 = vcmp.ge.s32.totalorder %v365, 15
          %v367 = vsel %vm366, 15, %v365
          %v368 = vadd.s32 %v365, 1
          %v369 = vsel %vm366, 15, %v368
          %v370 = vcvt.s32.f32 %v367
          %v371 = vsub.f32 %v363, %v370
          %v372 = vsel %vm366, 0.0, %v371
          %v373 = vsub.f32 1.0, %v372
          %v374 = vmul.f32 %v373, %v362
          %v375 = vmul.f32 %v372, %v362
          %v376 = vld [vmem:[#allocation2] sm:$0xff]
          %377 = vset.pattern.permute.xlu0 3
          %378 = vperm.xlu0 %377, %v367
          %v379 = vpop.permute.xlu0 %378
          %vm380 = vcmp.eq.s32.totalorder %v293, %v379
          %382 = vset.pattern.permute.xlu0 3
          %383 = vperm.xlu0 %382, %v374
          %v384 = vpop.permute.xlu0 %383
          %v386 = vsel %vm380, %v384, 0.0
          %387 = vset.pattern.permute.xlu0 3
          %388 = vperm.xlu0 %387, %v369
          %v389 = vpop.permute.xlu0 %388
          %vm390 = vcmp.eq.s32.totalorder %v293, %v389
          %392 = vset.pattern.permute.xlu0 3
          %393 = vperm.xlu0 %392, %v375
          %v394 = vpop.permute.xlu0 %393
          %v396 = vsel %vm390, %v394, 0.0
          %v397 = vadd.f32 %v386, %v396
          %v398 = vadd.f32 %v376, %v397
          %399 = vst.msk [vmem:[#allocation2] sm:$0xff] %vm294, %v398
          %v400 = vmul.f32 %v279, 2.0
          %v401 = vadd.f32 %v289, %v400
          %v402 = vadd.f32 %v401, %v308
          %vm403 = vcmp.ge.f32.partialorder %v402, -1.0
          %vm404 = vcmp.le.f32.partialorder %v402, 16.0
          %vm405 = vmand %vm403, %vm404
          %vm406 = vmand %vm304, %vm405
          %v407 = vsel %vm406, 1, 0
          %v408 = vcvt.s32.f32 %v407
          %v409 = vmax.f32 %v402, 0.0
          %v410 = vfloor.f32 %v409
          %v411 = vcvt.f32.s32.to.zero.pseudo %v410
          %vm412 = vcmp.ge.s32.totalorder %v411, 15
          %v413 = vsel %vm412, 15, %v411
          %v414 = vadd.s32 %v411, 1
          %v415 = vsel %vm412, 15, %v414
          %v416 = vcvt.s32.f32 %v413
          %v417 = vsub.f32 %v409, %v416
          %v418 = vsel %vm412, 0.0, %v417
          %v419 = vsub.f32 1.0, %v418
          %v420 = vmul.f32 %v419, %v408
          %v421 = vmul.f32 %v418, %v408
          %v422 = vld [vmem:[#allocation2] sm:$0xff]
          %423 = vset.pattern.permute.xlu0 3
          %424 = vperm.xlu0 %423, %v413
          %v425 = vpop.permute.xlu0 %424
          %vm426 = vcmp.eq.s32.totalorder %v293, %v425
          %428 = vset.pattern.permute.xlu0 3
          %429 = vperm.xlu0 %428, %v420
          %v430 = vpop.permute.xlu0 %429
          %v432 = vsel %vm426, %v430, 0.0
          %433 = vset.pattern.permute.xlu0 3
          %434 = vperm.xlu0 %433, %v415
          %v435 = vpop.permute.xlu0 %434
          %vm436 = vcmp.eq.s32.totalorder %v293, %v435
          %438 = vset.pattern.permute.xlu0 3
          %439 = vperm.xlu0 %438, %v421
          %v440 = vpop.permute.xlu0 %439
          %v442 = vsel %vm436, %v440, 0.0
          %v443 = vadd.f32 %v432, %v442
          %v444 = vadd.f32 %v422, %v443
          %445 = vst.msk [vmem:[#allocation2] sm:$0xff] %vm294, %v444
          %v446 = vmul.f32 %v279, 3.0
          %v447 = vadd.f32 %v289, %v446
          %v448 = vadd.f32 %v447, %v308
          %vm449 = vcmp.ge.f32.partialorder %v448, -1.0
          %vm450 = vcmp.le.f32.partialorder %v448, 16.0
          %vm451 = vmand %vm449, %vm450
          %vm452 = vmand %vm304, %vm451
          %v453 = vsel %vm452, 1, 0
          %v454 = vcvt.s32.f32 %v453
          %v455 = vmax.f32 %v448, 0.0
          %v456 = vfloor.f32 %v455
          %v457 = vcvt.f32.s32.to.zero.pseudo %v456
          %vm458 = vcmp.ge.s32.totalorder %v457, 15
          %v459 = vsel %vm458, 15, %v457
          %v460 = vadd.s32 %v457, 1
          %v461 = vsel %vm458, 15, %v460
          %v462 = vcvt.s32.f32 %v459
          %v463 = vsub.f32 %v455, %v462
          %v464 = vsel %vm458, 0.0, %v463
          %v465 = vsub.f32 1.0, %v464
          %v466 = vmul.f32 %v465, %v454
          %v467 = vmul.f32 %v464, %v454
          %v468 = vld [vmem:[#allocation2] sm:$0xff]
          %469 = vset.pattern.permute.xlu0 3
          %470 = vperm.xlu0 %469, %v459
          %v471 = vpop.permute.xlu0 %470
          %vm472 = vcmp.eq.s32.totalorder %v293, %v471
          %474 = vset.pattern.permute.xlu0 3
          %475 = vperm.xlu0 %474, %v466
          %v476 = vpop.permute.xlu0 %475
          %v478 = vsel %vm472, %v476, 0.0
          %479 = vset.pattern.permute.xlu0 3
          %480 = vperm.xlu0 %479, %v461
          %v481 = vpop.permute.xlu0 %480
          %vm482 = vcmp.eq.s32.totalorder %v293, %v481
          %484 = vset.pattern.permute.xlu0 3
          %485 = vperm.xlu0 %484, %v467
          %v486 = vpop.permute.xlu0 %485
          %v488 = vsel %vm482, %v486, 0.0
          %v489 = vadd.f32 %v478, %v488
          %v490 = vadd.f32 %v468, %v489
          %491 = vst.msk [vmem:[#allocation2] sm:$0xff] %vm294, %v490
          %v492 = vmul.f32 %v279, 4.0
          %v493 = vadd.f32 %v289, %v492
          %v494 = vadd.f32 %v493, %v308
          %vm495 = vcmp.ge.f32.partialorder %v494, -1.0
          %vm496 = vcmp.le.f32.partialorder %v494, 16.0
          %vm497 = vmand %vm495, %vm496
          %vm498 = vmand %vm304, %vm497
          %v499 = vsel %vm498, 1, 0
          %v500 = vcvt.s32.f32 %v499
          %v501 = vmax.f32 %v494, 0.0
          %v502 = vfloor.f32 %v501
          %v503 = vcvt.f32.s32.to.zero.pseudo %v502
          %vm504 = vcmp.ge.s32.totalorder %v503, 15
          %v505 = vsel %vm504, 15, %v503
          %v506 = vadd.s32 %v503, 1
          %v507 = vsel %vm504, 15, %v506
          %v508 = vcvt.s32.f32 %v505
          %v509 = vsub.f32 %v501, %v508
          %v510 = vsel %vm504, 0.0, %v509
          %v511 = vsub.f32 1.0, %v510
          %v512 = vmul.f32 %v511, %v500
          %v513 = vmul.f32 %v510, %v500
          %v514 = vld [vmem:[#allocation2] sm:$0xff]
          %515 = vset.pattern.permute.xlu0 3
          %516 = vperm.xlu0 %515, %v505
          %v517 = vpop.permute.xlu0 %516
          %vm518 = vcmp.eq.s32.totalorder %v293, %v517
          %520 = vset.pattern.permute.xlu0 3
          %521 = vperm.xlu0 %520, %v512
          %v522 = vpop.permute.xlu0 %521
          %v524 = vsel %vm518, %v522, 0.0
          %525 = vset.pattern.permute.xlu0 3
          %526 = vperm.xlu0 %525, %v507
          %v527 = vpop.permute.xlu0 %526
          %vm528 = vcmp.eq.s32.totalorder %v293, %v527
          %530 = vset.pattern.permute.xlu0 3
          %531 = vperm.xlu0 %530, %v513
          %v532 = vpop.permute.xlu0 %531
          %v534 = vsel %vm528, %v532, 0.0
          %v535 = vadd.f32 %v524, %v534
          %v536 = vadd.f32 %v514, %v535
          %537 = vst.msk [vmem:[#allocation2] sm:$0xff] %vm294, %v536
          %v538 = vmul.f32 %v279, 5.0
          %v539 = vadd.f32 %v289, %v538
          %v540 = vadd.f32 %v539, %v308
          %vm541 = vcmp.ge.f32.partialorder %v540, -1.0
          %vm542 = vcmp.le.f32.partialorder %v540, 16.0
          %vm543 = vmand %vm541, %vm542
          %vm544 = vmand %vm304, %vm543
          %v545 = vsel %vm544, 1, 0
          %v546 = vcvt.s32.f32 %v545
          %v547 = vmax.f32 %v540, 0.0
          %v548 = vfloor.f32 %v547
          %v549 = vcvt.f32.s32.to.zero.pseudo %v548
          %vm550 = vcmp.ge.s32.totalorder %v549, 15
          %v551 = vsel %vm550, 15, %v549
          %v552 = vadd.s32 %v549, 1
          %v553 = vsel %vm550, 15, %v552
          %v554 = vcvt.s32.f32 %v551
          %v555 = vsub.f32 %v547, %v554
          %v556 = vsel %vm550, 0.0, %v555
          %v557 = vsub.f32 1.0, %v556
          %v558 = vmul.f32 %v557, %v546
          %v559 = vmul.f32 %v556, %v546
          %v560 = vld [vmem:[#allocation2] sm:$0xff]
          %561 = vset.pattern.permute.xlu0 3
          %562 = vperm.xlu0 %561, %v551
          %v563 = vpop.permute.xlu0 %562
          %vm564 = vcmp.eq.s32.totalorder %v293, %v563
          %566 = vset.pattern.permute.xlu0 3
          %567 = vperm.xlu0 %566, %v558
          %v568 = vpop.permute.xlu0 %567
          %v570 = vsel %vm564, %v568, 0.0
          %571 = vset.pattern.permute.xlu0 3
          %572 = vperm.xlu0 %571, %v553
          %v573 = vpop.permute.xlu0 %572
          %vm574 = vcmp.eq.s32.totalorder %v293, %v573
          %576 = vset.pattern.permute.xlu0 3
          %577 = vperm.xlu0 %576, %v559
          %v578 = vpop.permute.xlu0 %577
          %v580 = vsel %vm574, %v578, 0.0
          %v581 = vadd.f32 %v570, %v580
          %v582 = vadd.f32 %v560, %v581
          %583 = vst.msk [vmem:[#allocation2] sm:$0xff] %vm294, %v582
          %v584 = vmul.f32 %v279, 6.0
          %v585 = vadd.f32 %v289, %v584
          %v586 = vadd.f32 %v585, %v308
          %vm587 = vcmp.ge.f32.partialorder %v586, -1.0
          %vm588 = vcmp.le.f32.partialorder %v586, 16.0
          %vm589 = vmand %vm587, %vm588
          %vm590 = vmand %vm304, %vm589
          %v591 = vsel %vm590, 1, 0
          %v592 = vcvt.s32.f32 %v591
          %v593 = vmax.f32 %v586, 0.0
          %v594 = vfloor.f32 %v593
          %v595 = vcvt.f32.s32.to.zero.pseudo %v594
          %vm596 = vcmp.ge.s32.totalorder %v595, 15
          %v597 = vsel %vm596, 15, %v595
          %v598 = vadd.s32 %v595, 1
          %v599 = vsel %vm596, 15, %v598
          %v600 = vcvt.s32.f32 %v597
          %v601 = vsub.f32 %v593, %v600
          %v602 = vsel %vm596, 0.0, %v601
          %v603 = vsub.f32 1.0, %v602
          %v604 = vmul.f32 %v603, %v592
          %v605 = vmul.f32 %v602, %v592
          %v606 = vld [vmem:[#allocation2] sm:$0xff]
          %607 = vset.pattern.permute.xlu0 3
          %608 = vperm.xlu0 %607, %v597
          %v609 = vpop.permute.xlu0 %608
          %vm610 = vcmp.eq.s32.totalorder %v293, %v609
          %612 = vset.pattern.permute.xlu0 3
          %613 = vperm.xlu0 %612, %v604
          %v614 = vpop.permute.xlu0 %613
          %v616 = vsel %vm610, %v614, 0.0
          %617 = vset.pattern.permute.xlu0 3
          %618 = vperm.xlu0 %617, %v599
          %v619 = vpop.permute.xlu0 %618
          %vm620 = vcmp.eq.s32.totalorder %v293, %v619
          %622 = vset.pattern.permute.xlu0 3
          %623 = vperm.xlu0 %622, %v605
          %v624 = vpop.permute.xlu0 %623
          %v626 = vsel %vm620, %v624, 0.0
          %v627 = vadd.f32 %v616, %v626
          %v628 = vadd.f32 %v606, %v627
          %629 = vst.msk [vmem:[#allocation2] sm:$0xff] %vm294, %v628
          %v630 = vmul.f32 %v279, 7.0
          %v631 = vadd.f32 %v289, %v630
          %v632 = vadd.f32 %v631, %v308
          %vm633 = vcmp.ge.f32.partialorder %v632, -1.0
          %vm634 = vcmp.le.f32.partialorder %v632, 16.0
          %vm635 = vmand %vm633, %vm634
          %vm636 = vmand %vm304, %vm635
          %v637 = vsel %vm636, 1, 0
          %v638 = vcvt.s32.f32 %v637
          %v639 = vmax.f32 %v632, 0.0
          %v640 = vfloor.f32 %v639
          %v641 = vcvt.f32.s32.to.zero.pseudo %v640
          %vm642 = vcmp.ge.s32.totalorder %v641, 15
          %v643 = vsel %vm642, 15, %v641
          %v644 = vadd.s32 %v641, 1
          %v645 = vsel %vm642, 15, %v644
          %v646 = vcvt.s32.f32 %v643
          %v647 = vsub.f32 %v639, %v646
          %v648 = vsel %vm642, 0.0, %v647
          %v649 = vsub.f32 1.0, %v648
          %v650 = vmul.f32 %v649, %v638
          %v651 = vmul.f32 %v648, %v638
          %v652 = vld [vmem:[#allocation2] sm:$0xff]
          %653 = vset.pattern.permute.xlu0 3
          %654 = vperm.xlu0 %653, %v643
          %v655 = vpop.permute.xlu0 %654
          %vm656 = vcmp.eq.s32.totalorder %v293, %v655
          %658 = vset.pattern.permute.xlu0 3
          %659 = vperm.xlu0 %658, %v650
          %v660 = vpop.permute.xlu0 %659
          %v662 = vsel %vm656, %v660, 0.0
          %663 = vset.pattern.permute.xlu0 3
          %664 = vperm.xlu0 %663, %v645
          %v665 = vpop.permute.xlu0 %664
          %vm666 = vcmp.eq.s32.totalorder %v293, %v665
          %668 = vset.pattern.permute.xlu0 3
          %669 = vperm.xlu0 %668, %v651
          %v670 = vpop.permute.xlu0 %669
          %v672 = vsel %vm666, %v670, 0.0
          %v673 = vadd.f32 %v662, %v672
          %v674 = vadd.f32 %v652, %v673
          %675 = vst.msk [vmem:[#allocation2] sm:$0xff] %vm294, %v674
          %v676 = vmul.f32 %v279, 8.0
          %v677 = vadd.f32 %v289, %v676
          %v678 = vadd.f32 %v677, %v308
          %vm679 = vcmp.ge.f32.partialorder %v678, -1.0
          %vm680 = vcmp.le.f32.partialorder %v678, 16.0
          %vm681 = vmand %vm679, %vm680
          %vm682 = vmand %vm304, %vm681
          %v683 = vsel %vm682, 1, 0
          %v684 = vcvt.s32.f32 %v683
          %v685 = vmax.f32 %v678, 0.0
          %v686 = vfloor.f32 %v685
          %v687 = vcvt.f32.s32.to.zero.pseudo %v686
          %vm688 = vcmp.ge.s32.totalorder %v687, 15
          %v689 = vsel %vm688, 15, %v687
          %v690 = vadd.s32 %v687, 1
          %v691 = vsel %vm688, 15, %v690
          %v692 = vcvt.s32.f32 %v689
          %v693 = vsub.f32 %v685, %v692
          %v694 = vsel %vm688, 0.0, %v693
          %v695 = vsub.f32 1.0, %v694
          %v696 = vmul.f32 %v695, %v684
          %v697 = vmul.f32 %v694, %v684
          %v698 = vld [vmem:[#allocation2] sm:$0xff]
          %699 = vset.pattern.permute.xlu0 3
          %700 = vperm.xlu0 %699, %v689
          %v701 = vpop.permute.xlu0 %700
          %vm702 = vcmp.eq.s32.totalorder %v293, %v701
          %704 = vset.pattern.permute.xlu0 3
          %705 = vperm.xlu0 %704, %v696
          %v706 = vpop.permute.xlu0 %705
          %v708 = vsel %vm702, %v706, 0.0
          %709 = vset.pattern.permute.xlu0 3
          %710 = vperm.xlu0 %709, %v691
          %v711 = vpop.permute.xlu0 %710
          %vm712 = vcmp.eq.s32.totalorder %v293, %v711
          %714 = vset.pattern.permute.xlu0 3
          %715 = vperm.xlu0 %714, %v697
          %v716 = vpop.permute.xlu0 %715
          %v718 = vsel %vm712, %v716, 0.0
          %v719 = vadd.f32 %v708, %v718
          %v720 = vadd.f32 %v698, %v719
          %721 = vst.msk [vmem:[#allocation2] sm:$0xff] %vm294, %v720
          %v722 = vmul.f32 %v279, 9.0
          %v723 = vadd.f32 %v289, %v722
          %v724 = vadd.f32 %v723, %v308
          %vm725 = vcmp.ge.f32.partialorder %v724, -1.0
          %vm726 = vcmp.le.f32.partialorder %v724, 16.0
          %vm727 = vmand %vm725, %vm726
          %vm728 = vmand %vm304, %vm727
          %v729 = vsel %vm728, 1, 0
          %v730 = vcvt.s32.f32 %v729
          %v731 = vmax.f32 %v724, 0.0
          %v732 = vfloor.f32 %v731
          %v733 = vcvt.f32.s32.to.zero.pseudo %v732
          %vm734 = vcmp.ge.s32.totalorder %v733, 15
          %v735 = vsel %vm734, 15, %v733
          %v736 = vadd.s32 %v733, 1
          %v737 = vsel %vm734, 15, %v736
          %v738 = vcvt.s32.f32 %v735
          %v739 = vsub.f32 %v731, %v738
          %v740 = vsel %vm734, 0.0, %v739
          %v741 = vsub.f32 1.0, %v740
          %v742 = vmul.f32 %v741, %v730
          %v743 = vmul.f32 %v740, %v730
          %v744 = vld [vmem:[#allocation2] sm:$0xff]
          %745 = vset.pattern.permute.xlu0 3
          %746 = vperm.xlu0 %745, %v735
          %v747 = vpop.permute.xlu0 %746
          %vm748 = vcmp.eq.s32.totalorder %v293, %v747
          %750 = vset.pattern.permute.xlu0 3
          %751 = vperm.xlu0 %750, %v742
          %v752 = vpop.permute.xlu0 %751
          %v754 = vsel %vm748, %v752, 0.0
          %755 = vset.pattern.permute.xlu0 3
          %756 = vperm.xlu0 %755, %v737
          %v757 = vpop.permute.xlu0 %756
          %vm758 = vcmp.eq.s32.totalorder %v293, %v757
          %760 = vset.pattern.permute.xlu0 3
          %761 = vperm.xlu0 %760, %v743
          %v762 = vpop.permute.xlu0 %761
          %v764 = vsel %vm758, %v762, 0.0
          %v765 = vadd.f32 %v754, %v764
          %v766 = vadd.f32 %v744, %v765
          %767 = vst.msk [vmem:[#allocation2] sm:$0xff] %vm294, %v766
        $region45: #{tpu_custom_call.1} parent=31 // loop_footer
          %s300 = sadd.s32 %s298, 1
        $region46: #{tpu_custom_call.1} parent=31 // loop_footer_branch
          %297 = sbr.rel target = $region42
        $region47: #{tpu_custom_call.1} parent=31 // loop_exit
          _
        // While loop
        $region48: #{tpu_custom_call.1} parent=31 // loop_pre_header
          _
        $region49: #{tpu_custom_call.1} parent=31 // loop_header
          %s769 = sphi 0, %s771
          %p770 = scmp.ge.s32.totalorder %s769, %s255
        $region50: #{tpu_custom_call.1} parent=31 // loop_header_branch
          %773 = sbr.rel (%p770) target = $region54
        $region51: #{tpu_custom_call.1} parent=31 // loop_body
          %v774 = vstv %s769
          %vm775 = vcmp.lt.s32.totalorder %v774, %v281
          %s776 = scvt.s32.f32 %s769
          %s777 = sadd.f32 %s776, 0.5
          %v778 = vstv %s777
          %v779 = vmul.f32 %v778, %v291
          %v780 = vmul.f32 %v279, 0.0
          %v781 = vadd.f32 %v289, %v780
          %v782 = vadd.f32 %v781, %v779
          %vm783 = vcmp.ge.f32.partialorder %v782, -1.0
          %vm784 = vcmp.le.f32.partialorder %v782, 16.0
          %vm785 = vmand %vm783, %vm784
          %vm786 = vmand %vm775, %vm785
          %v787 = vsel %vm786, 1, 0
          %v788 = vcvt.s32.f32 %v787
          %v789 = vmax.f32 %v782, 0.0
          %v790 = vfloor.f32 %v789
          %v791 = vcvt.f32.s32.to.zero.pseudo %v790
          %vm792 = vcmp.ge.s32.totalorder %v791, 15
          %v793 = vsel %vm792, 15, %v791
          %v794 = vadd.s32 %v791, 1
          %v795 = vsel %vm792, 15, %v794
          %v796 = vcvt.s32.f32 %v793
          %v797 = vsub.f32 %v789, %v796
          %v798 = vsel %vm792, 0.0, %v797
          %v799 = vsub.f32 1.0, %v798
          %v800 = vmul.f32 %v799, %v788
          %v801 = vmul.f32 %v798, %v788
          %v802 = vld [vmem:[#allocation3] sm:$0xff]
          %803 = vset.pattern.permute.xlu0 2
          %804 = vperm.xlu0 %803, %v793
          %v805 = vpop.permute.xlu0 %804
          %vm806 = vcmp.eq.s32.totalorder %v293, %v805
          %808 = vset.pattern.permute.xlu0 2
          %809 = vperm.xlu0 %808, %v800
          %v810 = vpop.permute.xlu0 %809
          %v812 = vsel %vm806, %v810, 0.0
          %813 = vset.pattern.permute.xlu0 2
          %814 = vperm.xlu0 %813, %v795
          %v815 = vpop.permute.xlu0 %814
          %vm816 = vcmp.eq.s32.totalorder %v293, %v815
          %818 = vset.pattern.permute.xlu0 2
          %819 = vperm.xlu0 %818, %v801
          %v820 = vpop.permute.xlu0 %819
          %v822 = vsel %vm816, %v820, 0.0
          %v823 = vadd.f32 %v812, %v822
          %v824 = vadd.f32 %v802, %v823
          %825 = vst.msk [vmem:[#allocation3] sm:$0xff] %vm294, %v824
          %v826 = vadd.f32 %v289, %v279
          %v827 = vadd.f32 %v826, %v779
          %vm828 = vcmp.ge.f32.partialorder %v827, -1.0
          %vm829 = vcmp.le.f32.partialorder %v827, 16.0
          %vm830 = vmand %vm828, %vm829
          %vm831 = vmand %vm775, %vm830
          %v832 = vsel %vm831, 1, 0
          %v833 = vcvt.s32.f32 %v832
          %v834 = vmax.f32 %v827, 0.0
          %v835 = vfloor.f32 %v834
          %v836 = vcvt.f32.s32.to.zero.pseudo %v835
          %vm837 = vcmp.ge.s32.totalorder %v836, 15
          %v838 = vsel %vm837, 15, %v836
          %v839 = vadd.s32 %v836, 1
          %v840 = vsel %vm837, 15, %v839
          %v841 = vcvt.s32.f32 %v838
          %v842 = vsub.f32 %v834, %v841
          %v843 = vsel %vm837, 0.0, %v842
          %v844 = vsub.f32 1.0, %v843
          %v845 = vmul.f32 %v844, %v833
          %v846 = vmul.f32 %v843, %v833
          %v847 = vld [vmem:[#allocation3] sm:$0xff]
          %848 = vset.pattern.permute.xlu0 2
          %849 = vperm.xlu0 %848, %v838
          %v850 = vpop.permute.xlu0 %849
          %vm851 = vcmp.eq.s32.totalorder %v293, %v850
          %853 = vset.pattern.permute.xlu0 2
          %854 = vperm.xlu0 %853, %v845
          %v855 = vpop.permute.xlu0 %854
          %v857 = vsel %vm851, %v855, 0.0
          %858 = vset.pattern.permute.xlu0 2
          %859 = vperm.xlu0 %858, %v840
          %v860 = vpop.permute.xlu0 %859
          %vm861 = vcmp.eq.s32.totalorder %v293, %v860
          %863 = vset.pattern.permute.xlu0 2
          %864 = vperm.xlu0 %863, %v846
          %v865 = vpop.permute.xlu0 %864
          %v867 = vsel %vm861, %v865, 0.0
          %v868 = vadd.f32 %v857, %v867
          %v869 = vadd.f32 %v847, %v868
          %870 = vst.msk [vmem:[#allocation3] sm:$0xff] %vm294, %v869
          %v871 = vmul.f32 %v279, 2.0
          %v872 = vadd.f32 %v289, %v871
          %v873 = vadd.f32 %v872, %v779
          %vm874 = vcmp.ge.f32.partialorder %v873, -1.0
          %vm875 = vcmp.le.f32.partialorder %v873, 16.0
          %vm876 = vmand %vm874, %vm875
          %vm877 = vmand %vm775, %vm876
          %v878 = vsel %vm877, 1, 0
          %v879 = vcvt.s32.f32 %v878
          %v880 = vmax.f32 %v873, 0.0
          %v881 = vfloor.f32 %v880
          %v882 = vcvt.f32.s32.to.zero.pseudo %v881
          %vm883 = vcmp.ge.s32.totalorder %v882, 15
          %v884 = vsel %vm883, 15, %v882
          %v885 = vadd.s32 %v882, 1
          %v886 = vsel %vm883, 15, %v885
          %v887 = vcvt.s32.f32 %v884
          %v888 = vsub.f32 %v880, %v887
          %v889 = vsel %vm883, 0.0, %v888
          %v890 = vsub.f32 1.0, %v889
          %v891 = vmul.f32 %v890, %v879
          %v892 = vmul.f32 %v889, %v879
          %v893 = vld [vmem:[#allocation3] sm:$0xff]
          %894 = vset.pattern.permute.xlu0 2
          %895 = vperm.xlu0 %894, %v884
          %v896 = vpop.permute.xlu0 %895
          %vm897 = vcmp.eq.s32.totalorder %v293, %v896
          %899 = vset.pattern.permute.xlu0 2
          %900 = vperm.xlu0 %899, %v891
          %v901 = vpop.permute.xlu0 %900
          %v903 = vsel %vm897, %v901, 0.0
          %904 = vset.pattern.permute.xlu0 2
          %905 = vperm.xlu0 %904, %v886
          %v906 = vpop.permute.xlu0 %905
          %vm907 = vcmp.eq.s32.totalorder %v293, %v906
          %909 = vset.pattern.permute.xlu0 2
          %910 = vperm.xlu0 %909, %v892
          %v911 = vpop.permute.xlu0 %910
          %v913 = vsel %vm907, %v911, 0.0
          %v914 = vadd.f32 %v903, %v913
          %v915 = vadd.f32 %v893, %v914
          %916 = vst.msk [vmem:[#allocation3] sm:$0xff] %vm294, %v915
          %v917 = vmul.f32 %v279, 3.0
          %v918 = vadd.f32 %v289, %v917
          %v919 = vadd.f32 %v918, %v779
          %vm920 = vcmp.ge.f32.partialorder %v919, -1.0
          %vm921 = vcmp.le.f32.partialorder %v919, 16.0
          %vm922 = vmand %vm920, %vm921
          %vm923 = vmand %vm775, %vm922
          %v924 = vsel %vm923, 1, 0
          %v925 = vcvt.s32.f32 %v924
          %v926 = vmax.f32 %v919, 0.0
          %v927 = vfloor.f32 %v926
          %v928 = vcvt.f32.s32.to.zero.pseudo %v927
          %vm929 = vcmp.ge.s32.totalorder %v928, 15
          %v930 = vsel %vm929, 15, %v928
          %v931 = vadd.s32 %v928, 1
          %v932 = vsel %vm929, 15, %v931
          %v933 = vcvt.s32.f32 %v930
          %v934 = vsub.f32 %v926, %v933
          %v935 = vsel %vm929, 0.0, %v934
          %v936 = vsub.f32 1.0, %v935
          %v937 = vmul.f32 %v936, %v925
          %v938 = vmul.f32 %v935, %v925
          %v939 = vld [vmem:[#allocation3] sm:$0xff]
          %940 = vset.pattern.permute.xlu0 2
          %941 = vperm.xlu0 %940, %v930
          %v942 = vpop.permute.xlu0 %941
          %vm943 = vcmp.eq.s32.totalorder %v293, %v942
          %945 = vset.pattern.permute.xlu0 2
          %946 = vperm.xlu0 %945, %v937
          %v947 = vpop.permute.xlu0 %946
          %v949 = vsel %vm943, %v947, 0.0
          %950 = vset.pattern.permute.xlu0 2
          %951 = vperm.xlu0 %950, %v932
          %v952 = vpop.permute.xlu0 %951
          %vm953 = vcmp.eq.s32.totalorder %v293, %v952
          %955 = vset.pattern.permute.xlu0 2
          %956 = vperm.xlu0 %955, %v938
          %v957 = vpop.permute.xlu0 %956
          %v959 = vsel %vm953, %v957, 0.0
          %v960 = vadd.f32 %v949, %v959
          %v961 = vadd.f32 %v939, %v960
          %962 = vst.msk [vmem:[#allocation3] sm:$0xff] %vm294, %v961
          %v963 = vmul.f32 %v279, 4.0
          %v964 = vadd.f32 %v289, %v963
          %v965 = vadd.f32 %v964, %v779
          %vm966 = vcmp.ge.f32.partialorder %v965, -1.0
          %vm967 = vcmp.le.f32.partialorder %v965, 16.0
          %vm968 = vmand %vm966, %vm967
          %vm969 = vmand %vm775, %vm968
          %v970 = vsel %vm969, 1, 0
          %v971 = vcvt.s32.f32 %v970
          %v972 = vmax.f32 %v965, 0.0
          %v973 = vfloor.f32 %v972
          %v974 = vcvt.f32.s32.to.zero.pseudo %v973
          %vm975 = vcmp.ge.s32.totalorder %v974, 15
          %v976 = vsel %vm975, 15, %v974
          %v977 = vadd.s32 %v974, 1
          %v978 = vsel %vm975, 15, %v977
          %v979 = vcvt.s32.f32 %v976
          %v980 = vsub.f32 %v972, %v979
          %v981 = vsel %vm975, 0.0, %v980
          %v982 = vsub.f32 1.0, %v981
          %v983 = vmul.f32 %v982, %v971
          %v984 = vmul.f32 %v981, %v971
          %v985 = vld [vmem:[#allocation3] sm:$0xff]
          %986 = vset.pattern.permute.xlu0 2
          %987 = vperm.xlu0 %986, %v976
          %v988 = vpop.permute.xlu0 %987
          %vm989 = vcmp.eq.s32.totalorder %v293, %v988
          %991 = vset.pattern.permute.xlu0 2
          %992 = vperm.xlu0 %991, %v983
          %v993 = vpop.permute.xlu0 %992
          %v995 = vsel %vm989, %v993, 0.0
          %996 = vset.pattern.permute.xlu0 2
          %997 = vperm.xlu0 %996, %v978
          %v998 = vpop.permute.xlu0 %997
          %vm999 = vcmp.eq.s32.totalorder %v293, %v998
          %1001 = vset.pattern.permute.xlu0 2
          %1002 = vperm.xlu0 %1001, %v984
          %v1003 = vpop.permute.xlu0 %1002
          %v1005 = vsel %vm999, %v1003, 0.0
          %v1006 = vadd.f32 %v995, %v1005
          %v1007 = vadd.f32 %v985, %v1006
          %1008 = vst.msk [vmem:[#allocation3] sm:$0xff] %vm294, %v1007
          %v1009 = vmul.f32 %v279, 5.0
          %v1010 = vadd.f32 %v289, %v1009
          %v1011 = vadd.f32 %v1010, %v779
          %vm1012 = vcmp.ge.f32.partialorder %v1011, -1.0
          %vm1013 = vcmp.le.f32.partialorder %v1011, 16.0
          %vm1014 = vmand %vm1012, %vm1013
          %vm1015 = vmand %vm775, %vm1014
          %v1016 = vsel %vm1015, 1, 0
          %v1017 = vcvt.s32.f32 %v1016
          %v1018 = vmax.f32 %v1011, 0.0
          %v1019 = vfloor.f32 %v1018
          %v1020 = vcvt.f32.s32.to.zero.pseudo %v1019
          %vm1021 = vcmp.ge.s32.totalorder %v1020, 15
          %v1022 = vsel %vm1021, 15, %v1020
          %v1023 = vadd.s32 %v1020, 1
          %v1024 = vsel %vm1021, 15, %v1023
          %v1025 = vcvt.s32.f32 %v1022
          %v1026 = vsub.f32 %v1018, %v1025
          %v1027 = vsel %vm1021, 0.0, %v1026
          %v1028 = vsub.f32 1.0, %v1027
          %v1029 = vmul.f32 %v1028, %v1017
          %v1030 = vmul.f32 %v1027, %v1017
          %v1031 = vld [vmem:[#allocation3] sm:$0xff]
          %1032 = vset.pattern.permute.xlu0 2
          %1033 = vperm.xlu0 %1032, %v1022
          %v1034 = vpop.permute.xlu0 %1033
          %vm1035 = vcmp.eq.s32.totalorder %v293, %v1034
          %1037 = vset.pattern.permute.xlu0 2
          %1038 = vperm.xlu0 %1037, %v1029
          %v1039 = vpop.permute.xlu0 %1038
          %v1041 = vsel %vm1035, %v1039, 0.0
          %1042 = vset.pattern.permute.xlu0 2
          %1043 = vperm.xlu0 %1042, %v1024
          %v1044 = vpop.permute.xlu0 %1043
          %vm1045 = vcmp.eq.s32.totalorder %v293, %v1044
          %1047 = vset.pattern.permute.xlu0 2
          %1048 = vperm.xlu0 %1047, %v1030
          %v1049 = vpop.permute.xlu0 %1048
          %v1051 = vsel %vm1045, %v1049, 0.0
          %v1052 = vadd.f32 %v1041, %v1051
          %v1053 = vadd.f32 %v1031, %v1052
          %1054 = vst.msk [vmem:[#allocation3] sm:$0xff] %vm294, %v1053
          %v1055 = vmul.f32 %v279, 6.0
          %v1056 = vadd.f32 %v289, %v1055
          %v1057 = vadd.f32 %v1056, %v779
          %vm1058 = vcmp.ge.f32.partialorder %v1057, -1.0
          %vm1059 = vcmp.le.f32.partialorder %v1057, 16.0
          %vm1060 = vmand %vm1058, %vm1059
          %vm1061 = vmand %vm775, %vm1060
          %v1062 = vsel %vm1061, 1, 0
          %v1063 = vcvt.s32.f32 %v1062
          %v1064 = vmax.f32 %v1057, 0.0
          %v1065 = vfloor.f32 %v1064
          %v1066 = vcvt.f32.s32.to.zero.pseudo %v1065
          %vm1067 = vcmp.ge.s32.totalorder %v1066, 15
          %v1068 = vsel %vm1067, 15, %v1066
          %v1069 = vadd.s32 %v1066, 1
          %v1070 = vsel %vm1067, 15, %v1069
          %v1071 = vcvt.s32.f32 %v1068
          %v1072 = vsub.f32 %v1064, %v1071
          %v1073 = vsel %vm1067, 0.0, %v1072
          %v1074 = vsub.f32 1.0, %v1073
          %v1075 = vmul.f32 %v1074, %v1063
          %v1076 = vmul.f32 %v1073, %v1063
          %v1077 = vld [vmem:[#allocation3] sm:$0xff]
          %1078 = vset.pattern.permute.xlu0 2
          %1079 = vperm.xlu0 %1078, %v1068
          %v1080 = vpop.permute.xlu0 %1079
          %vm1081 = vcmp.eq.s32.totalorder %v293, %v1080
          %1083 = vset.pattern.permute.xlu0 2
          %1084 = vperm.xlu0 %1083, %v1075
          %v1085 = vpop.permute.xlu0 %1084
          %v1087 = vsel %vm1081, %v1085, 0.0
          %1088 = vset.pattern.permute.xlu0 2
          %1089 = vperm.xlu0 %1088, %v1070
          %v1090 = vpop.permute.xlu0 %1089
          %vm1091 = vcmp.eq.s32.totalorder %v293, %v1090
          %1093 = vset.pattern.permute.xlu0 2
          %1094 = vperm.xlu0 %1093, %v1076
          %v1095 = vpop.permute.xlu0 %1094
          %v1097 = vsel %vm1091, %v1095, 0.0
          %v1098 = vadd.f32 %v1087, %v1097
          %v1099 = vadd.f32 %v1077, %v1098
          %1100 = vst.msk [vmem:[#allocation3] sm:$0xff] %vm294, %v1099
          %v1101 = vmul.f32 %v279, 7.0
          %v1102 = vadd.f32 %v289, %v1101
          %v1103 = vadd.f32 %v1102, %v779
          %vm1104 = vcmp.ge.f32.partialorder %v1103, -1.0
          %vm1105 = vcmp.le.f32.partialorder %v1103, 16.0
          %vm1106 = vmand %vm1104, %vm1105
          %vm1107 = vmand %vm775, %vm1106
          %v1108 = vsel %vm1107, 1, 0
          %v1109 = vcvt.s32.f32 %v1108
          %v1110 = vmax.f32 %v1103, 0.0
          %v1111 = vfloor.f32 %v1110
          %v1112 = vcvt.f32.s32.to.zero.pseudo %v1111
          %vm1113 = vcmp.ge.s32.totalorder %v1112, 15
          %v1114 = vsel %vm1113, 15, %v1112
          %v1115 = vadd.s32 %v1112, 1
          %v1116 = vsel %vm1113, 15, %v1115
          %v1117 = vcvt.s32.f32 %v1114
          %v1118 = vsub.f32 %v1110, %v1117
          %v1119 = vsel %vm1113, 0.0, %v1118
          %v1120 = vsub.f32 1.0, %v1119
          %v1121 = vmul.f32 %v1120, %v1109
          %v1122 = vmul.f32 %v1119, %v1109
          %v1123 = vld [vmem:[#allocation3] sm:$0xff]
          %1124 = vset.pattern.permute.xlu0 2
          %1125 = vperm.xlu0 %1124, %v1114
          %v1126 = vpop.permute.xlu0 %1125
          %vm1127 = vcmp.eq.s32.totalorder %v293, %v1126
          %1129 = vset.pattern.permute.xlu0 2
          %1130 = vperm.xlu0 %1129, %v1121
          %v1131 = vpop.permute.xlu0 %1130
          %v1133 = vsel %vm1127, %v1131, 0.0
          %1134 = vset.pattern.permute.xlu0 2
          %1135 = vperm.xlu0 %1134, %v1116
          %v1136 = vpop.permute.xlu0 %1135
          %vm1137 = vcmp.eq.s32.totalorder %v293, %v1136
          %1139 = vset.pattern.permute.xlu0 2
          %1140 = vperm.xlu0 %1139, %v1122
          %v1141 = vpop.permute.xlu0 %1140
          %v1143 = vsel %vm1137, %v1141, 0.0
          %v1144 = vadd.f32 %v1133, %v1143
          %v1145 = vadd.f32 %v1123, %v1144
          %1146 = vst.msk [vmem:[#allocation3] sm:$0xff] %vm294, %v1145
          %v1147 = vmul.f32 %v279, 8.0
          %v1148 = vadd.f32 %v289, %v1147
          %v1149 = vadd.f32 %v1148, %v779
          %vm1150 = vcmp.ge.f32.partialorder %v1149, -1.0
          %vm1151 = vcmp.le.f32.partialorder %v1149, 16.0
          %vm1152 = vmand %vm1150, %vm1151
          %vm1153 = vmand %vm775, %vm1152
          %v1154 = vsel %vm1153, 1, 0
          %v1155 = vcvt.s32.f32 %v1154
          %v1156 = vmax.f32 %v1149, 0.0
          %v1157 = vfloor.f32 %v1156
          %v1158 = vcvt.f32.s32.to.zero.pseudo %v1157
          %vm1159 = vcmp.ge.s32.totalorder %v1158, 15
          %v1160 = vsel %vm1159, 15, %v1158
          %v1161 = vadd.s32 %v1158, 1
          %v1162 = vsel %vm1159, 15, %v1161
          %v1163 = vcvt.s32.f32 %v1160
          %v1164 = vsub.f32 %v1156, %v1163
          %v1165 = vsel %vm1159, 0.0, %v1164
          %v1166 = vsub.f32 1.0, %v1165
          %v1167 = vmul.f32 %v1166, %v1155
          %v1168 = vmul.f32 %v1165, %v1155
          %v1169 = vld [vmem:[#allocation3] sm:$0xff]
          %1170 = vset.pattern.permute.xlu0 2
          %1171 = vperm.xlu0 %1170, %v1160
          %v1172 = vpop.permute.xlu0 %1171
          %vm1173 = vcmp.eq.s32.totalorder %v293, %v1172
          %1175 = vset.pattern.permute.xlu0 2
          %1176 = vperm.xlu0 %1175, %v1167
          %v1177 = vpop.permute.xlu0 %1176
          %v1179 = vsel %vm1173, %v1177, 0.0
          %1180 = vset.pattern.permute.xlu0 2
          %1181 = vperm.xlu0 %1180, %v1162
          %v1182 = vpop.permute.xlu0 %1181
          %vm1183 = vcmp.eq.s32.totalorder %v293, %v1182
          %1185 = vset.pattern.permute.xlu0 2
          %1186 = vperm.xlu0 %1185, %v1168
          %v1187 = vpop.permute.xlu0 %1186
          %v1189 = vsel %vm1183, %v1187, 0.0
          %v1190 = vadd.f32 %v1179, %v1189
          %v1191 = vadd.f32 %v1169, %v1190
          %1192 = vst.msk [vmem:[#allocation3] sm:$0xff] %vm294, %v1191
          %v1193 = vmul.f32 %v279, 9.0
          %v1194 = vadd.f32 %v289, %v1193
          %v1195 = vadd.f32 %v1194, %v779
          %vm1196 = vcmp.ge.f32.partialorder %v1195, -1.0
          %vm1197 = vcmp.le.f32.partialorder %v1195, 16.0
          %vm1198 = vmand %vm1196, %vm1197
          %vm1199 = vmand %vm775, %vm1198
          %v1200 = vsel %vm1199, 1, 0
          %v1201 = vcvt.s32.f32 %v1200
          %v1202 = vmax.f32 %v1195, 0.0
          %v1203 = vfloor.f32 %v1202
          %v1204 = vcvt.f32.s32.to.zero.pseudo %v1203
          %vm1205 = vcmp.ge.s32.totalorder %v1204, 15
          %v1206 = vsel %vm1205, 15, %v1204
          %v1207 = vadd.s32 %v1204, 1
          %v1208 = vsel %vm1205, 15, %v1207
          %v1209 = vcvt.s32.f32 %v1206
          %v1210 = vsub.f32 %v1202, %v1209
          %v1211 = vsel %vm1205, 0.0, %v1210
          %v1212 = vsub.f32 1.0, %v1211
          %v1213 = vmul.f32 %v1212, %v1201
          %v1214 = vmul.f32 %v1211, %v1201
          %v1215 = vld [vmem:[#allocation3] sm:$0xff]
          %1216 = vset.pattern.permute.xlu0 2
          %1217 = vperm.xlu0 %1216, %v1206
          %v1218 = vpop.permute.xlu0 %1217
          %vm1219 = vcmp.eq.s32.totalorder %v293, %v1218
          %1221 = vset.pattern.permute.xlu0 2
          %1222 = vperm.xlu0 %1221, %v1213
          %v1223 = vpop.permute.xlu0 %1222
          %v1225 = vsel %vm1219, %v1223, 0.0
          %1226 = vset.pattern.permute.xlu0 2
          %1227 = vperm.xlu0 %1226, %v1208
          %v1228 = vpop.permute.xlu0 %1227
          %vm1229 = vcmp.eq.s32.totalorder %v293, %v1228
          %1231 = vset.pattern.permute.xlu0 2
          %1232 = vperm.xlu0 %1231, %v1214
          %v1233 = vpop.permute.xlu0 %1232
          %v1235 = vsel %vm1229, %v1233, 0.0
          %v1236 = vadd.f32 %v1225, %v1235
          %v1237 = vadd.f32 %v1215, %v1236
          %1238 = vst.msk [vmem:[#allocation3] sm:$0xff] %vm294, %v1237
        $region52: #{tpu_custom_call.1} parent=31 // loop_footer
          %s771 = sadd.s32 %s769, 1
        $region53: #{tpu_custom_call.1} parent=31 // loop_footer_branch
          %768 = sbr.rel target = $region49
        $region54: #{tpu_custom_call.1} parent=31 // loop_exit
          _
        %v1239 = vld [vmem:[#allocation2] sm:$0xff]
        %v1240 = vld [vmem:[%s204] sm:$0xff]
        %v1241 = vld [vmem:[%s204 + $0x8] sm:$0xff]
        %v1243 = vsel %vm294, %v1239, 0
        %1245 = vmatprep.subr.mxu0 0.0
        %1246 = vmatpush1.msra.mxu0 0.0
        %1247 = vmatprep.subr.mxu0 0.0
        %1248 = vmatpush1.msra.mxu0 0.0
        %1249 = vmatprep.subr.mxu0 0.0
        %1250 = vmatpush1.msra.mxu0 0.0
        %1251 = vmatprep.subr.mxu0 0.0
        %1252 = vmatpush1.msra.mxu0 0.0
        %1253 = vmatprep.subr.mxu0 0.0
        %1254 = vmatpush1.msra.mxu0 0.0
        %1255 = vmatprep.subr.mxu0 0.0
        %1256 = vmatpush1.msra.mxu0 0.0
        %1257 = vmatprep.subr.mxu0 0.0
        %1258 = vmatpush1.msra.mxu0 0.0
        %1259 = vmatprep.subr.mxu0 0.0
        %1260 = vmatpush1.msra.mxu0 0.0
        %1261 = vmatprep.subr.mxu0 0.0
        %1262 = vmatpush1.msra.mxu0 0.0
        %1263 = vmatprep.subr.mxu0 0.0
        %1264 = vmatpush1.msra.mxu0 0.0
        %1265 = vmatprep.subr.mxu0 0.0
        %1266 = vmatpush1.msra.mxu0 0.0
        %1267 = vmatprep.subr.mxu0 0.0
        %1268 = vmatpush1.msra.mxu0 0.0
        %1269 = vmatprep.subr.mxu0 0.0
        %1270 = vmatpush1.msra.mxu0 0.0
        %1271 = vmatprep.subr.mxu0 0.0
        %1272 = vmatpush1.msra.mxu0 0.0
        %1273 = vmatprep.subr.mxu0 0.0
        %1274 = vmatpush1.msra.mxu0 %v1241
        %1275 = vmatprep.subr.mxu0 0.0
        %1276 = vmatpush1.msra.mxu0 %v1240
        %1277 = vmatprep.subr.mxu0 0.0
        %1278 = vmatpush2.msra.mxu0 0.0
        %1279 = vmatprep.subr.mxu0 0.0
        %1280 = vmatpush2.msra.mxu0 0.0
        %1281 = vmatprep.subr.mxu0 0.0
        %1282 = vmatpush2.msra.mxu0 0.0
        %1283 = vmatprep.subr.mxu0 0.0
        %1284 = vmatpush2.msra.mxu0 0.0
        %1285 = vmatprep.subr.mxu0 0.0
        %1286 = vmatpush2.msra.mxu0 0.0
        %1287 = vmatprep.subr.mxu0 0.0
        %1288 = vmatpush2.msra.mxu0 0.0
        %1289 = vmatprep.subr.mxu0 0.0
        %1290 = vmatpush2.msra.mxu0 0.0
        %1291 = vmatprep.subr.mxu0 0.0
        %1292 = vmatpush2.msra.mxu0 0.0
        %1293 = vmatprep.subr.mxu0 0.0
        %1294 = vmatpush2.msra.mxu0 0.0
        %1295 = vmatprep.subr.mxu0 0.0
        %1296 = vmatpush2.msra.mxu0 0.0
        %1297 = vmatprep.subr.mxu0 0.0
        %1298 = vmatpush2.msra.mxu0 0.0
        %1299 = vmatprep.subr.mxu0 0.0
        %1300 = vmatpush2.msra.mxu0 0.0
        %1301 = vmatprep.subr.mxu0 0.0
        %1302 = vmatpush2.msra.mxu0 0.0
        %1303 = vmatprep.subr.mxu0 0.0
        %1304 = vmatpush2.msra.mxu0 0.0
        %1305 = vmatprep.subr.mxu0 0.0
        %1306 = vmatpush2.msra.mxu0 0.0
        %1307 = vmatprep.subr.mxu0 0.0
        %1308 = vmatpush2.msra.mxu0 0.0
        %1309 = vmatprep.mubr.f32.mxu0 0.0
        %1310 = vmatmul.mubr.f32.gmra.mxu0 %v1243
        %v1311 = vpop.f32.mrf.mxu0
        %v1312 = vadd.f32 0.0, %v1311
        %v1313 = vpop.f32.mrf.mxu0
        %1314 = vdwg.mxu0
        %v1315 = vld [vmem:[#allocation3] sm:$0xff]
        %v1316 = vmul.f32 %v1312, %v1315
        %v1317 = vsel %vm294, %v1316, 0.0
        %1318 = vadd.xlane.f32.xlu0 %v1317
        %v1319 = vpop.xlane.xlu0 %1318
        %v1320 = vrcp.pop %v287
        %v1321 = vmul.f32 0.0033333334, %v1320
        %v1322 = vmul.f32 %v1319, %v1321
        %1324 = vrot.lane.b32.xlu0 %v1322, 125
        %v1325 = vpop.permute.xlu0 %1324
        %vm1327 = vcmask 7168
        %1328 = vst.msk [vmem:[%s250] sm:$0xff] %vm1327, %v1325
        %p1329 = scmp.lt.s32.totalorder %s22, 1
        %s1330 = scalar_select %p1329, %s22, 1
        %p1331 = scmp.lt.s32.totalorder %s23, 0
        %s1332 = scalar_select %p1331, %s23, 0
        %s1333 = sadd.s32 %s1332, %s1330
        %s1334 = smul.addr %s1333, 8
        %s1335 = scalar_lea.vmem %s3, %s1334
        // Predicated region
        $region55: #{tpu_custom_call.1} parent=31 // pred_check
          %p1336 = pneg %p125
        $region56: #{tpu_custom_call.1} parent=31 // pred_check_branch
          %1338 = sbr.rel (%p1336) target = $region58
        $region57: #{tpu_custom_call.1} parent=31 // pred_region
          _
        $region58: #{tpu_custom_call.1} parent=31 // pred_fallthru
          _
      $region32: #{tpu_custom_call.1} parent=5 // pred_fallthru
        _
      %p1339 = scmp.le.s32.totalorder 2, %s13
      // Predicated region
      $region59: #{tpu_custom_call.1} parent=5 // pred_check
        %p1340 = pneg %p1339
      $region60: #{tpu_custom_call.1} parent=5 // pred_check_branch
        %1342 = sbr.rel (%p1340) target = $region62
      $region61: #{tpu_custom_call.1} parent=5 // pred_region
        %s1343 = ssub.s32 %s13, 2
        // Predicated region
        $region63: #{tpu_custom_call.1} parent=61 // pred_check
          %p1344 = pneg %p131
        $region64: #{tpu_custom_call.1} parent=61 // pred_check_branch
          %1346 = sbr.rel (%p1344) target = $region66
        $region65: #{tpu_custom_call.1} parent=61 // pred_region
          %p1347 = scmp.lt.s32.totalorder %s24, 1
          %s1348 = scalar_select %p1347, %s24, 1
          %p1349 = scmp.lt.s32.totalorder %s25, 0
          %s1350 = scalar_select %p1349, %s25, 0
          %s1351 = sadd.s32 %s1350, %s1348
          %s1352 = smul.addr %s1351, 8
          %s1353 = scalar_lea.vmem %s3, %s1352
        $region66: #{tpu_custom_call.1} parent=61 // pred_fallthru
          _
      $region62: #{tpu_custom_call.1} parent=5 // pred_fallthru
        _
    $region6: #{tpu_custom_call.1} parent=1 // loop_footer
      %s17 = sadd.s32 1, %s13
    $region7: #{tpu_custom_call.1} parent=1 // loop_footer_branch
      %12 = sbr.rel target = $region3
    $region8: #{tpu_custom_call.1} parent=1 // loop_exit
      _
    %1354 = vsyncpa [#allocation5], 1
    %s1355 = scalar_lea.sflag [#allocation5], 1
    %1356 = vsyncpa %s1355, 1
    %1357 = vsyncpa [#allocation6], 1
    %s1358 = scalar_lea.sflag [#allocation6], 1
    %1359 = vsyncpa %s1358, 1

</llo_original>
